<compile_context>
chip_gen: v7x
topology: tpu7x:2x2x1
jax: 0.10.0
libtpu: 0.0.40
codegen_flags: <defaults>
</compile_context>

<pallas_src>
import jax
import jax.numpy as jnp
from jax.experimental import pallas as pl
from jax.experimental.pallas import tpu as pltpu


def _round_up(n, m):
    return ((n + m - 1) // m) * m


def _mlp_kernel(x_ref, w1_ref, b1_ref, w2_ref, b2_ref, w3_ref, b3_ref, o_ref):
    """Fused 3-layer MLP on one batch tile; weights stay VMEM-resident."""
    # Match MXU operand dtype of the weights (bf16 weights -> bf16 x bf16 with
    # f32 accumulation); with f32 weights these casts are no-ops.
    x = x_ref[...].astype(w1_ref.dtype)

    # Layer 1: Linear + ReLU   (Dropout(p=0) elided)
    h = jnp.dot(x, w1_ref[...], preferred_element_type=jnp.float32) + b1_ref[...]
    h = jnp.maximum(h, 0.0)

    # Layer 2: Linear + ReLU   (Dropout(p=0) elided)
    h = jnp.dot(h.astype(w2_ref.dtype), w2_ref[...],
                preferred_element_type=jnp.float32) + b2_ref[...]
    h = jnp.maximum(h, 0.0)

    # Output layer: Linear + Sigmoid (sigmoid -> EUP slot)
    y = jnp.dot(h.astype(w3_ref.dtype), w3_ref[...],
                preferred_element_type=jnp.float32) + b3_ref[...]
    o_ref[...] = jax.nn.sigmoid(y).astype(o_ref.dtype)


def mlp_forward(x, params, *, tile_b=256):
    """x: [batch, d_in].  params: dict w1,b1,w2,b2,w3,b3 ([fan_in,fan_out] / [1,fan_out])."""
    batch, d_in = x.shape
    d_hidden = params["w1"].shape[1]
    d_out = params["w3"].shape[1]
    w1, b1 = params["w1"], params["b1"]
    w2, b2 = params["w2"], params["b2"]
    w3, b3 = params["w3"], params["b3"]

    # Batch tiling only.  Feature dims are NOT padded: block dims equal to the
    # full array dim are legal even when < 128; the compiler handles small K/N
    # directly in the dots.
    tile_b = min(tile_b, _round_up(batch, 8))
    batch_p = _round_up(batch, tile_b)
    grid = (batch_p // tile_b,)
    x_p = x if batch_p == batch else jnp.pad(x, ((0, batch_p - batch), (0, 0)))

    # Advisory cost estimate so XLA schedules around the custom call.
    nbytes = lambda a: a.size * a.dtype.itemsize
    flops = 2 * batch_p * (d_in * d_hidden + d_hidden * d_hidden + d_hidden * d_out)
    bytes_accessed = (nbytes(x_p) + nbytes(w1) + nbytes(b1) + nbytes(w2) + nbytes(b2)
                      + nbytes(w3) + nbytes(b3) + batch_p * d_out * x.dtype.itemsize)
    cost = pl.CostEstimate(flops=int(flops),
                           transcendentals=int(batch_p * d_out),
                           bytes_accessed=int(bytes_accessed))

    # Explicit VMEM budget from the actual buffers (+headroom).  Capped at
    # 64 MiB so the fully-resident-weight design stays valid per-TC on v7x.
    def vmem_limit(weight_bufs):
        w_bytes = weight_bufs * (nbytes(w1) + nbytes(b1) + nbytes(w2)
                                 + nbytes(b2) + nbytes(w3) + nbytes(b3))
        act_bytes = 2 * tile_b * (d_in + d_out) * 4        # double-buffered x / out tiles
        tmp_bytes = 4 * tile_b * max(d_hidden, d_out) * 4  # intermediates headroom
        est = int(1.5 * (w_bytes + act_bytes + tmp_bytes)) + (2 << 20)
        return min(max(est, 8 << 20), 64 << 20)

    def build(single_buffer_weights):
        if single_buffer_weights:
            # Constant index_map => the second pipeline buffer would never be
            # used; single-buffering halves resident weight VMEM.
            w_spec = lambda shape: pl.BlockSpec(shape, lambda i: (0, 0),
                                                pipeline_mode=pl.Buffered(1))
        else:
            w_spec = lambda shape: pl.BlockSpec(shape, lambda i: (0, 0))
        return pl.pallas_call(
            _mlp_kernel,
            out_shape=jax.ShapeDtypeStruct((batch_p, d_out), x.dtype),
            grid_spec=pltpu.PrefetchScalarGridSpec(
                num_scalar_prefetch=0,
                grid=grid,
                in_specs=[
                    pl.BlockSpec((tile_b, d_in), lambda i: (i, 0)),  # x tile, unpadded
                    w_spec(w1.shape), w_spec(b1.shape),
                    w_spec(w2.shape), w_spec(b2.shape),
                    w_spec(w3.shape), w_spec(b3.shape),
                ],
                out_specs=pl.BlockSpec((tile_b, d_out), lambda i: (i, 0)),
            ),
            compiler_params=pltpu.CompilerParams(
                dimension_semantics=("parallel",),
                vmem_limit_bytes=vmem_limit(1 if single_buffer_weights else 2)),
            cost_estimate=cost,
        )

    args = (x_p, w1, b1, w2, b2, w3, b3)
    try:
        out_p = build(single_buffer_weights=True)(*args)
    except Exception:
        # pipeline_mode=pl.Buffered(1) not accepted by this jax/Mosaic build:
        # fall back to default double-buffering (identical results).
        out_p = build(single_buffer_weights=False)(*args)

    return out_p if batch_p == batch else out_p[:batch]


def init_params(key, d_in, d_hidden, d_out):
    """torch.nn.Linear-style init (uniform +/- 1/sqrt(fan_in)); weights [fan_in, fan_out]."""
    def linear(key, fan_in, fan_out):
        kw, kb = jax.random.split(key)
        bound = 1.0 / jnp.sqrt(jnp.float32(fan_in))
        w = jax.random.uniform(kw, (fan_in, fan_out), jnp.float32, -bound, bound)
        b = jax.random.uniform(kb, (1, fan_out), jnp.float32, -bound, bound)
        return w, b

    k1, k2, k3 = jax.random.split(key, 3)
    w1, b1 = linear(k1, d_in, d_hidden)
    w2, b2 = linear(k2, d_hidden, d_hidden)
    w3, b3 = linear(k3, d_hidden, d_out)
    return dict(w1=w1, b1=b1, w2=w2, b2=b2, w3=w3, b3=b3)


def prepare_params(params, weight_dtype=jnp.float32):
    """One-time (init-time) weight cast, hoisted out of the forward path.
    bf16 weights halve weight DMA on v5e/v6e/v7x; biases stay f32 so all
    elementwise math remains f32 (v5e VPU/EUP have no bf16 path)."""
    out = dict(params)
    for k in ("w1", "w2", "w3"):
        out[k] = params[k].astype(weight_dtype)
    return out


def mlp_reference(x, p):
    h = jnp.maximum(x @ p["w1"] + p["b1"], 0.0)
    h = jnp.maximum(h @ p["w2"] + p["b2"], 0.0)
    return jax.nn.sigmoid(h @ p["w3"] + p["b3"])


if __name__ == "__main__":
    d_in, d_hidden, d_out = 32, 64, 16
    batch = 512   # tile_b=256 -> grid=(2,): both v7x TensorCores get a tile.

    key = jax.random.PRNGKey(0)
    kx, kp = jax.random.split(key)
    x = jax.random.normal(kx, (batch, d_in), jnp.float32)
    # f32 weights for the exactness check; pass weight_dtype=jnp.bfloat16 to
    # halve weight traffic (f32 MXU accumulation) on any TPU generation.
    params = prepare_params(init_params(kp, d_in, d_hidden, d_out),
                            weight_dtype=jnp.float32)

    out = mlp_forward(x, params, tile_b=256)
    out = jax.block_until_ready(out)

    ref = mlp_reference(x, params)
    assert out.shape == (batch, d_out)
    assert jnp.allclose(out, ref, atol=1e-5, rtol=1e-5), "mismatch vs reference"

    print("KERNEL_OK")
</pallas_src>

<mosaic_0001>
module attributes {stable_mosaic.version = 11 : i64} {
  func.func @_mlp_kernel(%arg0: i32, %arg1: memref<256x32xf32, #tpu.memory_space<vmem>>, %arg2: memref<32x64xf32, #tpu.memory_space<vmem>>, %arg3: memref<1x64xf32, #tpu.memory_space<vmem>>, %arg4: memref<64x64xf32, #tpu.memory_space<vmem>>, %arg5: memref<1x64xf32, #tpu.memory_space<vmem>>, %arg6: memref<64x16xf32, #tpu.memory_space<vmem>>, %arg7: memref<1x16xf32, #tpu.memory_space<vmem>>, %arg8: memref<256x16xf32, #tpu.memory_space<vmem>>) attributes {dimension_semantics = [#tpu.dimension_semantics<parallel>], iteration_bounds = array<i64: 2>, scalar_prefetch = 0 : i64, scratch_operands = 0 : i64, tpu.core_type = #tpu.core_type<tc>, window_params = [{transform_indices = @transform_0, window_bounds = array<i64: 256, 32>}, {pipeline_mode = #tpu.pipeline_mode<synchronous>, transform_indices = @transform_1, window_bounds = array<i64: 32, 64>}, {pipeline_mode = #tpu.pipeline_mode<synchronous>, transform_indices = @transform_2, window_bounds = array<i64: 1, 64>}, {pipeline_mode = #tpu.pipeline_mode<synchronous>, transform_indices = @transform_3, window_bounds = array<i64: 64, 64>}, {pipeline_mode = #tpu.pipeline_mode<synchronous>, transform_indices = @transform_4, window_bounds = array<i64: 1, 64>}, {pipeline_mode = #tpu.pipeline_mode<synchronous>, transform_indices = @transform_5, window_bounds = array<i64: 64, 16>}, {pipeline_mode = #tpu.pipeline_mode<synchronous>, transform_indices = @transform_6, window_bounds = array<i64: 1, 16>}, {transform_indices = @transform_7, window_bounds = array<i64: 256, 16>}]} {
    %c0 = arith.constant 0 : index
    %c0_0 = arith.constant 0 : index
    %0 = vector.load %arg1[%c0, %c0_0] : memref<256x32xf32, #tpu.memory_space<vmem>>, vector<256x32xf32>
    %c0_1 = arith.constant 0 : index
    %c0_2 = arith.constant 0 : index
    %1 = vector.load %arg2[%c0_1, %c0_2] : memref<32x64xf32, #tpu.memory_space<vmem>>, vector<32x64xf32>
    %cst = arith.constant dense<0.000000e+00> : vector<256x64xf32>
    %2 = tpu.matmul %0, %1, %cst {dimension_numbers = #tpu.dot_dimension_numbers<[1], [0], [0], [1], [0, 0, 1, 1], [], []>} : vector<256x32xf32>, vector<32x64xf32>, vector<256x64xf32> -> vector<256x64xf32>
    %c0_3 = arith.constant 0 : index
    %c0_4 = arith.constant 0 : index
    %3 = vector.load %arg3[%c0_3, %c0_4] : memref<1x64xf32, #tpu.memory_space<vmem>>, vector<1x64xf32>
    %4 = vector.broadcast %3 : vector<1x64xf32> to vector<256x64xf32>
    %5 = arith.addf %2, %4 : vector<256x64xf32>
    %cst_5 = arith.constant 0.000000e+00 : f32
    %6 = vector.broadcast %cst_5 : f32 to vector<256x64xf32>
    %7 = arith.maximumf %5, %6 : vector<256x64xf32>
    %c0_6 = arith.constant 0 : index
    %c0_7 = arith.constant 0 : index
    %8 = vector.load %arg4[%c0_6, %c0_7] : memref<64x64xf32, #tpu.memory_space<vmem>>, vector<64x64xf32>
    %cst_8 = arith.constant dense<0.000000e+00> : vector<256x64xf32>
    %9 = tpu.matmul %7, %8, %cst_8 {dimension_numbers = #tpu.dot_dimension_numbers<[1], [0], [0], [1], [0, 0, 1, 1], [], []>} : vector<256x64xf32>, vector<64x64xf32>, vector<256x64xf32> -> vector<256x64xf32>
    %c0_9 = arith.constant 0 : index
    %c0_10 = arith.constant 0 : index
    %10 = vector.load %arg5[%c0_9, %c0_10] : memref<1x64xf32, #tpu.memory_space<vmem>>, vector<1x64xf32>
    %11 = vector.broadcast %10 : vector<1x64xf32> to vector<256x64xf32>
    %12 = arith.addf %9, %11 : vector<256x64xf32>
    %cst_11 = arith.constant 0.000000e+00 : f32
    %13 = vector.broadcast %cst_11 : f32 to vector<256x64xf32>
    %14 = arith.maximumf %12, %13 : vector<256x64xf32>
    %c0_12 = arith.constant 0 : index
    %c0_13 = arith.constant 0 : index
    %15 = vector.load %arg6[%c0_12, %c0_13] : memref<64x16xf32, #tpu.memory_space<vmem>>, vector<64x16xf32>
    %cst_14 = arith.constant dense<0.000000e+00> : vector<256x16xf32>
    %16 = tpu.matmul %14, %15, %cst_14 {dimension_numbers = #tpu.dot_dimension_numbers<[1], [0], [0], [1], [0, 0, 1, 1], [], []>} : vector<256x64xf32>, vector<64x16xf32>, vector<256x16xf32> -> vector<256x16xf32>
    %c0_15 = arith.constant 0 : index
    %c0_16 = arith.constant 0 : index
    %17 = vector.load %arg7[%c0_15, %c0_16] : memref<1x16xf32, #tpu.memory_space<vmem>>, vector<1x16xf32>
    %18 = vector.broadcast %17 : vector<1x16xf32> to vector<256x16xf32>
    %19 = arith.addf %16, %18 : vector<256x16xf32>
    %20 = arith.negf %19 : vector<256x16xf32>
    %21 = math.exp %20 : vector<256x16xf32>
    %cst_17 = arith.constant 1.000000e+00 : f32
    %22 = vector.broadcast %cst_17 : f32 to vector<256x16xf32>
    %23 = arith.addf %22, %21 : vector<256x16xf32>
    %24 = arith.divf %22, %23 : vector<256x16xf32>
    %c0_18 = arith.constant 0 : index
    %c0_19 = arith.constant 0 : index
    %25 = vector.load %arg8[%c0_18, %c0_19] : memref<256x16xf32, #tpu.memory_space<vmem>>, vector<256x16xf32>
    tpu.vector_store %arg8[%c0_18, %c0_19], %24 {strides = array<i32>} : memref<256x16xf32, #tpu.memory_space<vmem>>, vector<256x16xf32>,
    return
  }
  func.func @transform_0(%arg0: i32) -> (i32, i32) {
    %c0_i32 = arith.constant 0 : i32
    %c0_i32_0 = arith.constant 0 : i32
    return %arg0, %c0_i32 : i32, i32
  }
  func.func @transform_1(%arg0: i32) -> (i32, i32) {
    %c0_i32 = arith.constant 0 : i32
    %c0_i32_0 = arith.constant 0 : i32
    %c0_i32_1 = arith.constant 0 : i32
    return %c0_i32, %c0_i32_0 : i32, i32
  }
  func.func @transform_2(%arg0: i32) -> (i32, i32) {
    %c0_i32 = arith.constant 0 : i32
    %c0_i32_0 = arith.constant 0 : i32
    %c0_i32_1 = arith.constant 0 : i32
    return %c0_i32, %c0_i32_0 : i32, i32
  }
  func.func @transform_3(%arg0: i32) -> (i32, i32) {
    %c0_i32 = arith.constant 0 : i32
    %c0_i32_0 = arith.constant 0 : i32
    %c0_i32_1 = arith.constant 0 : i32
    return %c0_i32, %c0_i32_0 : i32, i32
  }
  func.func @transform_4(%arg0: i32) -> (i32, i32) {
    %c0_i32 = arith.constant 0 : i32
    %c0_i32_0 = arith.constant 0 : i32
    %c0_i32_1 = arith.constant 0 : i32
    return %c0_i32, %c0_i32_0 : i32, i32
  }
  func.func @transform_5(%arg0: i32) -> (i32, i32) {
    %c0_i32 = arith.constant 0 : i32
    %c0_i32_0 = arith.constant 0 : i32
    %c0_i32_1 = arith.constant 0 : i32
    return %c0_i32, %c0_i32_0 : i32, i32
  }
  func.func @transform_6(%arg0: i32) -> (i32, i32) {
    %c0_i32 = arith.constant 0 : i32
    %c0_i32_0 = arith.constant 0 : i32
    %c0_i32_1 = arith.constant 0 : i32
    return %c0_i32, %c0_i32_0 : i32, i32
  }
  func.func @transform_7(%arg0: i32) -> (i32, i32) {
    %c0_i32 = arith.constant 0 : i32
    %c0_i32_0 = arith.constant 0 : i32
    return %arg0, %c0_i32 : i32, i32
  }
}

module attributes {stable_mosaic.version = 11 : i64} {
  func.func @_mlp_kernel(%arg0: i32, %arg1: memref<256x32xf32, #tpu.memory_space<vmem>>, %arg2: memref<32x64xf32, #tpu.memory_space<vmem>>, %arg3: memref<1x64xf32, #tpu.memory_space<vmem>>, %arg4: memref<64x64xf32, #tpu.memory_space<vmem>>, %arg5: memref<1x64xf32, #tpu.memory_space<vmem>>, %arg6: memref<64x16xf32, #tpu.memory_space<vmem>>, %arg7: memref<1x16xf32, #tpu.memory_space<vmem>>, %arg8: memref<256x16xf32, #tpu.memory_space<vmem>>) attributes {dimension_semantics = [#tpu.dimension_semantics<parallel>], iteration_bounds = array<i64: 2>, scalar_prefetch = 0 : i64, scratch_operands = 0 : i64, tpu.core_type = #tpu.core_type<tc>, window_params = [{transform_indices = @transform_0, window_bounds = array<i64: 256, 32>}, {pipeline_mode = #tpu.pipeline_mode<synchronous>, transform_indices = @transform_1, window_bounds = array<i64: 32, 64>}, {pipeline_mode = #tpu.pipeline_mode<synchronous>, transform_indices = @transform_2, window_bounds = array<i64: 1, 64>}, {pipeline_mode = #tpu.pipeline_mode<synchronous>, transform_indices = @transform_3, window_bounds = array<i64: 64, 64>}, {pipeline_mode = #tpu.pipeline_mode<synchronous>, transform_indices = @transform_4, window_bounds = array<i64: 1, 64>}, {pipeline_mode = #tpu.pipeline_mode<synchronous>, transform_indices = @transform_5, window_bounds = array<i64: 64, 16>}, {pipeline_mode = #tpu.pipeline_mode<synchronous>, transform_indices = @transform_6, window_bounds = array<i64: 1, 16>}, {transform_indices = @transform_7, window_bounds = array<i64: 256, 16>}]} {
    %c0 = arith.constant 0 : index
    %c0_0 = arith.constant 0 : index
    %0 = vector.load %arg1[%c0, %c0_0] : memref<256x32xf32, #tpu.memory_space<vmem>>, vector<256x32xf32>
    %c0_1 = arith.constant 0 : index
    %c0_2 = arith.constant 0 : index
    %1 = vector.load %arg2[%c0_1, %c0_2] : memref<32x64xf32, #tpu.memory_space<vmem>>, vector<32x64xf32>
    %cst = arith.constant dense<0.000000e+00> : vector<256x64xf32>
    %2 = tpu.matmul %0, %1, %cst {dimension_numbers = #tpu.dot_dimension_numbers<[1], [0], [0], [1], [0, 0, 1, 1], [], []>} : vector<256x32xf32>, vector<32x64xf32>, vector<256x64xf32> -> vector<256x64xf32>
    %c0_3 = arith.constant 0 : index
    %c0_4 = arith.constant 0 : index
    %3 = vector.load %arg3[%c0_3, %c0_4] : memref<1x64xf32, #tpu.memory_space<vmem>>, vector<1x64xf32>
    %4 = vector.broadcast %3 : vector<1x64xf32> to vector<256x64xf32>
    %5 = arith.addf %2, %4 : vector<256x64xf32>
    %cst_5 = arith.constant 0.000000e+00 : f32
    %6 = vector.broadcast %cst_5 : f32 to vector<256x64xf32>
    %7 = arith.maximumf %5, %6 : vector<256x64xf32>
    %c0_6 = arith.constant 0 : index
    %c0_7 = arith.constant 0 : index
    %8 = vector.load %arg4[%c0_6, %c0_7] : memref<64x64xf32, #tpu.memory_space<vmem>>, vector<64x64xf32>
    %cst_8 = arith.constant dense<0.000000e+00> : vector<256x64xf32>
    %9 = tpu.matmul %7, %8, %cst_8 {dimension_numbers = #tpu.dot_dimension_numbers<[1], [0], [0], [1], [0, 0, 1, 1], [], []>} : vector<256x64xf32>, vector<64x64xf32>, vector<256x64xf32> -> vector<256x64xf32>
    %c0_9 = arith.constant 0 : index
    %c0_10 = arith.constant 0 : index
    %10 = vector.load %arg5[%c0_9, %c0_10] : memref<1x64xf32, #tpu.memory_space<vmem>>, vector<1x64xf32>
    %11 = vector.broadcast %10 : vector<1x64xf32> to vector<256x64xf32>
    %12 = arith.addf %9, %11 : vector<256x64xf32>
    %cst_11 = arith.constant 0.000000e+00 : f32
    %13 = vector.broadcast %cst_11 : f32 to vector<256x64xf32>
    %14 = arith.maximumf %12, %13 : vector<256x64xf32>
    %c0_12 = arith.constant 0 : index
    %c0_13 = arith.constant 0 : index
    %15 = vector.load %arg6[%c0_12, %c0_13] : memref<64x16xf32, #tpu.memory_space<vmem>>, vector<64x16xf32>
    %cst_14 = arith.constant dense<0.000000e+00> : vector<256x16xf32>
    %16 = tpu.matmul %14, %15, %cst_14 {dimension_numbers = #tpu.dot_dimension_numbers<[1], [0], [0], [1], [0, 0, 1, 1], [], []>} : vector<256x64xf32>, vector<64x16xf32>, vector<256x16xf32> -> vector<256x16xf32>
    %c0_15 = arith.constant 0 : index
    %c0_16 = arith.constant 0 : index
    %17 = vector.load %arg7[%c0_15, %c0_16] : memref<1x16xf32, #tpu.memory_space<vmem>>, vector<1x16xf32>
    %18 = vector.broadcast %17 : vector<1x16xf32> to vector<256x16xf32>
    %19 = arith.addf %16, %18 : vector<256x16xf32>
    %20 = arith.negf %19 : vector<256x16xf32>
    %21 = math.exp %20 : vector<256x16xf32>
    %cst_17 = arith.constant 1.000000e+00 : f32
    %22 = vector.broadcast %cst_17 : f32 to vector<256x16xf32>
    %23 = arith.addf %22, %21 : vector<256x16xf32>
    %24 = arith.divf %22, %23 : vector<256x16xf32>
    %c0_18 = arith.constant 0 : index
    %c0_19 = arith.constant 0 : index
    %25 = vector.load %arg8[%c0_18, %c0_19] : memref<256x16xf32, #tpu.memory_space<vmem>>, vector<256x16xf32>
    tpu.vector_store %arg8[%c0_18, %c0_19], %24 {strides = array<i32>} : memref<256x16xf32, #tpu.memory_space<vmem>>, vector<256x16xf32>,
    return
  }
  func.func @transform_0(%arg0: i32) -> (i32, i32) {
    %c0_i32 = arith.constant 0 : i32
    %c0_i32_0 = arith.constant 0 : i32
    return %arg0, %c0_i32 : i32, i32
  }
  func.func @transform_1(%arg0: i32) -> (i32, i32) {
    %c0_i32 = arith.constant 0 : i32
    %c0_i32_0 = arith.constant 0 : i32
    %c0_i32_1 = arith.constant 0 : i32
    return %c0_i32, %c0_i32_0 : i32, i32
  }
  func.func @transform_2(%arg0: i32) -> (i32, i32) {
    %c0_i32 = arith.constant 0 : i32
    %c0_i32_0 = arith.constant 0 : i32
    %c0_i32_1 = arith.constant 0 : i32
    return %c0_i32, %c0_i32_0 : i32, i32
  }
  func.func @transform_3(%arg0: i32) -> (i32, i32) {
    %c0_i32 = arith.constant 0 : i32
    %c0_i32_0 = arith.constant 0 : i32
    %c0_i32_1 = arith.constant 0 : i32
    return %c0_i32, %c0_i32_0 : i32, i32
  }
  func.func @transform_4(%arg0: i32) -> (i32, i32) {
    %c0_i32 = arith.constant 0 : i32
    %c0_i32_0 = arith.constant 0 : i32
    %c0_i32_1 = arith.constant 0 : i32
    return %c0_i32, %c0_i32_0 : i32, i32
  }
  func.func @transform_5(%arg0: i32) -> (i32, i32) {
    %c0_i32 = arith.constant 0 : i32
    %c0_i32_0 = arith.constant 0 : i32
    %c0_i32_1 = arith.constant 0 : i32
    return %c0_i32, %c0_i32_0 : i32, i32
  }
  func.func @transform_6(%arg0: i32) -> (i32, i32) {
    %c0_i32 = arith.constant 0 : i32
    %c0_i32_0 = arith.constant 0 : i32
    %c0_i32_1 = arith.constant 0 : i32
    return %c0_i32, %c0_i32_0 : i32, i32
  }
  func.func @transform_7(%arg0: i32) -> (i32, i32) {
    %c0_i32 = arith.constant 0 : i32
    %c0_i32_0 = arith.constant 0 : i32
    return %arg0, %c0_i32 : i32, i32
  }
}

</mosaic_0001>

<llo_original>
// kernel: tpu_custom_call.1
$region0: #{tpu_custom_call.1}
  #allocation0 [shape = 'u32[]', space=smem, size = 0x4, offset = 0x4, fixed_abs, tag = 'smem constant byte address 0x4 - core index']
  #allocation1 [shape = 'u32[144,128]{1,0:T(1,128)}', space=vmem, size = 0x12000, scoped, tag = 'internal scratch']
  %s0 = inlined_call_operand.vmem [shape: f32[512,32], index: 0, kind: input, shape index: {}]
  %s1 = inlined_call_operand.vmem [shape: f32[32,64], index: 1, kind: input, shape index: {}]
  %s2 = inlined_call_operand.vmem [shape: f32[1,64], index: 2, kind: input, shape index: {}]
  %s3 = inlined_call_operand.vmem [shape: f32[64,64], index: 3, kind: input, shape index: {}]
  %s4 = inlined_call_operand.vmem [shape: f32[1,64], index: 4, kind: input, shape index: {}]
  %s5 = inlined_call_operand.vmem [shape: f32[64,16], index: 5, kind: input, shape index: {}]
  %s6 = inlined_call_operand.vmem [shape: f32[1,16], index: 6, kind: input, shape index: {}]
  %s7 = inlined_call_operand.vmem [shape: f32[512,16], index: 7, kind: output, shape index: {}]
  %s8 = sld [smem:[#allocation0]]
  $region61: #{tpu_custom_call.1} parent=0
    _
  %s10 = ssub.s32 1, %s8
  %s11 = scalar_select 0, %s10, %s8
  loop: start=0, step=1, limit=4
  $region2: #{tpu_custom_call.1} parent=0 // loop_pre_header
    _
  $region3: #{tpu_custom_call.1} parent=0 // loop_header
    %s13 = sphi 0, %s17
    %p14 = scmp.ge.s32.totalorder %s13, 4
    %s23 = sphi 0, %s25
    %s26 = sphi 0, %s23
    %s27 = sphi 0, %s26
    %s43 = sphi 0, %s27
    %s47 = sphi 0, %s47
    %s49 = sphi 0, %s47
    %s50 = sphi 0, %s49
    %s64 = sphi 0, %s50
    %s68 = sphi 0, %s68
    %s70 = sphi 0, %s68
    %s71 = sphi 0, %s70
    %s85 = sphi 0, %s71
    %s89 = sphi 0, %s89
    %s91 = sphi 0, %s89
    %s92 = sphi 0, %s91
    %s106 = sphi 0, %s92
    %s110 = sphi 0, %s110
    %s112 = sphi 0, %s110
    %s113 = sphi 0, %s112
    %s127 = sphi 0, %s113
    %s131 = sphi 0, %s131
    %s133 = sphi 0, %s131
    %s134 = sphi 0, %s133
    %s148 = sphi 0, %s134
    %s152 = sphi 0, %s152
    %s154 = sphi 0, %s152
    %s155 = sphi 0, %s154
    %s169 = sphi 0, %s155
    %s175 = sphi 0, %s177
    %s178 = sphi 0, %s175
    %s179 = sphi 0, %s178
    %s195 = sphi 0, %s179
  $region4: #{tpu_custom_call.1} parent=0 // loop_header_branch
    %16 = sbr.rel (%p14) target = $region8
  $region5: #{tpu_custom_call.1} parent=0 // loop_body
    %s18 = ssub.s32 %s13, 1
    %s19 = ssub.s32 %s13, 2
    %s20 = sadd.s32 %s13, 1
    %s21 = ssub.s32 %s13, %s20
    %p22 = scmp.eq.s32.totalorder %s21, 0
    %s24 = sadd.s32 %s23, 1
    %s25 = scalar_select %p22, %s23, %s24
    %p28 = pneg %p22
    %p29 = scmp.eq.s32.totalorder %s13, 1
    %p30 = por %p28, %p29
    %p31 = scmp.ne.s32.totalorder %s23, %s26
    %p32 = scmp.eq.s32.totalorder %s13, 0
    %p33 = por %p31, %p32
    %p34 = scmp.ne.s32.totalorder %s23, %s26
    %p35 = scmp.eq.s32.totalorder %s18, 1
    %p36 = por %p34, %p35
    %p37 = scmp.ne.s32.totalorder %s26, %s27
    %p38 = scmp.eq.s32.totalorder %s18, 0
    %p39 = por %p37, %p38
    %p40 = scmp.ne.s32.totalorder %s26, %s27
    %p41 = scmp.eq.s32.totalorder %s19, 1
    %p42 = por %p40, %p41
    %p44 = scmp.ne.s32.totalorder %s27, %s43
    %p45 = scmp.eq.s32.totalorder %s19, 0
    %p46 = por %p44, %p45
    %s48 = sadd.s32 %s47, 1
    %p51 = scmp.eq.s32.totalorder %s13, 1
    %p52 = scmp.ne.s32.totalorder %s47, %s49
    %p53 = scmp.eq.s32.totalorder %s13, 0
    %p54 = por %p52, %p53
    %p55 = scmp.ne.s32.totalorder %s47, %s49
    %p56 = scmp.eq.s32.totalorder %s18, 1
    %p57 = por %p55, %p56
    %p58 = scmp.ne.s32.totalorder %s49, %s50
    %p59 = scmp.eq.s32.totalorder %s18, 0
    %p60 = por %p58, %p59
    %p61 = scmp.ne.s32.totalorder %s49, %s50
    %p62 = scmp.eq.s32.totalorder %s19, 1
    %p63 = por %p61, %p62
    %p65 = scmp.ne.s32.totalorder %s50, %s64
    %p66 = scmp.eq.s32.totalorder %s19, 0
    %p67 = por %p65, %p66
    %s69 = sadd.s32 %s68, 1
    %p72 = scmp.eq.s32.totalorder %s13, 1
    %p73 = scmp.ne.s32.totalorder %s68, %s70
    %p74 = scmp.eq.s32.totalorder %s13, 0
    %p75 = por %p73, %p74
    %p76 = scmp.ne.s32.totalorder %s68, %s70
    %p77 = scmp.eq.s32.totalorder %s18, 1
    %p78 = por %p76, %p77
    %p79 = scmp.ne.s32.totalorder %s70, %s71
    %p80 = scmp.eq.s32.totalorder %s18, 0
    %p81 = por %p79, %p80
    %p82 = scmp.ne.s32.totalorder %s70, %s71
    %p83 = scmp.eq.s32.totalorder %s19, 1
    %p84 = por %p82, %p83
    %p86 = scmp.ne.s32.totalorder %s71, %s85
    %p87 = scmp.eq.s32.totalorder %s19, 0
    %p88 = por %p86, %p87
    %s90 = sadd.s32 %s89, 1
    %p93 = scmp.eq.s32.totalorder %s13, 1
    %p94 = scmp.ne.s32.totalorder %s89, %s91
    %p95 = scmp.eq.s32.totalorder %s13, 0
    %p96 = por %p94, %p95
    %p97 = scmp.ne.s32.totalorder %s89, %s91
    %p98 = scmp.eq.s32.totalorder %s18, 1
    %p99 = por %p97, %p98
    %p100 = scmp.ne.s32.totalorder %s91, %s92
    %p101 = scmp.eq.s32.totalorder %s18, 0
    %p102 = por %p100, %p101
    %p103 = scmp.ne.s32.totalorder %s91, %s92
    %p104 = scmp.eq.s32.totalorder %s19, 1
    %p105 = por %p103, %p104
    %p107 = scmp.ne.s32.totalorder %s92, %s106
    %p108 = scmp.eq.s32.totalorder %s19, 0
    %p109 = por %p107, %p108
    %s111 = sadd.s32 %s110, 1
    %p114 = scmp.eq.s32.totalorder %s13, 1
    %p115 = scmp.ne.s32.totalorder %s110, %s112
    %p116 = scmp.eq.s32.totalorder %s13, 0
    %p117 = por %p115, %p116
    %p118 = scmp.ne.s32.totalorder %s110, %s112
    %p119 = scmp.eq.s32.totalorder %s18, 1
    %p120 = por %p118, %p119
    %p121 = scmp.ne.s32.totalorder %s112, %s113
    %p122 = scmp.eq.s32.totalorder %s18, 0
    %p123 = por %p121, %p122
    %p124 = scmp.ne.s32.totalorder %s112, %s113
    %p125 = scmp.eq.s32.totalorder %s19, 1
    %p126 = por %p124, %p125
    %p128 = scmp.ne.s32.totalorder %s113, %s127
    %p129 = scmp.eq.s32.totalorder %s19, 0
    %p130 = por %p128, %p129
    %s132 = sadd.s32 %s131, 1
    %p135 = scmp.eq.s32.totalorder %s13, 1
    %p136 = scmp.ne.s32.totalorder %s131, %s133
    %p137 = scmp.eq.s32.totalorder %s13, 0
    %p138 = por %p136, %p137
    %p139 = scmp.ne.s32.totalorder %s131, %s133
    %p140 = scmp.eq.s32.totalorder %s18, 1
    %p141 = por %p139, %p140
    %p142 = scmp.ne.s32.totalorder %s133, %s134
    %p143 = scmp.eq.s32.totalorder %s18, 0
    %p144 = por %p142, %p143
    %p145 = scmp.ne.s32.totalorder %s133, %s134
    %p146 = scmp.eq.s32.totalorder %s19, 1
    %p147 = por %p145, %p146
    %p149 = scmp.ne.s32.totalorder %s134, %s148
    %p150 = scmp.eq.s32.totalorder %s19, 0
    %p151 = por %p149, %p150
    %s153 = sadd.s32 %s152, 1
    %p156 = scmp.eq.s32.totalorder %s13, 1
    %p157 = scmp.ne.s32.totalorder %s152, %s154
    %p158 = scmp.eq.s32.totalorder %s13, 0
    %p159 = por %p157, %p158
    %p160 = scmp.ne.s32.totalorder %s152, %s154
    %p161 = scmp.eq.s32.totalorder %s18, 1
    %p162 = por %p160, %p161
    %p163 = scmp.ne.s32.totalorder %s154, %s155
    %p164 = scmp.eq.s32.totalorder %s18, 0
    %p165 = por %p163, %p164
    %p166 = scmp.ne.s32.totalorder %s154, %s155
    %p167 = scmp.eq.s32.totalorder %s19, 1
    %p168 = por %p166, %p167
    %p170 = scmp.ne.s32.totalorder %s155, %s169
    %p171 = scmp.eq.s32.totalorder %s19, 0
    %p172 = por %p170, %p171
    %s173 = ssub.s32 %s13, %s20
    %p174 = scmp.eq.s32.totalorder %s173, 0
    %s176 = sadd.s32 %s175, 1
    %s177 = scalar_select %p174, %s175, %s176
    %p180 = pneg %p174
    %p181 = scmp.eq.s32.totalorder %s13, 1
    %p182 = por %p180, %p181
    %p183 = scmp.ne.s32.totalorder %s175, %s178
    %p184 = scmp.eq.s32.totalorder %s13, 0
    %p185 = por %p183, %p184
    %p186 = scmp.ne.s32.totalorder %s175, %s178
    %p187 = scmp.eq.s32.totalorder %s18, 1
    %p188 = por %p186, %p187
    %p189 = scmp.ne.s32.totalorder %s178, %s179
    %p190 = scmp.eq.s32.totalorder %s18, 0
    %p191 = por %p189, %p190
    %p192 = scmp.ne.s32.totalorder %s178, %s179
    %p193 = scmp.eq.s32.totalorder %s19, 1
    %p194 = por %p192, %p193
    %p196 = scmp.ne.s32.totalorder %s179, %s195
    %p197 = scmp.eq.s32.totalorder %s19, 0
    %p198 = por %p196, %p197
    %p199 = scmp.le.s32.totalorder 1, %s13
    %p200 = scmp.lt.s32.totalorder %s13, 3
    %p201 = pnand %p199, %p200
    %p202 = pneg %p201
    // Predicated region
    $region9: #{tpu_custom_call.1} parent=5 // pred_check
      _
    $region10: #{tpu_custom_call.1} parent=5 // pred_check_branch
      %204 = sbr.rel (%p201) target = $region12
    $region11: #{tpu_custom_call.1} parent=5 // pred_region
      %s205 = ssub.s32 %s13, 1
      // Predicated region
      $region13: #{tpu_custom_call.1} parent=11 // pred_check
        %p206 = pneg %p60
      $region14: #{tpu_custom_call.1} parent=11 // pred_check_branch
        %208 = sbr.rel (%p206) target = $region16
      $region15: #{tpu_custom_call.1} parent=11 // pred_region
        _
      $region16: #{tpu_custom_call.1} parent=11 // pred_fallthru
        _
      // Predicated region
      $region17: #{tpu_custom_call.1} parent=11 // pred_check
        %p209 = pneg %p81
      $region18: #{tpu_custom_call.1} parent=11 // pred_check_branch
        %211 = sbr.rel (%p209) target = $region20
      $region19: #{tpu_custom_call.1} parent=11 // pred_region
        _
      $region20: #{tpu_custom_call.1} parent=11 // pred_fallthru
        _
      // Predicated region
      $region21: #{tpu_custom_call.1} parent=11 // pred_check
        %p212 = pneg %p102
      $region22: #{tpu_custom_call.1} parent=11 // pred_check_branch
        %214 = sbr.rel (%p212) target = $region24
      $region23: #{tpu_custom_call.1} parent=11 // pred_region
        _
      $region24: #{tpu_custom_call.1} parent=11 // pred_fallthru
        _
      // Predicated region
      $region25: #{tpu_custom_call.1} parent=11 // pred_check
        %p215 = pneg %p123
      $region26: #{tpu_custom_call.1} parent=11 // pred_check_branch
        %217 = sbr.rel (%p215) target = $region28
      $region27: #{tpu_custom_call.1} parent=11 // pred_region
        _
      $region28: #{tpu_custom_call.1} parent=11 // pred_fallthru
        _
      // Predicated region
      $region29: #{tpu_custom_call.1} parent=11 // pred_check
        %p218 = pneg %p144
      $region30: #{tpu_custom_call.1} parent=11 // pred_check_branch
        %220 = sbr.rel (%p218) target = $region32
      $region31: #{tpu_custom_call.1} parent=11 // pred_region
        _
      $region32: #{tpu_custom_call.1} parent=11 // pred_fallthru
        _
      // Predicated region
      $region33: #{tpu_custom_call.1} parent=11 // pred_check
        %p221 = pneg %p165
      $region34: #{tpu_custom_call.1} parent=11 // pred_check_branch
        %223 = sbr.rel (%p221) target = $region36
      $region35: #{tpu_custom_call.1} parent=11 // pred_region
        _
      $region36: #{tpu_custom_call.1} parent=11 // pred_fallthru
        _
    $region12: #{tpu_custom_call.1} parent=5 // pred_fallthru
      _
    %p224 = scmp.lt.s32.totalorder %s13, 2
    // Predicated region
    $region37: #{tpu_custom_call.1} parent=5 // pred_check
      %p225 = pneg %p224
    $region38: #{tpu_custom_call.1} parent=5 // pred_check_branch
      %227 = sbr.rel (%p225) target = $region40
    $region39: #{tpu_custom_call.1} parent=5 // pred_region
      // Predicated region
      $region41: #{tpu_custom_call.1} parent=39 // pred_check
        %p228 = pneg %p33
      $region42: #{tpu_custom_call.1} parent=39 // pred_check_branch
        %230 = sbr.rel (%p228) target = $region44
      $region43: #{tpu_custom_call.1} parent=39 // pred_region
        %s231 = smul.u32 32, %s13
        %p232 = scmp.lt.s32.totalorder %s231, 63
        %s233 = scalar_select %p232, %s231, 63
        %s234 = smul.addr %s233, 8
        %s235 = scalar_lea.vmem %s0, %s234
        %s236 = smul.u32 32, %s13
      $region44: #{tpu_custom_call.1} parent=39 // pred_fallthru
        _
    $region40: #{tpu_custom_call.1} parent=5 // pred_fallthru
      _
    %p237 = scmp.le.s32.totalorder 1, %s13
    %p238 = scmp.lt.s32.totalorder %s13, 3
    %p239 = pnand %p237, %p238
    %p240 = pneg %p239
    // Predicated region
    $region45: #{tpu_custom_call.1} parent=5 // pred_check
      _
    $region46: #{tpu_custom_call.1} parent=5 // pred_check_branch
      %242 = sbr.rel (%p239) target = $region48
    $region47: #{tpu_custom_call.1} parent=5 // pred_region
      %s243 = ssub.s32 %s13, 1
      %s244 = smul.u32 32, %s18
      %p245 = scmp.lt.s32.totalorder %s244, 63
      %s246 = scalar_select %p245, %s244, 63
      %s247 = smul.addr %s246, 8
      %s248 = scalar_lea.vmem %s0, %s247
      %p249 = pneg %p39
      %p250 = pneg %p36
      %p251 = pneg %p60
      %p252 = pneg %p57
      %p253 = pneg %p81
      %p254 = pneg %p78
      %p255 = pneg %p102
      %p256 = pneg %p99
      %p257 = pneg %p123
      %p258 = pneg %p120
      %p259 = pneg %p144
      %p260 = pneg %p141
      %p261 = pneg %p165
      %p262 = pneg %p162
      %p263 = pneg %p191
      %p264 = pneg %p188
      %s265 = smul.u32 32, %s18
      %p266 = scmp.lt.s32.totalorder %s265, 63
      %s267 = scalar_select %p266, %s265, 63
      %s268 = smul.addr %s267, 8
      %s269 = scalar_lea.vmem %s7, %s268
      %s270 = smul.u32 32, %s18
      %p271 = scmp.lt.s32.totalorder %s270, 63
      %s272 = scalar_select %p271, %s270, 63
      %s273 = smul.addr %s272, 8
      %s274 = scalar_lea.vmem %s0, %s273
      %s275 = smul.u32 32, %s18
      %s276 = smul.u32 32, %s18
      %p277 = scmp.lt.s32.totalorder %s276, 63
      %s278 = scalar_select %p277, %s276, 63
      %s279 = smul.addr %s278, 8
      %s280 = scalar_lea.vmem %s7, %s279
      %s281 = smul.u32 32, %s18
      %v282 = vld [vmem:[%s274] sm:$0xff]
      %v283 = vld [vmem:[%s274 + $0x8] sm:$0xff]
      %v284 = vld [vmem:[%s274 + $0x10] sm:$0xff]
      %v285 = vld [vmem:[%s274 + $0x18] sm:$0xff]
      %v286 = vld [vmem:[%s274 + $0x20] sm:$0xff]
      %v287 = vld [vmem:[%s274 + $0x28] sm:$0xff]
      %v288 = vld [vmem:[%s274 + $0x30] sm:$0xff]
      %v289 = vld [vmem:[%s274 + $0x38] sm:$0xff]
      %v290 = vld [vmem:[%s274 + $0x40] sm:$0xff]
      %v291 = vld [vmem:[%s274 + $0x48] sm:$0xff]
      %v292 = vld [vmem:[%s274 + $0x50] sm:$0xff]
      %v293 = vld [vmem:[%s274 + $0x58] sm:$0xff]
      %v294 = vld [vmem:[%s274 + $0x60] sm:$0xff]
      %v295 = vld [vmem:[%s274 + $0x68] sm:$0xff]
      %v296 = vld [vmem:[%s274 + $0x70] sm:$0xff]
      %v297 = vld [vmem:[%s274 + $0x78] sm:$0xff]
      %v298 = vld [vmem:[%s274 + $0x80] sm:$0xff]
      %v299 = vld [vmem:[%s274 + $0x88] sm:$0xff]
      %v300 = vld [vmem:[%s274 + $0x90] sm:$0xff]
      %v301 = vld [vmem:[%s274 + $0x98] sm:$0xff]
      %v302 = vld [vmem:[%s274 + $0xa0] sm:$0xff]
      %v303 = vld [vmem:[%s274 + $0xa8] sm:$0xff]
      %v304 = vld [vmem:[%s274 + $0xb0] sm:$0xff]
      %v305 = vld [vmem:[%s274 + $0xb8] sm:$0xff]
      %v306 = vld [vmem:[%s274 + $0xc0] sm:$0xff]
      %v307 = vld [vmem:[%s274 + $0xc8] sm:$0xff]
      %v308 = vld [vmem:[%s274 + $0xd0] sm:$0xff]
      %v309 = vld [vmem:[%s274 + $0xd8] sm:$0xff]
      %v310 = vld [vmem:[%s274 + $0xe0] sm:$0xff]
      %v311 = vld [vmem:[%s274 + $0xe8] sm:$0xff]
      %v312 = vld [vmem:[%s274 + $0xf0] sm:$0xff]
      %v313 = vld [vmem:[%s274 + $0xf8] sm:$0xff]
      %v314 = vld [vmem:[%s1] sm:$0xff]
      %v315 = vld [vmem:[%s1 + $0x8] sm:$0xff]
      %v316 = vld [vmem:[%s1 + $0x10] sm:$0xff]
      %v317 = vld [vmem:[%s1 + $0x18] sm:$0xff]
      %v318 = vld [vmem:[%s2] sm:$0x1]
      %v320 = vlaneseq
      %v321 = vshrl.u32 %v320, 7
      %v322 = vsub.s32 0, %v321
      %v323 = vrot.slane %v318, %v322
      %vm325 = vcmask 261120
      %v327 = vsel %vm325, %v282, 0
      %v330 = vsel %vm325, %v283, 0
      %v333 = vsel %vm325, %v284, 0
      %v336 = vsel %vm325, %v285, 0
      %v339 = vsel %vm325, %v286, 0
      %v342 = vsel %vm325, %v287, 0
      %v345 = vsel %vm325, %v288, 0
      %v348 = vsel %vm325, %v289, 0
      %v351 = vsel %vm325, %v290, 0
      %v354 = vsel %vm325, %v291, 0
      %v357 = vsel %vm325, %v292, 0
      %v360 = vsel %vm325, %v293, 0
      %v363 = vsel %vm325, %v294, 0
      %v366 = vsel %vm325, %v295, 0
      %v369 = vsel %vm325, %v296, 0
      %v372 = vsel %vm325, %v297, 0
      %v375 = vsel %vm325, %v298, 0
      %v378 = vsel %vm325, %v299, 0
      %v381 = vsel %vm325, %v300, 0
      %v384 = vsel %vm325, %v301, 0
      %v387 = vsel %vm325, %v302, 0
      %v390 = vsel %vm325, %v303, 0
      %v393 = vsel %vm325, %v304, 0
      %v396 = vsel %vm325, %v305, 0
      %v399 = vsel %vm325, %v306, 0
      %v402 = vsel %vm325, %v307, 0
      %v405 = vsel %vm325, %v308, 0
      %v408 = vsel %vm325, %v309, 0
      %v411 = vsel %vm325, %v310, 0
      %v414 = vsel %vm325, %v311, 0
      %v417 = vsel %vm325, %v312, 0
      %v420 = vsel %vm325, %v313, 0
      %422 = vmatprep.subr.mxu0 0.0
      %423 = vmatpush1.msra.mxu0 %v314
      %424 = vmatprep.subr.mxu0 0.0
      %425 = vmatpush1.msra.mxu0 %v315
      %426 = vmatprep.subr.mxu0 0.0
      %427 = vmatpush1.msra.mxu0 %v316
      %428 = vmatprep.subr.mxu0 0.0
      %429 = vmatpush1.msra.mxu0 %v317
      %430 = vmatprep.subr.mxu0 0.0
      %431 = vmatpush1.msra.mxu0 0.0
      %432 = vmatprep.subr.mxu0 0.0
      %433 = vmatpush1.msra.mxu0 0.0
      %434 = vmatprep.subr.mxu0 0.0
      %435 = vmatpush1.msra.mxu0 0.0
      %436 = vmatprep.subr.mxu0 0.0
      %437 = vmatpush1.msra.mxu0 0.0
      %438 = vmatprep.subr.mxu0 0.0
      %439 = vmatpush1.msra.mxu0 0.0
      %440 = vmatprep.subr.mxu0 0.0
      %441 = vmatpush1.msra.mxu0 0.0
      %442 = vmatprep.subr.mxu0 0.0
      %443 = vmatpush1.msra.mxu0 0.0
      %444 = vmatprep.subr.mxu0 0.0
      %445 = vmatpush1.msra.mxu0 0.0
      %446 = vmatprep.subr.mxu0 0.0
      %447 = vmatpush1.msra.mxu0 0.0
      %448 = vmatprep.subr.mxu0 0.0
      %449 = vmatpush1.msra.mxu0 0.0
      %450 = vmatprep.subr.mxu0 0.0
      %451 = vmatpush1.msra.mxu0 0.0
      %452 = vmatprep.subr.mxu0 0.0
      %453 = vmatpush1.msra.mxu0 0.0
      %454 = vmatprep.subr.mxu0 0.0
      %455 = vmatpush1.msra.mxu0 0.0
      %456 = vmatprep.subr.mxu0 0.0
      %457 = vmatpush1.msra.mxu0 0.0
      %458 = vmatprep.subr.mxu0 0.0
      %459 = vmatpush1.msra.mxu0 0.0
      %460 = vmatprep.subr.mxu0 0.0
      %461 = vmatpush1.msra.mxu0 0.0
      %462 = vmatprep.subr.mxu0 0.0
      %463 = vmatpush1.msra.mxu0 0.0
      %464 = vmatprep.subr.mxu0 0.0
      %465 = vmatpush1.msra.mxu0 0.0
      %466 = vmatprep.subr.mxu0 0.0
      %467 = vmatpush1.msra.mxu0 0.0
      %468 = vmatprep.subr.mxu0 0.0
      %469 = vmatpush1.msra.mxu0 0.0
      %470 = vmatprep.subr.mxu0 0.0
      %471 = vmatpush1.msra.mxu0 0.0
      %472 = vmatprep.subr.mxu0 0.0
      %473 = vmatpush1.msra.mxu0 0.0
      %474 = vmatprep.subr.mxu0 0.0
      %475 = vmatpush1.msra.mxu0 0.0
      %476 = vmatprep.subr.mxu0 0.0
      %477 = vmatpush1.msra.mxu0 0.0
      %478 = vmatprep.subr.mxu0 0.0
      %479 = vmatpush1.msra.mxu0 0.0
      %480 = vmatprep.subr.mxu0 0.0
      %481 = vmatpush1.msra.mxu0 0.0
      %482 = vmatprep.subr.mxu0 0.0
      %483 = vmatpush1.msra.mxu0 0.0
      %484 = vmatprep.subr.mxu0 0.0
      %485 = vmatpush1.msra.mxu0 0.0
      %486 = vmatprep.mubr.f32.mxu0 0.0
      %487 = vmatmul.mubr.f32.gmra.mrb[0].mxu0 %v327
      %v488 = vpop.f32.mrb[0].mxu0
      %v489 = vadd.f32 %v323, %v488
      %v490 = vpop.f32.mrb[0].mxu0
      %491 = vmatprep.mubr.f32.mxu0 0.0
      %492 = vmatmul.mubr.f32.gmra.mrb[0].mxu0 %v330
      %v493 = vpop.f32.mrb[0].mxu0
      %v494 = vadd.f32 %v323, %v493
      %v495 = vpop.f32.mrb[0].mxu0
      %496 = vmatprep.mubr.f32.mxu0 0.0
      %497 = vmatmul.mubr.f32.gmra.mrb[0].mxu0 %v333
      %v498 = vpop.f32.mrb[0].mxu0
      %v499 = vadd.f32 %v323, %v498
      %v500 = vpop.f32.mrb[0].mxu0
      %501 = vmatprep.mubr.f32.mxu0 0.0
      %502 = vmatmul.mubr.f32.gmra.mrb[0].mxu0 %v336
      %v503 = vpop.f32.mrb[0].mxu0
      %v504 = vadd.f32 %v323, %v503
      %v505 = vpop.f32.mrb[0].mxu0
      %506 = vmatprep.mubr.f32.mxu0 0.0
      %507 = vmatmul.mubr.f32.gmra.mrb[0].mxu0 %v339
      %v508 = vpop.f32.mrb[0].mxu0
      %v509 = vadd.f32 %v323, %v508
      %v510 = vpop.f32.mrb[0].mxu0
      %511 = vmatprep.mubr.f32.mxu0 0.0
      %512 = vmatmul.mubr.f32.gmra.mrb[0].mxu0 %v342
      %v513 = vpop.f32.mrb[0].mxu0
      %v514 = vadd.f32 %v323, %v513
      %v515 = vpop.f32.mrb[0].mxu0
      %516 = vmatprep.mubr.f32.mxu0 0.0
      %517 = vmatmul.mubr.f32.gmra.mrb[0].mxu0 %v345
      %v518 = vpop.f32.mrb[0].mxu0
      %v519 = vadd.f32 %v323, %v518
      %v520 = vpop.f32.mrb[0].mxu0
      %521 = vmatprep.mubr.f32.mxu0 0.0
      %522 = vmatmul.mubr.f32.gmra.mrb[0].mxu0 %v348
      %v523 = vpop.f32.mrb[0].mxu0
      %v524 = vadd.f32 %v323, %v523
      %v525 = vpop.f32.mrb[0].mxu0
      %526 = vmatprep.mubr.f32.mxu0 0.0
      %527 = vmatmul.mubr.f32.gmra.mrb[0].mxu0 %v351
      %v528 = vpop.f32.mrb[0].mxu0
      %v529 = vadd.f32 %v323, %v528
      %v530 = vpop.f32.mrb[0].mxu0
      %531 = vmatprep.mubr.f32.mxu0 0.0
      %532 = vmatmul.mubr.f32.gmra.mrb[0].mxu0 %v354
      %v533 = vpop.f32.mrb[0].mxu0
      %v534 = vadd.f32 %v323, %v533
      %v535 = vpop.f32.mrb[0].mxu0
      %536 = vmatprep.mubr.f32.mxu0 0.0
      %537 = vmatmul.mubr.f32.gmra.mrb[0].mxu0 %v357
      %v538 = vpop.f32.mrb[0].mxu0
      %v539 = vadd.f32 %v323, %v538
      %v540 = vpop.f32.mrb[0].mxu0
      %541 = vmatprep.mubr.f32.mxu0 0.0
      %542 = vmatmul.mubr.f32.gmra.mrb[0].mxu0 %v360
      %v543 = vpop.f32.mrb[0].mxu0
      %v544 = vadd.f32 %v323, %v543
      %v545 = vpop.f32.mrb[0].mxu0
      %546 = vmatprep.mubr.f32.mxu0 0.0
      %547 = vmatmul.mubr.f32.gmra.mrb[0].mxu0 %v363
      %v548 = vpop.f32.mrb[0].mxu0
      %v549 = vadd.f32 %v323, %v548
      %v550 = vpop.f32.mrb[0].mxu0
      %551 = vmatprep.mubr.f32.mxu0 0.0
      %552 = vmatmul.mubr.f32.gmra.mrb[0].mxu0 %v366
      %v553 = vpop.f32.mrb[0].mxu0
      %v554 = vadd.f32 %v323, %v553
      %v555 = vpop.f32.mrb[0].mxu0
      %556 = vmatprep.mubr.f32.mxu0 0.0
      %557 = vmatmul.mubr.f32.gmra.mrb[0].mxu0 %v369
      %v558 = vpop.f32.mrb[0].mxu0
      %v559 = vadd.f32 %v323, %v558
      %v560 = vpop.f32.mrb[0].mxu0
      %561 = vmatprep.mubr.f32.mxu0 0.0
      %562 = vmatmul.mubr.f32.gmra.mrb[0].mxu0 %v372
      %v563 = vpop.f32.mrb[0].mxu0
      %v564 = vadd.f32 %v323, %v563
      %v565 = vpop.f32.mrb[0].mxu0
      %566 = vmatprep.mubr.f32.mxu0 0.0
      %567 = vmatmul.mubr.f32.gmra.mrb[0].mxu0 %v375
      %v568 = vpop.f32.mrb[0].mxu0
      %v569 = vadd.f32 %v323, %v568
      %v570 = vpop.f32.mrb[0].mxu0
      %571 = vmatprep.mubr.f32.mxu0 0.0
      %572 = vmatmul.mubr.f32.gmra.mrb[0].mxu0 %v378
      %v573 = vpop.f32.mrb[0].mxu0
      %v574 = vadd.f32 %v323, %v573
      %v575 = vpop.f32.mrb[0].mxu0
      %576 = vmatprep.mubr.f32.mxu0 0.0
      %577 = vmatmul.mubr.f32.gmra.mrb[0].mxu0 %v381
      %v578 = vpop.f32.mrb[0].mxu0
      %v579 = vadd.f32 %v323, %v578
      %v580 = vpop.f32.mrb[0].mxu0
      %581 = vmatprep.mubr.f32.mxu0 0.0
      %582 = vmatmul.mubr.f32.gmra.mrb[0].mxu0 %v384
      %v583 = vpop.f32.mrb[0].mxu0
      %v584 = vadd.f32 %v323, %v583
      %v585 = vpop.f32.mrb[0].mxu0
      %586 = vmatprep.mubr.f32.mxu0 0.0
      %587 = vmatmul.mubr.f32.gmra.mrb[0].mxu0 %v387
      %v588 = vpop.f32.mrb[0].mxu0
      %v589 = vadd.f32 %v323, %v588
      %v590 = vpop.f32.mrb[0].mxu0
      %591 = vmatprep.mubr.f32.mxu0 0.0
      %592 = vmatmul.mubr.f32.gmra.mrb[0].mxu0 %v390
      %v593 = vpop.f32.mrb[0].mxu0
      %v594 = vadd.f32 %v323, %v593
      %v595 = vpop.f32.mrb[0].mxu0
      %596 = vmatprep.mubr.f32.mxu0 0.0
      %597 = vmatmul.mubr.f32.gmra.mrb[0].mxu0 %v393
      %v598 = vpop.f32.mrb[0].mxu0
      %v599 = vadd.f32 %v323, %v598
      %v600 = vpop.f32.mrb[0].mxu0
      %601 = vmatprep.mubr.f32.mxu0 0.0
      %602 = vmatmul.mubr.f32.gmra.mrb[0].mxu0 %v396
      %v603 = vpop.f32.mrb[0].mxu0
      %v604 = vadd.f32 %v323, %v603
      %v605 = vpop.f32.mrb[0].mxu0
      %606 = vmatprep.mubr.f32.mxu0 0.0
      %607 = vmatmul.mubr.f32.gmra.mrb[0].mxu0 %v399
      %v608 = vpop.f32.mrb[0].mxu0
      %v609 = vadd.f32 %v323, %v608
      %v610 = vpop.f32.mrb[0].mxu0
      %611 = vmatprep.mubr.f32.mxu0 0.0
      %612 = vmatmul.mubr.f32.gmra.mrb[0].mxu0 %v402
      %v613 = vpop.f32.mrb[0].mxu0
      %v614 = vadd.f32 %v323, %v613
      %v615 = vpop.f32.mrb[0].mxu0
      %616 = vmatprep.mubr.f32.mxu0 0.0
      %617 = vmatmul.mubr.f32.gmra.mrb[0].mxu0 %v405
      %v618 = vpop.f32.mrb[0].mxu0
      %v619 = vadd.f32 %v323, %v618
      %v620 = vpop.f32.mrb[0].mxu0
      %621 = vmatprep.mubr.f32.mxu0 0.0
      %622 = vmatmul.mubr.f32.gmra.mrb[0].mxu0 %v408
      %v623 = vpop.f32.mrb[0].mxu0
      %v624 = vadd.f32 %v323, %v623
      %v625 = vpop.f32.mrb[0].mxu0
      %626 = vmatprep.mubr.f32.mxu0 0.0
      %627 = vmatmul.mubr.f32.gmra.mrb[0].mxu0 %v411
      %v628 = vpop.f32.mrb[0].mxu0
      %v629 = vadd.f32 %v323, %v628
      %v630 = vpop.f32.mrb[0].mxu0
      %631 = vmatprep.mubr.f32.mxu0 0.0
      %632 = vmatmul.mubr.f32.gmra.mrb[0].mxu0 %v414
      %v633 = vpop.f32.mrb[0].mxu0
      %v634 = vadd.f32 %v323, %v633
      %v635 = vpop.f32.mrb[0].mxu0
      %636 = vmatprep.mubr.f32.mxu0 0.0
      %637 = vmatmul.mubr.f32.gmra.mrb[0].mxu0 %v417
      %v638 = vpop.f32.mrb[0].mxu0
      %v639 = vadd.f32 %v323, %v638
      %v640 = vpop.f32.mrb[0].mxu0
      %641 = vmatprep.mubr.f32.mxu0 0.0
      %642 = vmatmul.mubr.f32.gmra.mrb[0].mxu0 %v420
      %v643 = vpop.f32.mrb[0].mxu0
      %v644 = vadd.f32 %v323, %v643
      %v645 = vpop.f32.mrb[0].mxu0
      %646 = vdwg.mxu0
      %v647 = vmax.f32 %v489, 0.0
      %v648 = vmax.f32 %v494, 0.0
      %v649 = vmax.f32 %v499, 0.0
      %v650 = vmax.f32 %v504, 0.0
      %v651 = vmax.f32 %v509, 0.0
      %v652 = vmax.f32 %v514, 0.0
      %v653 = vmax.f32 %v519, 0.0
      %v654 = vmax.f32 %v524, 0.0
      %v655 = vmax.f32 %v529, 0.0
      %v656 = vmax.f32 %v534, 0.0
      %v657 = vmax.f32 %v539, 0.0
      %v658 = vmax.f32 %v544, 0.0
      %v659 = vmax.f32 %v549, 0.0
      %v660 = vmax.f32 %v554, 0.0
      %v661 = vmax.f32 %v559, 0.0
      %v662 = vmax.f32 %v564, 0.0
      %v663 = vmax.f32 %v569, 0.0
      %v664 = vmax.f32 %v574, 0.0
      %v665 = vmax.f32 %v579, 0.0
      %v666 = vmax.f32 %v584, 0.0
      %v667 = vmax.f32 %v589, 0.0
      %v668 = vmax.f32 %v594, 0.0
      %v669 = vmax.f32 %v599, 0.0
      %v670 = vmax.f32 %v604, 0.0
      %v671 = vmax.f32 %v609, 0.0
      %v672 = vmax.f32 %v614, 0.0
      %v673 = vmax.f32 %v619, 0.0
      %v674 = vmax.f32 %v624, 0.0
      %v675 = vmax.f32 %v629, 0.0
      %v676 = vmax.f32 %v634, 0.0
      %v677 = vmax.f32 %v639, 0.0
      %v678 = vmax.f32 %v644, 0.0
      %v679 = vld [vmem:[%s3] sm:$0xff]
      %v680 = vld [vmem:[%s3 + $0x8] sm:$0xff]
      %v681 = vld [vmem:[%s3 + $0x10] sm:$0xff]
      %v682 = vld [vmem:[%s3 + $0x18] sm:$0xff]
      %v683 = vld [vmem:[%s3 + $0x20] sm:$0xff]
      %v684 = vld [vmem:[%s3 + $0x28] sm:$0xff]
      %v685 = vld [vmem:[%s3 + $0x30] sm:$0xff]
      %v686 = vld [vmem:[%s3 + $0x38] sm:$0xff]
      %v687 = vld [vmem:[%s4] sm:$0x1]
      %v689 = vlaneseq
      %v690 = vshrl.u32 %v689, 7
      %v691 = vsub.s32 0, %v690
      %v692 = vrot.slane %v687, %v691
      %vm694 = vcmask 523264
      %v696 = vsel %vm694, %v647, 0
      %v699 = vsel %vm694, %v648, 0
      %v702 = vsel %vm694, %v649, 0
      %v705 = vsel %vm694, %v650, 0
      %v708 = vsel %vm694, %v651, 0
      %v711 = vsel %vm694, %v652, 0
      %v714 = vsel %vm694, %v653, 0
      %v717 = vsel %vm694, %v654, 0
      %v720 = vsel %vm694, %v655, 0
      %v723 = vsel %vm694, %v656, 0
      %v726 = vsel %vm694, %v657, 0
      %v729 = vsel %vm694, %v658, 0
      %v732 = vsel %vm694, %v659, 0
      %v735 = vsel %vm694, %v660, 0
      %v738 = vsel %vm694, %v661, 0
      %v741 = vsel %vm694, %v662, 0
      %v744 = vsel %vm694, %v663, 0
      %v747 = vsel %vm694, %v664, 0
      %v750 = vsel %vm694, %v665, 0
      %v753 = vsel %vm694, %v666, 0
      %v756 = vsel %vm694, %v667, 0
      %v759 = vsel %vm694, %v668, 0
      %v762 = vsel %vm694, %v669, 0
      %v765 = vsel %vm694, %v670, 0
      %v768 = vsel %vm694, %v671, 0
      %v771 = vsel %vm694, %v672, 0
      %v774 = vsel %vm694, %v673, 0
      %v777 = vsel %vm694, %v674, 0
      %v780 = vsel %vm694, %v675, 0
      %v783 = vsel %vm694, %v676, 0
      %v786 = vsel %vm694, %v677, 0
      %v789 = vsel %vm694, %v678, 0
      %791 = vmatprep.subr.mxu0 0.0
      %792 = vmatpush1.msra.mxu0 %v679
      %793 = vmatprep.subr.mxu0 0.0
      %794 = vmatpush1.msra.mxu0 %v680
      %795 = vmatprep.subr.mxu0 0.0
      %796 = vmatpush1.msra.mxu0 %v681
      %797 = vmatprep.subr.mxu0 0.0
      %798 = vmatpush1.msra.mxu0 %v682
      %799 = vmatprep.subr.mxu0 0.0
      %800 = vmatpush1.msra.mxu0 %v683
      %801 = vmatprep.subr.mxu0 0.0
      %802 = vmatpush1.msra.mxu0 %v684
      %803 = vmatprep.subr.mxu0 0.0
      %804 = vmatpush1.msra.mxu0 %v685
      %805 = vmatprep.subr.mxu0 0.0
      %806 = vmatpush1.msra.mxu0 %v686
      %807 = vmatprep.subr.mxu0 0.0
      %808 = vmatpush1.msra.mxu0 0.0
      %809 = vmatprep.subr.mxu0 0.0
      %810 = vmatpush1.msra.mxu0 0.0
      %811 = vmatprep.subr.mxu0 0.0
      %812 = vmatpush1.msra.mxu0 0.0
      %813 = vmatprep.subr.mxu0 0.0
      %814 = vmatpush1.msra.mxu0 0.0
      %815 = vmatprep.subr.mxu0 0.0
      %816 = vmatpush1.msra.mxu0 0.0
      %817 = vmatprep.subr.mxu0 0.0
      %818 = vmatpush1.msra.mxu0 0.0
      %819 = vmatprep.subr.mxu0 0.0
      %820 = vmatpush1.msra.mxu0 0.0
      %821 = vmatprep.subr.mxu0 0.0
      %822 = vmatpush1.msra.mxu0 0.0
      %823 = vmatprep.subr.mxu0 0.0
      %824 = vmatpush1.msra.mxu0 0.0
      %825 = vmatprep.subr.mxu0 0.0
      %826 = vmatpush1.msra.mxu0 0.0
      %827 = vmatprep.subr.mxu0 0.0
      %828 = vmatpush1.msra.mxu0 0.0
      %829 = vmatprep.subr.mxu0 0.0
      %830 = vmatpush1.msra.mxu0 0.0
      %831 = vmatprep.subr.mxu0 0.0
      %832 = vmatpush1.msra.mxu0 0.0
      %833 = vmatprep.subr.mxu0 0.0
      %834 = vmatpush1.msra.mxu0 0.0
      %835 = vmatprep.subr.mxu0 0.0
      %836 = vmatpush1.msra.mxu0 0.0
      %837 = vmatprep.subr.mxu0 0.0
      %838 = vmatpush1.msra.mxu0 0.0
      %839 = vmatprep.subr.mxu0 0.0
      %840 = vmatpush1.msra.mxu0 0.0
      %841 = vmatprep.subr.mxu0 0.0
      %842 = vmatpush1.msra.mxu0 0.0
      %843 = vmatprep.subr.mxu0 0.0
      %844 = vmatpush1.msra.mxu0 0.0
      %845 = vmatprep.subr.mxu0 0.0
      %846 = vmatpush1.msra.mxu0 0.0
      %847 = vmatprep.subr.mxu0 0.0
      %848 = vmatpush1.msra.mxu0 0.0
      %849 = vmatprep.subr.mxu0 0.0
      %850 = vmatpush1.msra.mxu0 0.0
      %851 = vmatprep.subr.mxu0 0.0
      %852 = vmatpush1.msra.mxu0 0.0
      %853 = vmatprep.subr.mxu0 0.0
      %854 = vmatpush1.msra.mxu0 0.0
      %855 = vmatprep.mubr.f32.mxu0 0.0
      %856 = vmatmul.mubr.f32.gmra.mrb[0].mxu0 %v696
      %v857 = vpop.f32.mrb[0].mxu0
      %v858 = vadd.f32 %v692, %v857
      %v859 = vpop.f32.mrb[0].mxu0
      %860 = vmatprep.mubr.f32.mxu0 0.0
      %861 = vmatmul.mubr.f32.gmra.mrb[0].mxu0 %v699
      %v862 = vpop.f32.mrb[0].mxu0
      %v863 = vadd.f32 %v692, %v862
      %v864 = vpop.f32.mrb[0].mxu0
      %865 = vmatprep.mubr.f32.mxu0 0.0
      %866 = vmatmul.mubr.f32.gmra.mrb[0].mxu0 %v702
      %v867 = vpop.f32.mrb[0].mxu0
      %v868 = vadd.f32 %v692, %v867
      %v869 = vpop.f32.mrb[0].mxu0
      %870 = vmatprep.mubr.f32.mxu0 0.0
      %871 = vmatmul.mubr.f32.gmra.mrb[0].mxu0 %v705
      %v872 = vpop.f32.mrb[0].mxu0
      %v873 = vadd.f32 %v692, %v872
      %v874 = vpop.f32.mrb[0].mxu0
      %875 = vmatprep.mubr.f32.mxu0 0.0
      %876 = vmatmul.mubr.f32.gmra.mrb[0].mxu0 %v708
      %v877 = vpop.f32.mrb[0].mxu0
      %v878 = vadd.f32 %v692, %v877
      %v879 = vpop.f32.mrb[0].mxu0
      %880 = vmatprep.mubr.f32.mxu0 0.0
      %881 = vmatmul.mubr.f32.gmra.mrb[0].mxu0 %v711
      %v882 = vpop.f32.mrb[0].mxu0
      %v883 = vadd.f32 %v692, %v882
      %v884 = vpop.f32.mrb[0].mxu0
      %885 = vmatprep.mubr.f32.mxu0 0.0
      %886 = vmatmul.mubr.f32.gmra.mrb[0].mxu0 %v714
      %v887 = vpop.f32.mrb[0].mxu0
      %v888 = vadd.f32 %v692, %v887
      %v889 = vpop.f32.mrb[0].mxu0
      %890 = vmatprep.mubr.f32.mxu0 0.0
      %891 = vmatmul.mubr.f32.gmra.mrb[0].mxu0 %v717
      %v892 = vpop.f32.mrb[0].mxu0
      %v893 = vadd.f32 %v692, %v892
      %v894 = vpop.f32.mrb[0].mxu0
      %895 = vmatprep.mubr.f32.mxu0 0.0
      %896 = vmatmul.mubr.f32.gmra.mrb[0].mxu0 %v720
      %v897 = vpop.f32.mrb[0].mxu0
      %v898 = vadd.f32 %v692, %v897
      %v899 = vpop.f32.mrb[0].mxu0
      %900 = vmatprep.mubr.f32.mxu0 0.0
      %901 = vmatmul.mubr.f32.gmra.mrb[0].mxu0 %v723
      %v902 = vpop.f32.mrb[0].mxu0
      %v903 = vadd.f32 %v692, %v902
      %v904 = vpop.f32.mrb[0].mxu0
      %905 = vmatprep.mubr.f32.mxu0 0.0
      %906 = vmatmul.mubr.f32.gmra.mrb[0].mxu0 %v726
      %v907 = vpop.f32.mrb[0].mxu0
      %v908 = vadd.f32 %v692, %v907
      %v909 = vpop.f32.mrb[0].mxu0
      %910 = vmatprep.mubr.f32.mxu0 0.0
      %911 = vmatmul.mubr.f32.gmra.mrb[0].mxu0 %v729
      %v912 = vpop.f32.mrb[0].mxu0
      %v913 = vadd.f32 %v692, %v912
      %v914 = vpop.f32.mrb[0].mxu0
      %915 = vmatprep.mubr.f32.mxu0 0.0
      %916 = vmatmul.mubr.f32.gmra.mrb[0].mxu0 %v732
      %v917 = vpop.f32.mrb[0].mxu0
      %v918 = vadd.f32 %v692, %v917
      %v919 = vpop.f32.mrb[0].mxu0
      %920 = vmatprep.mubr.f32.mxu0 0.0
      %921 = vmatmul.mubr.f32.gmra.mrb[0].mxu0 %v735
      %v922 = vpop.f32.mrb[0].mxu0
      %v923 = vadd.f32 %v692, %v922
      %v924 = vpop.f32.mrb[0].mxu0
      %925 = vmatprep.mubr.f32.mxu0 0.0
      %926 = vmatmul.mubr.f32.gmra.mrb[0].mxu0 %v738
      %v927 = vpop.f32.mrb[0].mxu0
      %v928 = vadd.f32 %v692, %v927
      %v929 = vpop.f32.mrb[0].mxu0
      %930 = vmatprep.mubr.f32.mxu0 0.0
      %931 = vmatmul.mubr.f32.gmra.mrb[0].mxu0 %v741
      %v932 = vpop.f32.mrb[0].mxu0
      %v933 = vadd.f32 %v692, %v932
      %v934 = vpop.f32.mrb[0].mxu0
      %935 = vmatprep.mubr.f32.mxu0 0.0
      %936 = vmatmul.mubr.f32.gmra.mrb[0].mxu0 %v744
      %v937 = vpop.f32.mrb[0].mxu0
      %v938 = vadd.f32 %v692, %v937
      %v939 = vpop.f32.mrb[0].mxu0
      %940 = vmatprep.mubr.f32.mxu0 0.0
      %941 = vmatmul.mubr.f32.gmra.mrb[0].mxu0 %v747
      %v942 = vpop.f32.mrb[0].mxu0
      %v943 = vadd.f32 %v692, %v942
      %v944 = vpop.f32.mrb[0].mxu0
      %945 = vmatprep.mubr.f32.mxu0 0.0
      %946 = vmatmul.mubr.f32.gmra.mrb[0].mxu0 %v750
      %v947 = vpop.f32.mrb[0].mxu0
      %v948 = vadd.f32 %v692, %v947
      %v949 = vpop.f32.mrb[0].mxu0
      %950 = vmatprep.mubr.f32.mxu0 0.0
      %951 = vmatmul.mubr.f32.gmra.mrb[0].mxu0 %v753
      %v952 = vpop.f32.mrb[0].mxu0
      %v953 = vadd.f32 %v692, %v952
      %v954 = vpop.f32.mrb[0].mxu0
      %955 = vmatprep.mubr.f32.mxu0 0.0
      %956 = vmatmul.mubr.f32.gmra.mrb[0].mxu0 %v756
      %v957 = vpop.f32.mrb[0].mxu0
      %v958 = vadd.f32 %v692, %v957
      %v959 = vpop.f32.mrb[0].mxu0
      %960 = vmatprep.mubr.f32.mxu0 0.0
      %961 = vmatmul.mubr.f32.gmra.mrb[0].mxu0 %v759
      %v962 = vpop.f32.mrb[0].mxu0
      %v963 = vadd.f32 %v692, %v962
      %v964 = vpop.f32.mrb[0].mxu0
      %965 = vmatprep.mubr.f32.mxu0 0.0
      %966 = vmatmul.mubr.f32.gmra.mrb[0].mxu0 %v762
      %v967 = vpop.f32.mrb[0].mxu0
      %v968 = vadd.f32 %v692, %v967
      %v969 = vpop.f32.mrb[0].mxu0
      %970 = vmatprep.mubr.f32.mxu0 0.0
      %971 = vmatmul.mubr.f32.gmra.mrb[0].mxu0 %v765
      %v972 = vpop.f32.mrb[0].mxu0
      %v973 = vadd.f32 %v692, %v972
      %v974 = vpop.f32.mrb[0].mxu0
      %975 = vmatprep.mubr.f32.mxu0 0.0
      %976 = vmatmul.mubr.f32.gmra.mrb[0].mxu0 %v768
      %v977 = vpop.f32.mrb[0].mxu0
      %v978 = vadd.f32 %v692, %v977
      %v979 = vpop.f32.mrb[0].mxu0
      %980 = vmatprep.mubr.f32.mxu0 0.0
      %981 = vmatmul.mubr.f32.gmra.mrb[0].mxu0 %v771
      %v982 = vpop.f32.mrb[0].mxu0
      %v983 = vadd.f32 %v692, %v982
      %v984 = vpop.f32.mrb[0].mxu0
      %985 = vmatprep.mubr.f32.mxu0 0.0
      %986 = vmatmul.mubr.f32.gmra.mrb[0].mxu0 %v774
      %v987 = vpop.f32.mrb[0].mxu0
      %v988 = vadd.f32 %v692, %v987
      %v989 = vpop.f32.mrb[0].mxu0
      %990 = vmatprep.mubr.f32.mxu0 0.0
      %991 = vmatmul.mubr.f32.gmra.mrb[0].mxu0 %v777
      %v992 = vpop.f32.mrb[0].mxu0
      %v993 = vadd.f32 %v692, %v992
      %v994 = vpop.f32.mrb[0].mxu0
      %995 = vmatprep.mubr.f32.mxu0 0.0
      %996 = vmatmul.mubr.f32.gmra.mrb[0].mxu0 %v780
      %v997 = vpop.f32.mrb[0].mxu0
      %v998 = vadd.f32 %v692, %v997
      %v999 = vpop.f32.mrb[0].mxu0
      %1000 = vmatprep.mubr.f32.mxu0 0.0
      %1001 = vmatmul.mubr.f32.gmra.mrb[0].mxu0 %v783
      %v1002 = vpop.f32.mrb[0].mxu0
      %v1003 = vadd.f32 %v692, %v1002
      %v1004 = vpop.f32.mrb[0].mxu0
      %1005 = vmatprep.mubr.f32.mxu0 0.0
      %1006 = vmatmul.mubr.f32.gmra.mrb[0].mxu0 %v786
      %v1007 = vpop.f32.mrb[0].mxu0
      %v1008 = vadd.f32 %v692, %v1007
      %v1009 = vpop.f32.mrb[0].mxu0
      %1010 = vmatprep.mubr.f32.mxu0 0.0
      %1011 = vmatmul.mubr.f32.gmra.mrb[0].mxu0 %v789
      %v1012 = vpop.f32.mrb[0].mxu0
      %v1013 = vadd.f32 %v692, %v1012
      %v1014 = vpop.f32.mrb[0].mxu0
      %1015 = vdwg.mxu0
      %v1016 = vmax.f32 %v858, 0.0
      %v1017 = vmax.f32 %v863, 0.0
      %v1018 = vmax.f32 %v868, 0.0
      %v1019 = vmax.f32 %v873, 0.0
      %v1020 = vmax.f32 %v878, 0.0
      %v1021 = vmax.f32 %v883, 0.0
      %v1022 = vmax.f32 %v888, 0.0
      %v1023 = vmax.f32 %v893, 0.0
      %v1024 = vmax.f32 %v898, 0.0
      %v1025 = vmax.f32 %v903, 0.0
      %v1026 = vmax.f32 %v908, 0.0
      %v1027 = vmax.f32 %v913, 0.0
      %v1028 = vmax.f32 %v918, 0.0
      %v1029 = vmax.f32 %v923, 0.0
      %v1030 = vmax.f32 %v928, 0.0
      %v1031 = vmax.f32 %v933, 0.0
      %v1032 = vmax.f32 %v938, 0.0
      %v1033 = vmax.f32 %v943, 0.0
      %v1034 = vmax.f32 %v948, 0.0
      %v1035 = vmax.f32 %v953, 0.0
      %v1036 = vmax.f32 %v958, 0.0
      %v1037 = vmax.f32 %v963, 0.0
      %v1038 = vmax.f32 %v968, 0.0
      %v1039 = vmax.f32 %v973, 0.0
      %v1040 = vmax.f32 %v978, 0.0
      %v1041 = vmax.f32 %v983, 0.0
      %v1042 = vmax.f32 %v988, 0.0
      %v1043 = vmax.f32 %v993, 0.0
      %v1044 = vmax.f32 %v998, 0.0
      %v1045 = vmax.f32 %v1003, 0.0
      %v1046 = vmax.f32 %v1008, 0.0
      %v1047 = vmax.f32 %v1013, 0.0
      %v1048 = vld [vmem:[%s5] sm:$0xff]
      %v1049 = vld [vmem:[%s5 + $0x8] sm:$0xff]
      %v1050 = vld [vmem:[%s5 + $0x10] sm:$0xff]
      %v1051 = vld [vmem:[%s5 + $0x18] sm:$0xff]
      %v1052 = vld [vmem:[%s5 + $0x20] sm:$0xff]
      %v1053 = vld [vmem:[%s5 + $0x28] sm:$0xff]
      %v1054 = vld [vmem:[%s5 + $0x30] sm:$0xff]
      %v1055 = vld [vmem:[%s5 + $0x38] sm:$0xff]
      %v1056 = vld [vmem:[%s6] sm:$0x1]
      %v1058 = vlaneseq
      %v1059 = vshrl.u32 %v1058, 7
      %v1060 = vsub.s32 0, %v1059
      %v1061 = vrot.slane %v1056, %v1060
      %v1064 = vsel %vm694, %v1016, 0
      %v1067 = vsel %vm694, %v1017, 0
      %v1070 = vsel %vm694, %v1018, 0
      %v1073 = vsel %vm694, %v1019, 0
      %v1076 = vsel %vm694, %v1020, 0
      %v1079 = vsel %vm694, %v1021, 0
      %v1082 = vsel %vm694, %v1022, 0
      %v1085 = vsel %vm694, %v1023, 0
      %v1088 = vsel %vm694, %v1024, 0
      %v1091 = vsel %vm694, %v1025, 0
      %v1094 = vsel %vm694, %v1026, 0
      %v1097 = vsel %vm694, %v1027, 0
      %v1100 = vsel %vm694, %v1028, 0
      %v1103 = vsel %vm694, %v1029, 0
      %v1106 = vsel %vm694, %v1030, 0
      %v1109 = vsel %vm694, %v1031, 0
      %v1112 = vsel %vm694, %v1032, 0
      %v1115 = vsel %vm694, %v1033, 0
      %v1118 = vsel %vm694, %v1034, 0
      %v1121 = vsel %vm694, %v1035, 0
      %v1124 = vsel %vm694, %v1036, 0
      %v1127 = vsel %vm694, %v1037, 0
      %v1130 = vsel %vm694, %v1038, 0
      %v1133 = vsel %vm694, %v1039, 0
      %v1136 = vsel %vm694, %v1040, 0
      %v1139 = vsel %vm694, %v1041, 0
      %v1142 = vsel %vm694, %v1042, 0
      %v1145 = vsel %vm694, %v1043, 0
      %v1148 = vsel %vm694, %v1044, 0
      %v1151 = vsel %vm694, %v1045, 0
      %v1154 = vsel %vm694, %v1046, 0
      %v1157 = vsel %vm694, %v1047, 0
      %1159 = vmatprep.subr.mxu0 0.0
      %1160 = vmatpush1.msra.mxu0 %v1048
      %1161 = vmatprep.subr.mxu0 0.0
      %1162 = vmatpush1.msra.mxu0 %v1049
      %1163 = vmatprep.subr.mxu0 0.0
      %1164 = vmatpush1.msra.mxu0 %v1050
      %1165 = vmatprep.subr.mxu0 0.0
      %1166 = vmatpush1.msra.mxu0 %v1051
      %1167 = vmatprep.subr.mxu0 0.0
      %1168 = vmatpush1.msra.mxu0 %v1052
      %1169 = vmatprep.subr.mxu0 0.0
      %1170 = vmatpush1.msra.mxu0 %v1053
      %1171 = vmatprep.subr.mxu0 0.0
      %1172 = vmatpush1.msra.mxu0 %v1054
      %1173 = vmatprep.subr.mxu0 0.0
      %1174 = vmatpush1.msra.mxu0 %v1055
      %1175 = vmatprep.subr.mxu0 0.0
      %1176 = vmatpush1.msra.mxu0 0.0
      %1177 = vmatprep.subr.mxu0 0.0
      %1178 = vmatpush1.msra.mxu0 0.0
      %1179 = vmatprep.subr.mxu0 0.0
      %1180 = vmatpush1.msra.mxu0 0.0
      %1181 = vmatprep.subr.mxu0 0.0
      %1182 = vmatpush1.msra.mxu0 0.0
      %1183 = vmatprep.subr.mxu0 0.0
      %1184 = vmatpush1.msra.mxu0 0.0
      %1185 = vmatprep.subr.mxu0 0.0
      %1186 = vmatpush1.msra.mxu0 0.0
      %1187 = vmatprep.subr.mxu0 0.0
      %1188 = vmatpush1.msra.mxu0 0.0
      %1189 = vmatprep.subr.mxu0 0.0
      %1190 = vmatpush1.msra.mxu0 0.0
      %1191 = vmatprep.subr.mxu0 0.0
      %1192 = vmatpush1.msra.mxu0 0.0
      %1193 = vmatprep.subr.mxu0 0.0
      %1194 = vmatpush1.msra.mxu0 0.0
      %1195 = vmatprep.subr.mxu0 0.0
      %1196 = vmatpush1.msra.mxu0 0.0
      %1197 = vmatprep.subr.mxu0 0.0
      %1198 = vmatpush1.msra.mxu0 0.0
      %1199 = vmatprep.subr.mxu0 0.0
      %1200 = vmatpush1.msra.mxu0 0.0
      %1201 = vmatprep.subr.mxu0 0.0
      %1202 = vmatpush1.msra.mxu0 0.0
      %1203 = vmatprep.subr.mxu0 0.0
      %1204 = vmatpush1.msra.mxu0 0.0
      %1205 = vmatprep.subr.mxu0 0.0
      %1206 = vmatpush1.msra.mxu0 0.0
      %1207 = vmatprep.subr.mxu0 0.0
      %1208 = vmatpush1.msra.mxu0 0.0
      %1209 = vmatprep.subr.mxu0 0.0
      %1210 = vmatpush1.msra.mxu0 0.0
      %1211 = vmatprep.subr.mxu0 0.0
      %1212 = vmatpush1.msra.mxu0 0.0
      %1213 = vmatprep.subr.mxu0 0.0
      %1214 = vmatpush1.msra.mxu0 0.0
      %1215 = vmatprep.subr.mxu0 0.0
      %1216 = vmatpush1.msra.mxu0 0.0
      %1217 = vmatprep.subr.mxu0 0.0
      %1218 = vmatpush1.msra.mxu0 0.0
      %1219 = vmatprep.subr.mxu0 0.0
      %1220 = vmatpush1.msra.mxu0 0.0
      %1221 = vmatprep.subr.mxu0 0.0
      %1222 = vmatpush1.msra.mxu0 0.0
      %1223 = vmatprep.mubr.f32.mxu0 0.0
      %1224 = vmatmul.mubr.f32.gmra.mrb[0].mxu0 %v1064
      %v1225 = vpop.f32.mrb[0].mxu0
      %v1226 = vadd.f32 %v1061, %v1225
      %v1227 = vpop.f32.mrb[0].mxu0
      %1228 = vmatprep.mubr.f32.mxu0 0.0
      %1229 = vmatmul.mubr.f32.gmra.mrb[0].mxu0 %v1067
      %v1230 = vpop.f32.mrb[0].mxu0
      %v1231 = vadd.f32 %v1061, %v1230
      %v1232 = vpop.f32.mrb[0].mxu0
      %1233 = vmatprep.mubr.f32.mxu0 0.0
      %1234 = vmatmul.mubr.f32.gmra.mrb[0].mxu0 %v1070
      %v1235 = vpop.f32.mrb[0].mxu0
      %v1236 = vadd.f32 %v1061, %v1235
      %v1237 = vpop.f32.mrb[0].mxu0
      %1238 = vmatprep.mubr.f32.mxu0 0.0
      %1239 = vmatmul.mubr.f32.gmra.mrb[0].mxu0 %v1073
      %v1240 = vpop.f32.mrb[0].mxu0
      %v1241 = vadd.f32 %v1061, %v1240
      %v1242 = vpop.f32.mrb[0].mxu0
      %1243 = vmatprep.mubr.f32.mxu0 0.0
      %1244 = vmatmul.mubr.f32.gmra.mrb[0].mxu0 %v1076
      %v1245 = vpop.f32.mrb[0].mxu0
      %v1246 = vadd.f32 %v1061, %v1245
      %v1247 = vpop.f32.mrb[0].mxu0
      %1248 = vmatprep.mubr.f32.mxu0 0.0
      %1249 = vmatmul.mubr.f32.gmra.mrb[0].mxu0 %v1079
      %v1250 = vpop.f32.mrb[0].mxu0
      %v1251 = vadd.f32 %v1061, %v1250
      %v1252 = vpop.f32.mrb[0].mxu0
      %1253 = vmatprep.mubr.f32.mxu0 0.0
      %1254 = vmatmul.mubr.f32.gmra.mrb[0].mxu0 %v1082
      %v1255 = vpop.f32.mrb[0].mxu0
      %v1256 = vadd.f32 %v1061, %v1255
      %v1257 = vpop.f32.mrb[0].mxu0
      %1258 = vmatprep.mubr.f32.mxu0 0.0
      %1259 = vmatmul.mubr.f32.gmra.mrb[0].mxu0 %v1085
      %v1260 = vpop.f32.mrb[0].mxu0
      %v1261 = vadd.f32 %v1061, %v1260
      %v1262 = vpop.f32.mrb[0].mxu0
      %1263 = vmatprep.mubr.f32.mxu0 0.0
      %1264 = vmatmul.mubr.f32.gmra.mrb[0].mxu0 %v1088
      %v1265 = vpop.f32.mrb[0].mxu0
      %v1266 = vadd.f32 %v1061, %v1265
      %v1267 = vpop.f32.mrb[0].mxu0
      %1268 = vmatprep.mubr.f32.mxu0 0.0
      %1269 = vmatmul.mubr.f32.gmra.mrb[0].mxu0 %v1091
      %v1270 = vpop.f32.mrb[0].mxu0
      %v1271 = vadd.f32 %v1061, %v1270
      %v1272 = vpop.f32.mrb[0].mxu0
      %1273 = vmatprep.mubr.f32.mxu0 0.0
      %1274 = vmatmul.mubr.f32.gmra.mrb[0].mxu0 %v1094
      %v1275 = vpop.f32.mrb[0].mxu0
      %v1276 = vadd.f32 %v1061, %v1275
      %v1277 = vpop.f32.mrb[0].mxu0
      %1278 = vmatprep.mubr.f32.mxu0 0.0
      %1279 = vmatmul.mubr.f32.gmra.mrb[0].mxu0 %v1097
      %v1280 = vpop.f32.mrb[0].mxu0
      %v1281 = vadd.f32 %v1061, %v1280
      %v1282 = vpop.f32.mrb[0].mxu0
      %1283 = vmatprep.mubr.f32.mxu0 0.0
      %1284 = vmatmul.mubr.f32.gmra.mrb[0].mxu0 %v1100
      %v1285 = vpop.f32.mrb[0].mxu0
      %v1286 = vadd.f32 %v1061, %v1285
      %v1287 = vpop.f32.mrb[0].mxu0
      %1288 = vmatprep.mubr.f32.mxu0 0.0
      %1289 = vmatmul.mubr.f32.gmra.mrb[0].mxu0 %v1103
      %v1290 = vpop.f32.mrb[0].mxu0
      %v1291 = vadd.f32 %v1061, %v1290
      %v1292 = vpop.f32.mrb[0].mxu0
      %1293 = vmatprep.mubr.f32.mxu0 0.0
      %1294 = vmatmul.mubr.f32.gmra.mrb[0].mxu0 %v1106
      %v1295 = vpop.f32.mrb[0].mxu0
      %v1296 = vadd.f32 %v1061, %v1295
      %v1297 = vpop.f32.mrb[0].mxu0
      %1298 = vmatprep.mubr.f32.mxu0 0.0
      %1299 = vmatmul.mubr.f32.gmra.mrb[0].mxu0 %v1109
      %v1300 = vpop.f32.mrb[0].mxu0
      %v1301 = vadd.f32 %v1061, %v1300
      %v1302 = vpop.f32.mrb[0].mxu0
      %1303 = vmatprep.mubr.f32.mxu0 0.0
      %1304 = vmatmul.mubr.f32.gmra.mrb[0].mxu0 %v1112
      %v1305 = vpop.f32.mrb[0].mxu0
      %v1306 = vadd.f32 %v1061, %v1305
      %v1307 = vpop.f32.mrb[0].mxu0
      %1308 = vmatprep.mubr.f32.mxu0 0.0
      %1309 = vmatmul.mubr.f32.gmra.mrb[0].mxu0 %v1115
      %v1310 = vpop.f32.mrb[0].mxu0
      %v1311 = vadd.f32 %v1061, %v1310
      %v1312 = vpop.f32.mrb[0].mxu0
      %1313 = vmatprep.mubr.f32.mxu0 0.0
      %1314 = vmatmul.mubr.f32.gmra.mrb[0].mxu0 %v1118
      %v1315 = vpop.f32.mrb[0].mxu0
      %v1316 = vadd.f32 %v1061, %v1315
      %v1317 = vpop.f32.mrb[0].mxu0
      %1318 = vmatprep.mubr.f32.mxu0 0.0
      %1319 = vmatmul.mubr.f32.gmra.mrb[0].mxu0 %v1121
      %v1320 = vpop.f32.mrb[0].mxu0
      %v1321 = vadd.f32 %v1061, %v1320
      %v1322 = vpop.f32.mrb[0].mxu0
      %1323 = vmatprep.mubr.f32.mxu0 0.0
      %1324 = vmatmul.mubr.f32.gmra.mrb[0].mxu0 %v1124
      %v1325 = vpop.f32.mrb[0].mxu0
      %v1326 = vadd.f32 %v1061, %v1325
      %v1327 = vpop.f32.mrb[0].mxu0
      %1328 = vmatprep.mubr.f32.mxu0 0.0
      %1329 = vmatmul.mubr.f32.gmra.mrb[0].mxu0 %v1127
      %v1330 = vpop.f32.mrb[0].mxu0
      %v1331 = vadd.f32 %v1061, %v1330
      %v1332 = vpop.f32.mrb[0].mxu0
      %1333 = vmatprep.mubr.f32.mxu0 0.0
      %1334 = vmatmul.mubr.f32.gmra.mrb[0].mxu0 %v1130
      %v1335 = vpop.f32.mrb[0].mxu0
      %v1336 = vadd.f32 %v1061, %v1335
      %v1337 = vpop.f32.mrb[0].mxu0
      %1338 = vmatprep.mubr.f32.mxu0 0.0
      %1339 = vmatmul.mubr.f32.gmra.mrb[0].mxu0 %v1133
      %v1340 = vpop.f32.mrb[0].mxu0
      %v1341 = vadd.f32 %v1061, %v1340
      %v1342 = vpop.f32.mrb[0].mxu0
      %1343 = vmatprep.mubr.f32.mxu0 0.0
      %1344 = vmatmul.mubr.f32.gmra.mrb[0].mxu0 %v1136
      %v1345 = vpop.f32.mrb[0].mxu0
      %v1346 = vadd.f32 %v1061, %v1345
      %v1347 = vpop.f32.mrb[0].mxu0
      %1348 = vmatprep.mubr.f32.mxu0 0.0
      %1349 = vmatmul.mubr.f32.gmra.mrb[0].mxu0 %v1139
      %v1350 = vpop.f32.mrb[0].mxu0
      %v1351 = vadd.f32 %v1061, %v1350
      %v1352 = vpop.f32.mrb[0].mxu0
      %1353 = vmatprep.mubr.f32.mxu0 0.0
      %1354 = vmatmul.mubr.f32.gmra.mrb[0].mxu0 %v1142
      %v1355 = vpop.f32.mrb[0].mxu0
      %v1356 = vadd.f32 %v1061, %v1355
      %v1357 = vpop.f32.mrb[0].mxu0
      %1358 = vmatprep.mubr.f32.mxu0 0.0
      %1359 = vmatmul.mubr.f32.gmra.mrb[0].mxu0 %v1145
      %v1360 = vpop.f32.mrb[0].mxu0
      %v1361 = vadd.f32 %v1061, %v1360
      %v1362 = vpop.f32.mrb[0].mxu0
      %1363 = vmatprep.mubr.f32.mxu0 0.0
      %1364 = vmatmul.mubr.f32.gmra.mrb[0].mxu0 %v1148
      %v1365 = vpop.f32.mrb[0].mxu0
      %v1366 = vadd.f32 %v1061, %v1365
      %v1367 = vpop.f32.mrb[0].mxu0
      %1368 = vmatprep.mubr.f32.mxu0 0.0
      %1369 = vmatmul.mubr.f32.gmra.mrb[0].mxu0 %v1151
      %v1370 = vpop.f32.mrb[0].mxu0
      %v1371 = vadd.f32 %v1061, %v1370
      %v1372 = vpop.f32.mrb[0].mxu0
      %1373 = vmatprep.mubr.f32.mxu0 0.0
      %1374 = vmatmul.mubr.f32.gmra.mrb[0].mxu0 %v1154
      %v1375 = vpop.f32.mrb[0].mxu0
      %v1376 = vadd.f32 %v1061, %v1375
      %v1377 = vpop.f32.mrb[0].mxu0
      %1378 = vmatprep.mubr.f32.mxu0 0.0
      %1379 = vmatmul.mubr.f32.gmra.mrb[0].mxu0 %v1157
      %v1380 = vpop.f32.mrb[0].mxu0
      %v1381 = vadd.f32 %v1061, %v1380
      %v1382 = vpop.f32.mrb[0].mxu0
      %1383 = vdwg.mxu0
      %v1384 = vxor.u32 %v1226, 2147483648
      %v1385 = vxor.u32 %v1231, 2147483648
      %v1386 = vxor.u32 %v1236, 2147483648
      %v1387 = vxor.u32 %v1241, 2147483648
      %v1388 = vxor.u32 %v1246, 2147483648
      %v1389 = vxor.u32 %v1251, 2147483648
      %v1390 = vxor.u32 %v1256, 2147483648
      %v1391 = vxor.u32 %v1261, 2147483648
      %v1392 = vxor.u32 %v1266, 2147483648
      %v1393 = vxor.u32 %v1271, 2147483648
      %v1394 = vxor.u32 %v1276, 2147483648
      %v1395 = vxor.u32 %v1281, 2147483648
      %v1396 = vxor.u32 %v1286, 2147483648
      %v1397 = vxor.u32 %v1291, 2147483648
      %v1398 = vxor.u32 %v1296, 2147483648
      %v1399 = vxor.u32 %v1301, 2147483648
      %v1400 = vxor.u32 %v1306, 2147483648
      %v1401 = vxor.u32 %v1311, 2147483648
      %v1402 = vxor.u32 %v1316, 2147483648
      %v1403 = vxor.u32 %v1321, 2147483648
      %v1404 = vxor.u32 %v1326, 2147483648
      %v1405 = vxor.u32 %v1331, 2147483648
      %v1406 = vxor.u32 %v1336, 2147483648
      %v1407 = vxor.u32 %v1341, 2147483648
      %v1408 = vxor.u32 %v1346, 2147483648
      %v1409 = vxor.u32 %v1351, 2147483648
      %v1410 = vxor.u32 %v1356, 2147483648
      %v1411 = vxor.u32 %v1361, 2147483648
      %v1412 = vxor.u32 %v1366, 2147483648
      %v1413 = vxor.u32 %v1371, 2147483648
      %v1414 = vxor.u32 %v1376, 2147483648
      %v1415 = vxor.u32 %v1381, 2147483648
      %v1416 = vmul.f32 %v1384, 1.442695
      %v1417 = vpow.pop %v1416
      %v1418 = vmul.f32 %v1385, 1.442695
      %v1419 = vpow.pop %v1418
      %v1420 = vmul.f32 %v1386, 1.442695
      %v1421 = vpow.pop %v1420
      %v1422 = vmul.f32 %v1387, 1.442695
      %v1423 = vpow.pop %v1422
      %v1424 = vmul.f32 %v1388, 1.442695
      %v1425 = vpow.pop %v1424
      %v1426 = vmul.f32 %v1389, 1.442695
      %v1427 = vpow.pop %v1426
      %v1428 = vmul.f32 %v1390, 1.442695
      %v1429 = vpow.pop %v1428
      %v1430 = vmul.f32 %v1391, 1.442695
      %v1431 = vpow.pop %v1430
      %v1432 = vmul.f32 %v1392, 1.442695
      %v1433 = vpow.pop %v1432
      %v1434 = vmul.f32 %v1393, 1.442695
      %v1435 = vpow.pop %v1434
      %v1436 = vmul.f32 %v1394, 1.442695
      %v1437 = vpow.pop %v1436
      %v1438 = vmul.f32 %v1395, 1.442695
      %v1439 = vpow.pop %v1438
      %v1440 = vmul.f32 %v1396, 1.442695
      %v1441 = vpow.pop %v1440
      %v1442 = vmul.f32 %v1397, 1.442695
      %v1443 = vpow.pop %v1442
      %v1444 = vmul.f32 %v1398, 1.442695
      %v1445 = vpow.pop %v1444
      %v1446 = vmul.f32 %v1399, 1.442695
      %v1447 = vpow.pop %v1446
      %v1448 = vmul.f32 %v1400, 1.442695
      %v1449 = vpow.pop %v1448
      %v1450 = vmul.f32 %v1401, 1.442695
      %v1451 = vpow.pop %v1450
      %v1452 = vmul.f32 %v1402, 1.442695
      %v1453 = vpow.pop %v1452
      %v1454 = vmul.f32 %v1403, 1.442695
      %v1455 = vpow.pop %v1454
      %v1456 = vmul.f32 %v1404, 1.442695
      %v1457 = vpow.pop %v1456
      %v1458 = vmul.f32 %v1405, 1.442695
      %v1459 = vpow.pop %v1458
      %v1460 = vmul.f32 %v1406, 1.442695
      %v1461 = vpow.pop %v1460
      %v1462 = vmul.f32 %v1407, 1.442695
      %v1463 = vpow.pop %v1462
      %v1464 = vmul.f32 %v1408, 1.442695
      %v1465 = vpow.pop %v1464
      %v1466 = vmul.f32 %v1409, 1.442695
      %v1467 = vpow.pop %v1466
      %v1468 = vmul.f32 %v1410, 1.442695
      %v1469 = vpow.pop %v1468
      %v1470 = vmul.f32 %v1411, 1.442695
      %v1471 = vpow.pop %v1470
      %v1472 = vmul.f32 %v1412, 1.442695
      %v1473 = vpow.pop %v1472
      %v1474 = vmul.f32 %v1413, 1.442695
      %v1475 = vpow.pop %v1474
      %v1476 = vmul.f32 %v1414, 1.442695
      %v1477 = vpow.pop %v1476
      %v1478 = vmul.f32 %v1415, 1.442695
      %v1479 = vpow.pop %v1478
      %v1480 = vadd.f32 %v1417, 1.0
      %v1481 = vadd.f32 %v1419, 1.0
      %v1482 = vadd.f32 %v1421, 1.0
      %v1483 = vadd.f32 %v1423, 1.0
      %v1484 = vadd.f32 %v1425, 1.0
      %v1485 = vadd.f32 %v1427, 1.0
      %v1486 = vadd.f32 %v1429, 1.0
      %v1487 = vadd.f32 %v1431, 1.0
      %v1488 = vadd.f32 %v1433, 1.0
      %v1489 = vadd.f32 %v1435, 1.0
      %v1490 = vadd.f32 %v1437, 1.0
      %v1491 = vadd.f32 %v1439, 1.0
      %v1492 = vadd.f32 %v1441, 1.0
      %v1493 = vadd.f32 %v1443, 1.0
      %v1494 = vadd.f32 %v1445, 1.0
      %v1495 = vadd.f32 %v1447, 1.0
      %v1496 = vadd.f32 %v1449, 1.0
      %v1497 = vadd.f32 %v1451, 1.0
      %v1498 = vadd.f32 %v1453, 1.0
      %v1499 = vadd.f32 %v1455, 1.0
      %v1500 = vadd.f32 %v1457, 1.0
      %v1501 = vadd.f32 %v1459, 1.0
      %v1502 = vadd.f32 %v1461, 1.0
      %v1503 = vadd.f32 %v1463, 1.0
      %v1504 = vadd.f32 %v1465, 1.0
      %v1505 = vadd.f32 %v1467, 1.0
      %v1506 = vadd.f32 %v1469, 1.0
      %v1507 = vadd.f32 %v1471, 1.0
      %v1508 = vadd.f32 %v1473, 1.0
      %v1509 = vadd.f32 %v1475, 1.0
      %v1510 = vadd.f32 %v1477, 1.0
      %v1511 = vadd.f32 %v1479, 1.0
      %v1512 = vrcp.pop %v1480
      %v1513 = vmul.f32 1.0, %v1512
      %v1514 = vrcp.pop %v1481
      %v1515 = vmul.f32 1.0, %v1514
      %v1516 = vrcp.pop %v1482
      %v1517 = vmul.f32 1.0, %v1516
      %v1518 = vrcp.pop %v1483
      %v1519 = vmul.f32 1.0, %v1518
      %v1520 = vrcp.pop %v1484
      %v1521 = vmul.f32 1.0, %v1520
      %v1522 = vrcp.pop %v1485
      %v1523 = vmul.f32 1.0, %v1522
      %v1524 = vrcp.pop %v1486
      %v1525 = vmul.f32 1.0, %v1524
      %v1526 = vrcp.pop %v1487
      %v1527 = vmul.f32 1.0, %v1526
      %v1528 = vrcp.pop %v1488
      %v1529 = vmul.f32 1.0, %v1528
      %v1530 = vrcp.pop %v1489
      %v1531 = vmul.f32 1.0, %v1530
      %v1532 = vrcp.pop %v1490
      %v1533 = vmul.f32 1.0, %v1532
      %v1534 = vrcp.pop %v1491
      %v1535 = vmul.f32 1.0, %v1534
      %v1536 = vrcp.pop %v1492
      %v1537 = vmul.f32 1.0, %v1536
      %v1538 = vrcp.pop %v1493
      %v1539 = vmul.f32 1.0, %v1538
      %v1540 = vrcp.pop %v1494
      %v1541 = vmul.f32 1.0, %v1540
      %v1542 = vrcp.pop %v1495
      %v1543 = vmul.f32 1.0, %v1542
      %v1544 = vrcp.pop %v1496
      %v1545 = vmul.f32 1.0, %v1544
      %v1546 = vrcp.pop %v1497
      %v1547 = vmul.f32 1.0, %v1546
      %v1548 = vrcp.pop %v1498
      %v1549 = vmul.f32 1.0, %v1548
      %v1550 = vrcp.pop %v1499
      %v1551 = vmul.f32 1.0, %v1550
      %v1552 = vrcp.pop %v1500
      %v1553 = vmul.f32 1.0, %v1552
      %v1554 = vrcp.pop %v1501
      %v1555 = vmul.f32 1.0, %v1554
      %v1556 = vrcp.pop %v1502
      %v1557 = vmul.f32 1.0, %v1556
      %v1558 = vrcp.pop %v1503
      %v1559 = vmul.f32 1.0, %v1558
      %v1560 = vrcp.pop %v1504
      %v1561 = vmul.f32 1.0, %v1560
      %v1562 = vrcp.pop %v1505
      %v1563 = vmul.f32 1.0, %v1562
      %v1564 = vrcp.pop %v1506
      %v1565 = vmul.f32 1.0, %v1564
      %v1566 = vrcp.pop %v1507
      %v1567 = vmul.f32 1.0, %v1566
      %v1568 = vrcp.pop %v1508
      %v1569 = vmul.f32 1.0, %v1568
      %v1570 = vrcp.pop %v1509
      %v1571 = vmul.f32 1.0, %v1570
      %v1572 = vrcp.pop %v1510
      %v1573 = vmul.f32 1.0, %v1572
      %v1574 = vrcp.pop %v1511
      %v1575 = vmul.f32 1.0, %v1574
      %vm1576 = vcmask 130048
      %1577 = vst.msk [vmem:[%s280] sm:$0xff] %vm1576, %v1513
      %1578 = vst.msk [vmem:[%s280 + $0x8] sm:$0xff] %vm1576, %v1515
      %1579 = vst.msk [vmem:[%s280 + $0x10] sm:$0xff] %vm1576, %v1517
      %1580 = vst.msk [vmem:[%s280 + $0x18] sm:$0xff] %vm1576, %v1519
      %1581 = vst.msk [vmem:[%s280 + $0x20] sm:$0xff] %vm1576, %v1521
      %1582 = vst.msk [vmem:[%s280 + $0x28] sm:$0xff] %vm1576, %v1523
      %1583 = vst.msk [vmem:[%s280 + $0x30] sm:$0xff] %vm1576, %v1525
      %1584 = vst.msk [vmem:[%s280 + $0x38] sm:$0xff] %vm1576, %v1527
      %1585 = vst.msk [vmem:[%s280 + $0x40] sm:$0xff] %vm1576, %v1529
      %1586 = vst.msk [vmem:[%s280 + $0x48] sm:$0xff] %vm1576, %v1531
      %1587 = vst.msk [vmem:[%s280 + $0x50] sm:$0xff] %vm1576, %v1533
      %1588 = vst.msk [vmem:[%s280 + $0x58] sm:$0xff] %vm1576, %v1535
      %1589 = vst.msk [vmem:[%s280 + $0x60] sm:$0xff] %vm1576, %v1537
      %1590 = vst.msk [vmem:[%s280 + $0x68] sm:$0xff] %vm1576, %v1539
      %1591 = vst.msk [vmem:[%s280 + $0x70] sm:$0xff] %vm1576, %v1541
      %1592 = vst.msk [vmem:[%s280 + $0x78] sm:$0xff] %vm1576, %v1543
      %1593 = vst.msk [vmem:[%s280 + $0x80] sm:$0xff] %vm1576, %v1545
      %1594 = vst.msk [vmem:[%s280 + $0x88] sm:$0xff] %vm1576, %v1547
      %1595 = vst.msk [vmem:[%s280 + $0x90] sm:$0xff] %vm1576, %v1549
      %1596 = vst.msk [vmem:[%s280 + $0x98] sm:$0xff] %vm1576, %v1551
      %1597 = vst.msk [vmem:[%s280 + $0xa0] sm:$0xff] %vm1576, %v1553
      %1598 = vst.msk [vmem:[%s280 + $0xa8] sm:$0xff] %vm1576, %v1555
      %1599 = vst.msk [vmem:[%s280 + $0xb0] sm:$0xff] %vm1576, %v1557
      %1600 = vst.msk [vmem:[%s280 + $0xb8] sm:$0xff] %vm1576, %v1559
      %1601 = vst.msk [vmem:[%s280 + $0xc0] sm:$0xff] %vm1576, %v1561
      %1602 = vst.msk [vmem:[%s280 + $0xc8] sm:$0xff] %vm1576, %v1563
      %1603 = vst.msk [vmem:[%s280 + $0xd0] sm:$0xff] %vm1576, %v1565
      %1604 = vst.msk [vmem:[%s280 + $0xd8] sm:$0xff] %vm1576, %v1567
      %1605 = vst.msk [vmem:[%s280 + $0xe0] sm:$0xff] %vm1576, %v1569
      %1606 = vst.msk [vmem:[%s280 + $0xe8] sm:$0xff] %vm1576, %v1571
      %1607 = vst.msk [vmem:[%s280 + $0xf0] sm:$0xff] %vm1576, %v1573
      %1608 = vst.msk [vmem:[%s280 + $0xf8] sm:$0xff] %vm1576, %v1575
      %s1609 = smul.u32 32, %s18
      %p1610 = scmp.lt.s32.totalorder %s1609, 63
      %s1611 = scalar_select %p1610, %s1609, 63
      %s1612 = smul.addr %s1611, 8
      %s1613 = scalar_lea.vmem %s7, %s1612
      // Predicated region
      $region49: #{tpu_custom_call.1} parent=47 // pred_check
        %p1614 = pneg %p188
      $region50: #{tpu_custom_call.1} parent=47 // pred_check_branch
        %1616 = sbr.rel (%p1614) target = $region52
      $region51: #{tpu_custom_call.1} parent=47 // pred_region
        %s1617 = smul.u32 32, %s18
      $region52: #{tpu_custom_call.1} parent=47 // pred_fallthru
        _
    $region48: #{tpu_custom_call.1} parent=5 // pred_fallthru
      _
    %p1618 = scmp.le.s32.totalorder 2, %s13
    // Predicated region
    $region53: #{tpu_custom_call.1} parent=5 // pred_check
      %p1619 = pneg %p1618
    $region54: #{tpu_custom_call.1} parent=5 // pred_check_branch
      %1621 = sbr.rel (%p1619) target = $region56
    $region55: #{tpu_custom_call.1} parent=5 // pred_region
      %s1622 = ssub.s32 %s13, 2
      // Predicated region
      $region57: #{tpu_custom_call.1} parent=55 // pred_check
        %p1623 = pneg %p194
      $region58: #{tpu_custom_call.1} parent=55 // pred_check_branch
        %1625 = sbr.rel (%p1623) target = $region60
      $region59: #{tpu_custom_call.1} parent=55 // pred_region
        %s1626 = smul.u32 32, %s19
        %p1627 = scmp.lt.s32.totalorder %s1626, 63
        %s1628 = scalar_select %p1627, %s1626, 63
        %s1629 = smul.addr %s1628, 8
        %s1630 = scalar_lea.vmem %s7, %s1629
      $region60: #{tpu_custom_call.1} parent=55 // pred_fallthru
        _
    $region56: #{tpu_custom_call.1} parent=5 // pred_fallthru
      _
  $region6: #{tpu_custom_call.1} parent=0 // loop_footer
    %s17 = sadd.s32 1, %s13
  $region7: #{tpu_custom_call.1} parent=0 // loop_footer_branch
    %12 = sbr.rel target = $region3
  $region8: #{tpu_custom_call.1} parent=0 // loop_exit
    _

// kernel: tpu_custom_call.1
$region0: #{tpu_custom_call.1}
  #allocation0 [shape = 'u32[]', space=smem, size = 0x4, offset = 0x4, fixed_abs, tag = 'smem constant byte address 0x4 - core index']
  #allocation1 [shape = 'u32[144,128]{1,0:T(1,128)}', space=vmem, size = 0x12000, scoped, tag = 'internal scratch']
  %s0 = inlined_call_operand.vmem [shape: f32[512,32], index: 0, kind: input, shape index: {}]
  %s1 = inlined_call_operand.vmem [shape: f32[32,64], index: 1, kind: input, shape index: {}]
  %s2 = inlined_call_operand.vmem [shape: f32[1,64], index: 2, kind: input, shape index: {}]
  %s3 = inlined_call_operand.vmem [shape: f32[64,64], index: 3, kind: input, shape index: {}]
  %s4 = inlined_call_operand.vmem [shape: f32[1,64], index: 4, kind: input, shape index: {}]
  %s5 = inlined_call_operand.vmem [shape: f32[64,16], index: 5, kind: input, shape index: {}]
  %s6 = inlined_call_operand.vmem [shape: f32[1,16], index: 6, kind: input, shape index: {}]
  %s7 = inlined_call_operand.vmem [shape: f32[512,16], index: 7, kind: output, shape index: {}]
  %s8 = sld [smem:[#allocation0]]
  $region61: #{tpu_custom_call.1} parent=0
    _
  %s10 = ssub.s32 1, %s8
  %s11 = scalar_select 0, %s10, %s8
  loop: start=0, step=1, limit=4
  $region2: #{tpu_custom_call.1} parent=0 // loop_pre_header
    _
  $region3: #{tpu_custom_call.1} parent=0 // loop_header
    %s13 = sphi 0, %s17
    %p14 = scmp.ge.s32.totalorder %s13, 4
    %s23 = sphi 0, %s25
    %s26 = sphi 0, %s23
    %s27 = sphi 0, %s26
    %s43 = sphi 0, %s27
    %s47 = sphi 0, %s47
    %s49 = sphi 0, %s47
    %s50 = sphi 0, %s49
    %s64 = sphi 0, %s50
    %s68 = sphi 0, %s68
    %s70 = sphi 0, %s68
    %s71 = sphi 0, %s70
    %s85 = sphi 0, %s71
    %s89 = sphi 0, %s89
    %s91 = sphi 0, %s89
    %s92 = sphi 0, %s91
    %s106 = sphi 0, %s92
    %s110 = sphi 0, %s110
    %s112 = sphi 0, %s110
    %s113 = sphi 0, %s112
    %s127 = sphi 0, %s113
    %s131 = sphi 0, %s131
    %s133 = sphi 0, %s131
    %s134 = sphi 0, %s133
    %s148 = sphi 0, %s134
    %s152 = sphi 0, %s152
    %s154 = sphi 0, %s152
    %s155 = sphi 0, %s154
    %s169 = sphi 0, %s155
    %s175 = sphi 0, %s177
    %s178 = sphi 0, %s175
    %s179 = sphi 0, %s178
    %s195 = sphi 0, %s179
  $region4: #{tpu_custom_call.1} parent=0 // loop_header_branch
    %16 = sbr.rel (%p14) target = $region8
  $region5: #{tpu_custom_call.1} parent=0 // loop_body
    %s18 = ssub.s32 %s13, 1
    %s19 = ssub.s32 %s13, 2
    %s20 = sadd.s32 %s13, 1
    %s21 = ssub.s32 %s13, %s20
    %p22 = scmp.eq.s32.totalorder %s21, 0
    %s24 = sadd.s32 %s23, 1
    %s25 = scalar_select %p22, %s23, %s24
    %p28 = pneg %p22
    %p29 = scmp.eq.s32.totalorder %s13, 1
    %p30 = por %p28, %p29
    %p31 = scmp.ne.s32.totalorder %s23, %s26
    %p32 = scmp.eq.s32.totalorder %s13, 0
    %p33 = por %p31, %p32
    %p34 = scmp.ne.s32.totalorder %s23, %s26
    %p35 = scmp.eq.s32.totalorder %s18, 1
    %p36 = por %p34, %p35
    %p37 = scmp.ne.s32.totalorder %s26, %s27
    %p38 = scmp.eq.s32.totalorder %s18, 0
    %p39 = por %p37, %p38
    %p40 = scmp.ne.s32.totalorder %s26, %s27
    %p41 = scmp.eq.s32.totalorder %s19, 1
    %p42 = por %p40, %p41
    %p44 = scmp.ne.s32.totalorder %s27, %s43
    %p45 = scmp.eq.s32.totalorder %s19, 0
    %p46 = por %p44, %p45
    %s48 = sadd.s32 %s47, 1
    %p51 = scmp.eq.s32.totalorder %s13, 1
    %p52 = scmp.ne.s32.totalorder %s47, %s49
    %p53 = scmp.eq.s32.totalorder %s13, 0
    %p54 = por %p52, %p53
    %p55 = scmp.ne.s32.totalorder %s47, %s49
    %p56 = scmp.eq.s32.totalorder %s18, 1
    %p57 = por %p55, %p56
    %p58 = scmp.ne.s32.totalorder %s49, %s50
    %p59 = scmp.eq.s32.totalorder %s18, 0
    %p60 = por %p58, %p59
    %p61 = scmp.ne.s32.totalorder %s49, %s50
    %p62 = scmp.eq.s32.totalorder %s19, 1
    %p63 = por %p61, %p62
    %p65 = scmp.ne.s32.totalorder %s50, %s64
    %p66 = scmp.eq.s32.totalorder %s19, 0
    %p67 = por %p65, %p66
    %s69 = sadd.s32 %s68, 1
    %p72 = scmp.eq.s32.totalorder %s13, 1
    %p73 = scmp.ne.s32.totalorder %s68, %s70
    %p74 = scmp.eq.s32.totalorder %s13, 0
    %p75 = por %p73, %p74
    %p76 = scmp.ne.s32.totalorder %s68, %s70
    %p77 = scmp.eq.s32.totalorder %s18, 1
    %p78 = por %p76, %p77
    %p79 = scmp.ne.s32.totalorder %s70, %s71
    %p80 = scmp.eq.s32.totalorder %s18, 0
    %p81 = por %p79, %p80
    %p82 = scmp.ne.s32.totalorder %s70, %s71
    %p83 = scmp.eq.s32.totalorder %s19, 1
    %p84 = por %p82, %p83
    %p86 = scmp.ne.s32.totalorder %s71, %s85
    %p87 = scmp.eq.s32.totalorder %s19, 0
    %p88 = por %p86, %p87
    %s90 = sadd.s32 %s89, 1
    %p93 = scmp.eq.s32.totalorder %s13, 1
    %p94 = scmp.ne.s32.totalorder %s89, %s91
    %p95 = scmp.eq.s32.totalorder %s13, 0
    %p96 = por %p94, %p95
    %p97 = scmp.ne.s32.totalorder %s89, %s91
    %p98 = scmp.eq.s32.totalorder %s18, 1
    %p99 = por %p97, %p98
    %p100 = scmp.ne.s32.totalorder %s91, %s92
    %p101 = scmp.eq.s32.totalorder %s18, 0
    %p102 = por %p100, %p101
    %p103 = scmp.ne.s32.totalorder %s91, %s92
    %p104 = scmp.eq.s32.totalorder %s19, 1
    %p105 = por %p103, %p104
    %p107 = scmp.ne.s32.totalorder %s92, %s106
    %p108 = scmp.eq.s32.totalorder %s19, 0
    %p109 = por %p107, %p108
    %s111 = sadd.s32 %s110, 1
    %p114 = scmp.eq.s32.totalorder %s13, 1
    %p115 = scmp.ne.s32.totalorder %s110, %s112
    %p116 = scmp.eq.s32.totalorder %s13, 0
    %p117 = por %p115, %p116
    %p118 = scmp.ne.s32.totalorder %s110, %s112
    %p119 = scmp.eq.s32.totalorder %s18, 1
    %p120 = por %p118, %p119
    %p121 = scmp.ne.s32.totalorder %s112, %s113
    %p122 = scmp.eq.s32.totalorder %s18, 0
    %p123 = por %p121, %p122
    %p124 = scmp.ne.s32.totalorder %s112, %s113
    %p125 = scmp.eq.s32.totalorder %s19, 1
    %p126 = por %p124, %p125
    %p128 = scmp.ne.s32.totalorder %s113, %s127
    %p129 = scmp.eq.s32.totalorder %s19, 0
    %p130 = por %p128, %p129
    %s132 = sadd.s32 %s131, 1
    %p135 = scmp.eq.s32.totalorder %s13, 1
    %p136 = scmp.ne.s32.totalorder %s131, %s133
    %p137 = scmp.eq.s32.totalorder %s13, 0
    %p138 = por %p136, %p137
    %p139 = scmp.ne.s32.totalorder %s131, %s133
    %p140 = scmp.eq.s32.totalorder %s18, 1
    %p141 = por %p139, %p140
    %p142 = scmp.ne.s32.totalorder %s133, %s134
    %p143 = scmp.eq.s32.totalorder %s18, 0
    %p144 = por %p142, %p143
    %p145 = scmp.ne.s32.totalorder %s133, %s134
    %p146 = scmp.eq.s32.totalorder %s19, 1
    %p147 = por %p145, %p146
    %p149 = scmp.ne.s32.totalorder %s134, %s148
    %p150 = scmp.eq.s32.totalorder %s19, 0
    %p151 = por %p149, %p150
    %s153 = sadd.s32 %s152, 1
    %p156 = scmp.eq.s32.totalorder %s13, 1
    %p157 = scmp.ne.s32.totalorder %s152, %s154
    %p158 = scmp.eq.s32.totalorder %s13, 0
    %p159 = por %p157, %p158
    %p160 = scmp.ne.s32.totalorder %s152, %s154
    %p161 = scmp.eq.s32.totalorder %s18, 1
    %p162 = por %p160, %p161
    %p163 = scmp.ne.s32.totalorder %s154, %s155
    %p164 = scmp.eq.s32.totalorder %s18, 0
    %p165 = por %p163, %p164
    %p166 = scmp.ne.s32.totalorder %s154, %s155
    %p167 = scmp.eq.s32.totalorder %s19, 1
    %p168 = por %p166, %p167
    %p170 = scmp.ne.s32.totalorder %s155, %s169
    %p171 = scmp.eq.s32.totalorder %s19, 0
    %p172 = por %p170, %p171
    %s173 = ssub.s32 %s13, %s20
    %p174 = scmp.eq.s32.totalorder %s173, 0
    %s176 = sadd.s32 %s175, 1
    %s177 = scalar_select %p174, %s175, %s176
    %p180 = pneg %p174
    %p181 = scmp.eq.s32.totalorder %s13, 1
    %p182 = por %p180, %p181
    %p183 = scmp.ne.s32.totalorder %s175, %s178
    %p184 = scmp.eq.s32.totalorder %s13, 0
    %p185 = por %p183, %p184
    %p186 = scmp.ne.s32.totalorder %s175, %s178
    %p187 = scmp.eq.s32.totalorder %s18, 1
    %p188 = por %p186, %p187
    %p189 = scmp.ne.s32.totalorder %s178, %s179
    %p190 = scmp.eq.s32.totalorder %s18, 0
    %p191 = por %p189, %p190
    %p192 = scmp.ne.s32.totalorder %s178, %s179
    %p193 = scmp.eq.s32.totalorder %s19, 1
    %p194 = por %p192, %p193
    %p196 = scmp.ne.s32.totalorder %s179, %s195
    %p197 = scmp.eq.s32.totalorder %s19, 0
    %p198 = por %p196, %p197
    %p199 = scmp.le.s32.totalorder 1, %s13
    %p200 = scmp.lt.s32.totalorder %s13, 3
    %p201 = pnand %p199, %p200
    %p202 = pneg %p201
    // Predicated region
    $region9: #{tpu_custom_call.1} parent=5 // pred_check
      _
    $region10: #{tpu_custom_call.1} parent=5 // pred_check_branch
      %204 = sbr.rel (%p201) target = $region12
    $region11: #{tpu_custom_call.1} parent=5 // pred_region
      %s205 = ssub.s32 %s13, 1
      // Predicated region
      $region13: #{tpu_custom_call.1} parent=11 // pred_check
        %p206 = pneg %p60
      $region14: #{tpu_custom_call.1} parent=11 // pred_check_branch
        %208 = sbr.rel (%p206) target = $region16
      $region15: #{tpu_custom_call.1} parent=11 // pred_region
        _
      $region16: #{tpu_custom_call.1} parent=11 // pred_fallthru
        _
      // Predicated region
      $region17: #{tpu_custom_call.1} parent=11 // pred_check
        %p209 = pneg %p81
      $region18: #{tpu_custom_call.1} parent=11 // pred_check_branch
        %211 = sbr.rel (%p209) target = $region20
      $region19: #{tpu_custom_call.1} parent=11 // pred_region
        _
      $region20: #{tpu_custom_call.1} parent=11 // pred_fallthru
        _
      // Predicated region
      $region21: #{tpu_custom_call.1} parent=11 // pred_check
        %p212 = pneg %p102
      $region22: #{tpu_custom_call.1} parent=11 // pred_check_branch
        %214 = sbr.rel (%p212) target = $region24
      $region23: #{tpu_custom_call.1} parent=11 // pred_region
        _
      $region24: #{tpu_custom_call.1} parent=11 // pred_fallthru
        _
      // Predicated region
      $region25: #{tpu_custom_call.1} parent=11 // pred_check
        %p215 = pneg %p123
      $region26: #{tpu_custom_call.1} parent=11 // pred_check_branch
        %217 = sbr.rel (%p215) target = $region28
      $region27: #{tpu_custom_call.1} parent=11 // pred_region
        _
      $region28: #{tpu_custom_call.1} parent=11 // pred_fallthru
        _
      // Predicated region
      $region29: #{tpu_custom_call.1} parent=11 // pred_check
        %p218 = pneg %p144
      $region30: #{tpu_custom_call.1} parent=11 // pred_check_branch
        %220 = sbr.rel (%p218) target = $region32
      $region31: #{tpu_custom_call.1} parent=11 // pred_region
        _
      $region32: #{tpu_custom_call.1} parent=11 // pred_fallthru
        _
      // Predicated region
      $region33: #{tpu_custom_call.1} parent=11 // pred_check
        %p221 = pneg %p165
      $region34: #{tpu_custom_call.1} parent=11 // pred_check_branch
        %223 = sbr.rel (%p221) target = $region36
      $region35: #{tpu_custom_call.1} parent=11 // pred_region
        _
      $region36: #{tpu_custom_call.1} parent=11 // pred_fallthru
        _
    $region12: #{tpu_custom_call.1} parent=5 // pred_fallthru
      _
    %p224 = scmp.lt.s32.totalorder %s13, 2
    // Predicated region
    $region37: #{tpu_custom_call.1} parent=5 // pred_check
      %p225 = pneg %p224
    $region38: #{tpu_custom_call.1} parent=5 // pred_check_branch
      %227 = sbr.rel (%p225) target = $region40
    $region39: #{tpu_custom_call.1} parent=5 // pred_region
      // Predicated region
      $region41: #{tpu_custom_call.1} parent=39 // pred_check
        %p228 = pneg %p33
      $region42: #{tpu_custom_call.1} parent=39 // pred_check_branch
        %230 = sbr.rel (%p228) target = $region44
      $region43: #{tpu_custom_call.1} parent=39 // pred_region
        %s231 = smul.u32 32, %s13
        %p232 = scmp.lt.s32.totalorder %s231, 63
        %s233 = scalar_select %p232, %s231, 63
        %s234 = smul.addr %s233, 8
        %s235 = scalar_lea.vmem %s0, %s234
        %s236 = smul.u32 32, %s13
      $region44: #{tpu_custom_call.1} parent=39 // pred_fallthru
        _
    $region40: #{tpu_custom_call.1} parent=5 // pred_fallthru
      _
    %p237 = scmp.le.s32.totalorder 1, %s13
    %p238 = scmp.lt.s32.totalorder %s13, 3
    %p239 = pnand %p237, %p238
    %p240 = pneg %p239
    // Predicated region
    $region45: #{tpu_custom_call.1} parent=5 // pred_check
      _
    $region46: #{tpu_custom_call.1} parent=5 // pred_check_branch
      %242 = sbr.rel (%p239) target = $region48
    $region47: #{tpu_custom_call.1} parent=5 // pred_region
      %s243 = ssub.s32 %s13, 1
      %s244 = smul.u32 32, %s18
      %p245 = scmp.lt.s32.totalorder %s244, 63
      %s246 = scalar_select %p245, %s244, 63
      %s247 = smul.addr %s246, 8
      %s248 = scalar_lea.vmem %s0, %s247
      %p249 = pneg %p39
      %p250 = pneg %p36
      %p251 = pneg %p60
      %p252 = pneg %p57
      %p253 = pneg %p81
      %p254 = pneg %p78
      %p255 = pneg %p102
      %p256 = pneg %p99
      %p257 = pneg %p123
      %p258 = pneg %p120
      %p259 = pneg %p144
      %p260 = pneg %p141
      %p261 = pneg %p165
      %p262 = pneg %p162
      %p263 = pneg %p191
      %p264 = pneg %p188
      %s265 = smul.u32 32, %s18
      %p266 = scmp.lt.s32.totalorder %s265, 63
      %s267 = scalar_select %p266, %s265, 63
      %s268 = smul.addr %s267, 8
      %s269 = scalar_lea.vmem %s7, %s268
      %s270 = smul.u32 32, %s18
      %p271 = scmp.lt.s32.totalorder %s270, 63
      %s272 = scalar_select %p271, %s270, 63
      %s273 = smul.addr %s272, 8
      %s274 = scalar_lea.vmem %s0, %s273
      %s275 = smul.u32 32, %s18
      %s276 = smul.u32 32, %s18
      %p277 = scmp.lt.s32.totalorder %s276, 63
      %s278 = scalar_select %p277, %s276, 63
      %s279 = smul.addr %s278, 8
      %s280 = scalar_lea.vmem %s7, %s279
      %s281 = smul.u32 32, %s18
      %v282 = vld [vmem:[%s274] sm:$0xff]
      %v283 = vld [vmem:[%s274 + $0x8] sm:$0xff]
      %v284 = vld [vmem:[%s274 + $0x10] sm:$0xff]
      %v285 = vld [vmem:[%s274 + $0x18] sm:$0xff]
      %v286 = vld [vmem:[%s274 + $0x20] sm:$0xff]
      %v287 = vld [vmem:[%s274 + $0x28] sm:$0xff]
      %v288 = vld [vmem:[%s274 + $0x30] sm:$0xff]
      %v289 = vld [vmem:[%s274 + $0x38] sm:$0xff]
      %v290 = vld [vmem:[%s274 + $0x40] sm:$0xff]
      %v291 = vld [vmem:[%s274 + $0x48] sm:$0xff]
      %v292 = vld [vmem:[%s274 + $0x50] sm:$0xff]
      %v293 = vld [vmem:[%s274 + $0x58] sm:$0xff]
      %v294 = vld [vmem:[%s274 + $0x60] sm:$0xff]
      %v295 = vld [vmem:[%s274 + $0x68] sm:$0xff]
      %v296 = vld [vmem:[%s274 + $0x70] sm:$0xff]
      %v297 = vld [vmem:[%s274 + $0x78] sm:$0xff]
      %v298 = vld [vmem:[%s274 + $0x80] sm:$0xff]
      %v299 = vld [vmem:[%s274 + $0x88] sm:$0xff]
      %v300 = vld [vmem:[%s274 + $0x90] sm:$0xff]
      %v301 = vld [vmem:[%s274 + $0x98] sm:$0xff]
      %v302 = vld [vmem:[%s274 + $0xa0] sm:$0xff]
      %v303 = vld [vmem:[%s274 + $0xa8] sm:$0xff]
      %v304 = vld [vmem:[%s274 + $0xb0] sm:$0xff]
      %v305 = vld [vmem:[%s274 + $0xb8] sm:$0xff]
      %v306 = vld [vmem:[%s274 + $0xc0] sm:$0xff]
      %v307 = vld [vmem:[%s274 + $0xc8] sm:$0xff]
      %v308 = vld [vmem:[%s274 + $0xd0] sm:$0xff]
      %v309 = vld [vmem:[%s274 + $0xd8] sm:$0xff]
      %v310 = vld [vmem:[%s274 + $0xe0] sm:$0xff]
      %v311 = vld [vmem:[%s274 + $0xe8] sm:$0xff]
      %v312 = vld [vmem:[%s274 + $0xf0] sm:$0xff]
      %v313 = vld [vmem:[%s274 + $0xf8] sm:$0xff]
      %v314 = vld [vmem:[%s1] sm:$0xff]
      %v315 = vld [vmem:[%s1 + $0x8] sm:$0xff]
      %v316 = vld [vmem:[%s1 + $0x10] sm:$0xff]
      %v317 = vld [vmem:[%s1 + $0x18] sm:$0xff]
      %v318 = vld [vmem:[%s2] sm:$0x1]
      %v320 = vlaneseq
      %v321 = vshrl.u32 %v320, 7
      %v322 = vsub.s32 0, %v321
      %v323 = vrot.slane %v318, %v322
      %vm325 = vcmask 261120
      %v327 = vsel %vm325, %v282, 0
      %v330 = vsel %vm325, %v283, 0
      %v333 = vsel %vm325, %v284, 0
      %v336 = vsel %vm325, %v285, 0
      %v339 = vsel %vm325, %v286, 0
      %v342 = vsel %vm325, %v287, 0
      %v345 = vsel %vm325, %v288, 0
      %v348 = vsel %vm325, %v289, 0
      %v351 = vsel %vm325, %v290, 0
      %v354 = vsel %vm325, %v291, 0
      %v357 = vsel %vm325, %v292, 0
      %v360 = vsel %vm325, %v293, 0
      %v363 = vsel %vm325, %v294, 0
      %v366 = vsel %vm325, %v295, 0
      %v369 = vsel %vm325, %v296, 0
      %v372 = vsel %vm325, %v297, 0
      %v375 = vsel %vm325, %v298, 0
      %v378 = vsel %vm325, %v299, 0
      %v381 = vsel %vm325, %v300, 0
      %v384 = vsel %vm325, %v301, 0
      %v387 = vsel %vm325, %v302, 0
      %v390 = vsel %vm325, %v303, 0
      %v393 = vsel %vm325, %v304, 0
      %v396 = vsel %vm325, %v305, 0
      %v399 = vsel %vm325, %v306, 0
      %v402 = vsel %vm325, %v307, 0
      %v405 = vsel %vm325, %v308, 0
      %v408 = vsel %vm325, %v309, 0
      %v411 = vsel %vm325, %v310, 0
      %v414 = vsel %vm325, %v311, 0
      %v417 = vsel %vm325, %v312, 0
      %v420 = vsel %vm325, %v313, 0
      %422 = vmatprep.subr.mxu0 0.0
      %423 = vmatpush1.msra.mxu0 %v314
      %424 = vmatprep.subr.mxu0 0.0
      %425 = vmatpush1.msra.mxu0 %v315
      %426 = vmatprep.subr.mxu0 0.0
      %427 = vmatpush1.msra.mxu0 %v316
      %428 = vmatprep.subr.mxu0 0.0
      %429 = vmatpush1.msra.mxu0 %v317
      %430 = vmatprep.subr.mxu0 0.0
      %431 = vmatpush1.msra.mxu0 0.0
      %432 = vmatprep.subr.mxu0 0.0
      %433 = vmatpush1.msra.mxu0 0.0
      %434 = vmatprep.subr.mxu0 0.0
      %435 = vmatpush1.msra.mxu0 0.0
      %436 = vmatprep.subr.mxu0 0.0
      %437 = vmatpush1.msra.mxu0 0.0
      %438 = vmatprep.subr.mxu0 0.0
      %439 = vmatpush1.msra.mxu0 0.0
      %440 = vmatprep.subr.mxu0 0.0
      %441 = vmatpush1.msra.mxu0 0.0
      %442 = vmatprep.subr.mxu0 0.0
      %443 = vmatpush1.msra.mxu0 0.0
      %444 = vmatprep.subr.mxu0 0.0
      %445 = vmatpush1.msra.mxu0 0.0
      %446 = vmatprep.subr.mxu0 0.0
      %447 = vmatpush1.msra.mxu0 0.0
      %448 = vmatprep.subr.mxu0 0.0
      %449 = vmatpush1.msra.mxu0 0.0
      %450 = vmatprep.subr.mxu0 0.0
      %451 = vmatpush1.msra.mxu0 0.0
      %452 = vmatprep.subr.mxu0 0.0
      %453 = vmatpush1.msra.mxu0 0.0
      %454 = vmatprep.subr.mxu0 0.0
      %455 = vmatpush1.msra.mxu0 0.0
      %456 = vmatprep.subr.mxu0 0.0
      %457 = vmatpush1.msra.mxu0 0.0
      %458 = vmatprep.subr.mxu0 0.0
      %459 = vmatpush1.msra.mxu0 0.0
      %460 = vmatprep.subr.mxu0 0.0
      %461 = vmatpush1.msra.mxu0 0.0
      %462 = vmatprep.subr.mxu0 0.0
      %463 = vmatpush1.msra.mxu0 0.0
      %464 = vmatprep.subr.mxu0 0.0
      %465 = vmatpush1.msra.mxu0 0.0
      %466 = vmatprep.subr.mxu0 0.0
      %467 = vmatpush1.msra.mxu0 0.0
      %468 = vmatprep.subr.mxu0 0.0
      %469 = vmatpush1.msra.mxu0 0.0
      %470 = vmatprep.subr.mxu0 0.0
      %471 = vmatpush1.msra.mxu0 0.0
      %472 = vmatprep.subr.mxu0 0.0
      %473 = vmatpush1.msra.mxu0 0.0
      %474 = vmatprep.subr.mxu0 0.0
      %475 = vmatpush1.msra.mxu0 0.0
      %476 = vmatprep.subr.mxu0 0.0
      %477 = vmatpush1.msra.mxu0 0.0
      %478 = vmatprep.subr.mxu0 0.0
      %479 = vmatpush1.msra.mxu0 0.0
      %480 = vmatprep.subr.mxu0 0.0
      %481 = vmatpush1.msra.mxu0 0.0
      %482 = vmatprep.subr.mxu0 0.0
      %483 = vmatpush1.msra.mxu0 0.0
      %484 = vmatprep.subr.mxu0 0.0
      %485 = vmatpush1.msra.mxu0 0.0
      %486 = vmatprep.mubr.f32.mxu0 0.0
      %487 = vmatmul.mubr.f32.gmra.mrb[0].mxu0 %v327
      %v488 = vpop.f32.mrb[0].mxu0
      %v489 = vadd.f32 %v323, %v488
      %v490 = vpop.f32.mrb[0].mxu0
      %491 = vmatprep.mubr.f32.mxu0 0.0
      %492 = vmatmul.mubr.f32.gmra.mrb[0].mxu0 %v330
      %v493 = vpop.f32.mrb[0].mxu0
      %v494 = vadd.f32 %v323, %v493
      %v495 = vpop.f32.mrb[0].mxu0
      %496 = vmatprep.mubr.f32.mxu0 0.0
      %497 = vmatmul.mubr.f32.gmra.mrb[0].mxu0 %v333
      %v498 = vpop.f32.mrb[0].mxu0
      %v499 = vadd.f32 %v323, %v498
      %v500 = vpop.f32.mrb[0].mxu0
      %501 = vmatprep.mubr.f32.mxu0 0.0
      %502 = vmatmul.mubr.f32.gmra.mrb[0].mxu0 %v336
      %v503 = vpop.f32.mrb[0].mxu0
      %v504 = vadd.f32 %v323, %v503
      %v505 = vpop.f32.mrb[0].mxu0
      %506 = vmatprep.mubr.f32.mxu0 0.0
      %507 = vmatmul.mubr.f32.gmra.mrb[0].mxu0 %v339
      %v508 = vpop.f32.mrb[0].mxu0
      %v509 = vadd.f32 %v323, %v508
      %v510 = vpop.f32.mrb[0].mxu0
      %511 = vmatprep.mubr.f32.mxu0 0.0
      %512 = vmatmul.mubr.f32.gmra.mrb[0].mxu0 %v342
      %v513 = vpop.f32.mrb[0].mxu0
      %v514 = vadd.f32 %v323, %v513
      %v515 = vpop.f32.mrb[0].mxu0
      %516 = vmatprep.mubr.f32.mxu0 0.0
      %517 = vmatmul.mubr.f32.gmra.mrb[0].mxu0 %v345
      %v518 = vpop.f32.mrb[0].mxu0
      %v519 = vadd.f32 %v323, %v518
      %v520 = vpop.f32.mrb[0].mxu0
      %521 = vmatprep.mubr.f32.mxu0 0.0
      %522 = vmatmul.mubr.f32.gmra.mrb[0].mxu0 %v348
      %v523 = vpop.f32.mrb[0].mxu0
      %v524 = vadd.f32 %v323, %v523
      %v525 = vpop.f32.mrb[0].mxu0
      %526 = vmatprep.mubr.f32.mxu0 0.0
      %527 = vmatmul.mubr.f32.gmra.mrb[0].mxu0 %v351
      %v528 = vpop.f32.mrb[0].mxu0
      %v529 = vadd.f32 %v323, %v528
      %v530 = vpop.f32.mrb[0].mxu0
      %531 = vmatprep.mubr.f32.mxu0 0.0
      %532 = vmatmul.mubr.f32.gmra.mrb[0].mxu0 %v354
      %v533 = vpop.f32.mrb[0].mxu0
      %v534 = vadd.f32 %v323, %v533
      %v535 = vpop.f32.mrb[0].mxu0
      %536 = vmatprep.mubr.f32.mxu0 0.0
      %537 = vmatmul.mubr.f32.gmra.mrb[0].mxu0 %v357
      %v538 = vpop.f32.mrb[0].mxu0
      %v539 = vadd.f32 %v323, %v538
      %v540 = vpop.f32.mrb[0].mxu0
      %541 = vmatprep.mubr.f32.mxu0 0.0
      %542 = vmatmul.mubr.f32.gmra.mrb[0].mxu0 %v360
      %v543 = vpop.f32.mrb[0].mxu0
      %v544 = vadd.f32 %v323, %v543
      %v545 = vpop.f32.mrb[0].mxu0
      %546 = vmatprep.mubr.f32.mxu0 0.0
      %547 = vmatmul.mubr.f32.gmra.mrb[0].mxu0 %v363
      %v548 = vpop.f32.mrb[0].mxu0
      %v549 = vadd.f32 %v323, %v548
      %v550 = vpop.f32.mrb[0].mxu0
      %551 = vmatprep.mubr.f32.mxu0 0.0
      %552 = vmatmul.mubr.f32.gmra.mrb[0].mxu0 %v366
      %v553 = vpop.f32.mrb[0].mxu0
      %v554 = vadd.f32 %v323, %v553
      %v555 = vpop.f32.mrb[0].mxu0
      %556 = vmatprep.mubr.f32.mxu0 0.0
      %557 = vmatmul.mubr.f32.gmra.mrb[0].mxu0 %v369
      %v558 = vpop.f32.mrb[0].mxu0
      %v559 = vadd.f32 %v323, %v558
      %v560 = vpop.f32.mrb[0].mxu0
      %561 = vmatprep.mubr.f32.mxu0 0.0
      %562 = vmatmul.mubr.f32.gmra.mrb[0].mxu0 %v372
      %v563 = vpop.f32.mrb[0].mxu0
      %v564 = vadd.f32 %v323, %v563
      %v565 = vpop.f32.mrb[0].mxu0
      %566 = vmatprep.mubr.f32.mxu0 0.0
      %567 = vmatmul.mubr.f32.gmra.mrb[0].mxu0 %v375
      %v568 = vpop.f32.mrb[0].mxu0
      %v569 = vadd.f32 %v323, %v568
      %v570 = vpop.f32.mrb[0].mxu0
      %571 = vmatprep.mubr.f32.mxu0 0.0
      %572 = vmatmul.mubr.f32.gmra.mrb[0].mxu0 %v378
      %v573 = vpop.f32.mrb[0].mxu0
      %v574 = vadd.f32 %v323, %v573
      %v575 = vpop.f32.mrb[0].mxu0
      %576 = vmatprep.mubr.f32.mxu0 0.0
      %577 = vmatmul.mubr.f32.gmra.mrb[0].mxu0 %v381
      %v578 = vpop.f32.mrb[0].mxu0
      %v579 = vadd.f32 %v323, %v578
      %v580 = vpop.f32.mrb[0].mxu0
      %581 = vmatprep.mubr.f32.mxu0 0.0
      %582 = vmatmul.mubr.f32.gmra.mrb[0].mxu0 %v384
      %v583 = vpop.f32.mrb[0].mxu0
      %v584 = vadd.f32 %v323, %v583
      %v585 = vpop.f32.mrb[0].mxu0
      %586 = vmatprep.mubr.f32.mxu0 0.0
      %587 = vmatmul.mubr.f32.gmra.mrb[0].mxu0 %v387
      %v588 = vpop.f32.mrb[0].mxu0
      %v589 = vadd.f32 %v323, %v588
      %v590 = vpop.f32.mrb[0].mxu0
      %591 = vmatprep.mubr.f32.mxu0 0.0
      %592 = vmatmul.mubr.f32.gmra.mrb[0].mxu0 %v390
      %v593 = vpop.f32.mrb[0].mxu0
      %v594 = vadd.f32 %v323, %v593
      %v595 = vpop.f32.mrb[0].mxu0
      %596 = vmatprep.mubr.f32.mxu0 0.0
      %597 = vmatmul.mubr.f32.gmra.mrb[0].mxu0 %v393
      %v598 = vpop.f32.mrb[0].mxu0
      %v599 = vadd.f32 %v323, %v598
      %v600 = vpop.f32.mrb[0].mxu0
      %601 = vmatprep.mubr.f32.mxu0 0.0
      %602 = vmatmul.mubr.f32.gmra.mrb[0].mxu0 %v396
      %v603 = vpop.f32.mrb[0].mxu0
      %v604 = vadd.f32 %v323, %v603
      %v605 = vpop.f32.mrb[0].mxu0
      %606 = vmatprep.mubr.f32.mxu0 0.0
      %607 = vmatmul.mubr.f32.gmra.mrb[0].mxu0 %v399
      %v608 = vpop.f32.mrb[0].mxu0
      %v609 = vadd.f32 %v323, %v608
      %v610 = vpop.f32.mrb[0].mxu0
      %611 = vmatprep.mubr.f32.mxu0 0.0
      %612 = vmatmul.mubr.f32.gmra.mrb[0].mxu0 %v402
      %v613 = vpop.f32.mrb[0].mxu0
      %v614 = vadd.f32 %v323, %v613
      %v615 = vpop.f32.mrb[0].mxu0
      %616 = vmatprep.mubr.f32.mxu0 0.0
      %617 = vmatmul.mubr.f32.gmra.mrb[0].mxu0 %v405
      %v618 = vpop.f32.mrb[0].mxu0
      %v619 = vadd.f32 %v323, %v618
      %v620 = vpop.f32.mrb[0].mxu0
      %621 = vmatprep.mubr.f32.mxu0 0.0
      %622 = vmatmul.mubr.f32.gmra.mrb[0].mxu0 %v408
      %v623 = vpop.f32.mrb[0].mxu0
      %v624 = vadd.f32 %v323, %v623
      %v625 = vpop.f32.mrb[0].mxu0
      %626 = vmatprep.mubr.f32.mxu0 0.0
      %627 = vmatmul.mubr.f32.gmra.mrb[0].mxu0 %v411
      %v628 = vpop.f32.mrb[0].mxu0
      %v629 = vadd.f32 %v323, %v628
      %v630 = vpop.f32.mrb[0].mxu0
      %631 = vmatprep.mubr.f32.mxu0 0.0
      %632 = vmatmul.mubr.f32.gmra.mrb[0].mxu0 %v414
      %v633 = vpop.f32.mrb[0].mxu0
      %v634 = vadd.f32 %v323, %v633
      %v635 = vpop.f32.mrb[0].mxu0
      %636 = vmatprep.mubr.f32.mxu0 0.0
      %637 = vmatmul.mubr.f32.gmra.mrb[0].mxu0 %v417
      %v638 = vpop.f32.mrb[0].mxu0
      %v639 = vadd.f32 %v323, %v638
      %v640 = vpop.f32.mrb[0].mxu0
      %641 = vmatprep.mubr.f32.mxu0 0.0
      %642 = vmatmul.mubr.f32.gmra.mrb[0].mxu0 %v420
      %v643 = vpop.f32.mrb[0].mxu0
      %v644 = vadd.f32 %v323, %v643
      %v645 = vpop.f32.mrb[0].mxu0
      %646 = vdwg.mxu0
      %v647 = vmax.f32 %v489, 0.0
      %v648 = vmax.f32 %v494, 0.0
      %v649 = vmax.f32 %v499, 0.0
      %v650 = vmax.f32 %v504, 0.0
      %v651 = vmax.f32 %v509, 0.0
      %v652 = vmax.f32 %v514, 0.0
      %v653 = vmax.f32 %v519, 0.0
      %v654 = vmax.f32 %v524, 0.0
      %v655 = vmax.f32 %v529, 0.0
      %v656 = vmax.f32 %v534, 0.0
      %v657 = vmax.f32 %v539, 0.0
      %v658 = vmax.f32 %v544, 0.0
      %v659 = vmax.f32 %v549, 0.0
      %v660 = vmax.f32 %v554, 0.0
      %v661 = vmax.f32 %v559, 0.0
      %v662 = vmax.f32 %v564, 0.0
      %v663 = vmax.f32 %v569, 0.0
      %v664 = vmax.f32 %v574, 0.0
      %v665 = vmax.f32 %v579, 0.0
      %v666 = vmax.f32 %v584, 0.0
      %v667 = vmax.f32 %v589, 0.0
      %v668 = vmax.f32 %v594, 0.0
      %v669 = vmax.f32 %v599, 0.0
      %v670 = vmax.f32 %v604, 0.0
      %v671 = vmax.f32 %v609, 0.0
      %v672 = vmax.f32 %v614, 0.0
      %v673 = vmax.f32 %v619, 0.0
      %v674 = vmax.f32 %v624, 0.0
      %v675 = vmax.f32 %v629, 0.0
      %v676 = vmax.f32 %v634, 0.0
      %v677 = vmax.f32 %v639, 0.0
      %v678 = vmax.f32 %v644, 0.0
      %v679 = vld [vmem:[%s3] sm:$0xff]
      %v680 = vld [vmem:[%s3 + $0x8] sm:$0xff]
      %v681 = vld [vmem:[%s3 + $0x10] sm:$0xff]
      %v682 = vld [vmem:[%s3 + $0x18] sm:$0xff]
      %v683 = vld [vmem:[%s3 + $0x20] sm:$0xff]
      %v684 = vld [vmem:[%s3 + $0x28] sm:$0xff]
      %v685 = vld [vmem:[%s3 + $0x30] sm:$0xff]
      %v686 = vld [vmem:[%s3 + $0x38] sm:$0xff]
      %v687 = vld [vmem:[%s4] sm:$0x1]
      %v689 = vlaneseq
      %v690 = vshrl.u32 %v689, 7
      %v691 = vsub.s32 0, %v690
      %v692 = vrot.slane %v687, %v691
      %vm694 = vcmask 523264
      %v696 = vsel %vm694, %v647, 0
      %v699 = vsel %vm694, %v648, 0
      %v702 = vsel %vm694, %v649, 0
      %v705 = vsel %vm694, %v650, 0
      %v708 = vsel %vm694, %v651, 0
      %v711 = vsel %vm694, %v652, 0
      %v714 = vsel %vm694, %v653, 0
      %v717 = vsel %vm694, %v654, 0
      %v720 = vsel %vm694, %v655, 0
      %v723 = vsel %vm694, %v656, 0
      %v726 = vsel %vm694, %v657, 0
      %v729 = vsel %vm694, %v658, 0
      %v732 = vsel %vm694, %v659, 0
      %v735 = vsel %vm694, %v660, 0
      %v738 = vsel %vm694, %v661, 0
      %v741 = vsel %vm694, %v662, 0
      %v744 = vsel %vm694, %v663, 0
      %v747 = vsel %vm694, %v664, 0
      %v750 = vsel %vm694, %v665, 0
      %v753 = vsel %vm694, %v666, 0
      %v756 = vsel %vm694, %v667, 0
      %v759 = vsel %vm694, %v668, 0
      %v762 = vsel %vm694, %v669, 0
      %v765 = vsel %vm694, %v670, 0
      %v768 = vsel %vm694, %v671, 0
      %v771 = vsel %vm694, %v672, 0
      %v774 = vsel %vm694, %v673, 0
      %v777 = vsel %vm694, %v674, 0
      %v780 = vsel %vm694, %v675, 0
      %v783 = vsel %vm694, %v676, 0
      %v786 = vsel %vm694, %v677, 0
      %v789 = vsel %vm694, %v678, 0
      %791 = vmatprep.subr.mxu0 0.0
      %792 = vmatpush1.msra.mxu0 %v679
      %793 = vmatprep.subr.mxu0 0.0
      %794 = vmatpush1.msra.mxu0 %v680
      %795 = vmatprep.subr.mxu0 0.0
      %796 = vmatpush1.msra.mxu0 %v681
      %797 = vmatprep.subr.mxu0 0.0
      %798 = vmatpush1.msra.mxu0 %v682
      %799 = vmatprep.subr.mxu0 0.0
      %800 = vmatpush1.msra.mxu0 %v683
      %801 = vmatprep.subr.mxu0 0.0
      %802 = vmatpush1.msra.mxu0 %v684
      %803 = vmatprep.subr.mxu0 0.0
      %804 = vmatpush1.msra.mxu0 %v685
      %805 = vmatprep.subr.mxu0 0.0
      %806 = vmatpush1.msra.mxu0 %v686
      %807 = vmatprep.subr.mxu0 0.0
      %808 = vmatpush1.msra.mxu0 0.0
      %809 = vmatprep.subr.mxu0 0.0
      %810 = vmatpush1.msra.mxu0 0.0
      %811 = vmatprep.subr.mxu0 0.0
      %812 = vmatpush1.msra.mxu0 0.0
      %813 = vmatprep.subr.mxu0 0.0
      %814 = vmatpush1.msra.mxu0 0.0
      %815 = vmatprep.subr.mxu0 0.0
      %816 = vmatpush1.msra.mxu0 0.0
      %817 = vmatprep.subr.mxu0 0.0
      %818 = vmatpush1.msra.mxu0 0.0
      %819 = vmatprep.subr.mxu0 0.0
      %820 = vmatpush1.msra.mxu0 0.0
      %821 = vmatprep.subr.mxu0 0.0
      %822 = vmatpush1.msra.mxu0 0.0
      %823 = vmatprep.subr.mxu0 0.0
      %824 = vmatpush1.msra.mxu0 0.0
      %825 = vmatprep.subr.mxu0 0.0
      %826 = vmatpush1.msra.mxu0 0.0
      %827 = vmatprep.subr.mxu0 0.0
      %828 = vmatpush1.msra.mxu0 0.0
      %829 = vmatprep.subr.mxu0 0.0
      %830 = vmatpush1.msra.mxu0 0.0
      %831 = vmatprep.subr.mxu0 0.0
      %832 = vmatpush1.msra.mxu0 0.0
      %833 = vmatprep.subr.mxu0 0.0
      %834 = vmatpush1.msra.mxu0 0.0
      %835 = vmatprep.subr.mxu0 0.0
      %836 = vmatpush1.msra.mxu0 0.0
      %837 = vmatprep.subr.mxu0 0.0
      %838 = vmatpush1.msra.mxu0 0.0
      %839 = vmatprep.subr.mxu0 0.0
      %840 = vmatpush1.msra.mxu0 0.0
      %841 = vmatprep.subr.mxu0 0.0
      %842 = vmatpush1.msra.mxu0 0.0
      %843 = vmatprep.subr.mxu0 0.0
      %844 = vmatpush1.msra.mxu0 0.0
      %845 = vmatprep.subr.mxu0 0.0
      %846 = vmatpush1.msra.mxu0 0.0
      %847 = vmatprep.subr.mxu0 0.0
      %848 = vmatpush1.msra.mxu0 0.0
      %849 = vmatprep.subr.mxu0 0.0
      %850 = vmatpush1.msra.mxu0 0.0
      %851 = vmatprep.subr.mxu0 0.0
      %852 = vmatpush1.msra.mxu0 0.0
      %853 = vmatprep.subr.mxu0 0.0
      %854 = vmatpush1.msra.mxu0 0.0
      %855 = vmatprep.mubr.f32.mxu0 0.0
      %856 = vmatmul.mubr.f32.gmra.mrb[0].mxu0 %v696
      %v857 = vpop.f32.mrb[0].mxu0
      %v858 = vadd.f32 %v692, %v857
      %v859 = vpop.f32.mrb[0].mxu0
      %860 = vmatprep.mubr.f32.mxu0 0.0
      %861 = vmatmul.mubr.f32.gmra.mrb[0].mxu0 %v699
      %v862 = vpop.f32.mrb[0].mxu0
      %v863 = vadd.f32 %v692, %v862
      %v864 = vpop.f32.mrb[0].mxu0
      %865 = vmatprep.mubr.f32.mxu0 0.0
      %866 = vmatmul.mubr.f32.gmra.mrb[0].mxu0 %v702
      %v867 = vpop.f32.mrb[0].mxu0
      %v868 = vadd.f32 %v692, %v867
      %v869 = vpop.f32.mrb[0].mxu0
      %870 = vmatprep.mubr.f32.mxu0 0.0
      %871 = vmatmul.mubr.f32.gmra.mrb[0].mxu0 %v705
      %v872 = vpop.f32.mrb[0].mxu0
      %v873 = vadd.f32 %v692, %v872
      %v874 = vpop.f32.mrb[0].mxu0
      %875 = vmatprep.mubr.f32.mxu0 0.0
      %876 = vmatmul.mubr.f32.gmra.mrb[0].mxu0 %v708
      %v877 = vpop.f32.mrb[0].mxu0
      %v878 = vadd.f32 %v692, %v877
      %v879 = vpop.f32.mrb[0].mxu0
      %880 = vmatprep.mubr.f32.mxu0 0.0
      %881 = vmatmul.mubr.f32.gmra.mrb[0].mxu0 %v711
      %v882 = vpop.f32.mrb[0].mxu0
      %v883 = vadd.f32 %v692, %v882
      %v884 = vpop.f32.mrb[0].mxu0
      %885 = vmatprep.mubr.f32.mxu0 0.0
      %886 = vmatmul.mubr.f32.gmra.mrb[0].mxu0 %v714
      %v887 = vpop.f32.mrb[0].mxu0
      %v888 = vadd.f32 %v692, %v887
      %v889 = vpop.f32.mrb[0].mxu0
      %890 = vmatprep.mubr.f32.mxu0 0.0
      %891 = vmatmul.mubr.f32.gmra.mrb[0].mxu0 %v717
      %v892 = vpop.f32.mrb[0].mxu0
      %v893 = vadd.f32 %v692, %v892
      %v894 = vpop.f32.mrb[0].mxu0
      %895 = vmatprep.mubr.f32.mxu0 0.0
      %896 = vmatmul.mubr.f32.gmra.mrb[0].mxu0 %v720
      %v897 = vpop.f32.mrb[0].mxu0
      %v898 = vadd.f32 %v692, %v897
      %v899 = vpop.f32.mrb[0].mxu0
      %900 = vmatprep.mubr.f32.mxu0 0.0
      %901 = vmatmul.mubr.f32.gmra.mrb[0].mxu0 %v723
      %v902 = vpop.f32.mrb[0].mxu0
      %v903 = vadd.f32 %v692, %v902
      %v904 = vpop.f32.mrb[0].mxu0
      %905 = vmatprep.mubr.f32.mxu0 0.0
      %906 = vmatmul.mubr.f32.gmra.mrb[0].mxu0 %v726
      %v907 = vpop.f32.mrb[0].mxu0
      %v908 = vadd.f32 %v692, %v907
      %v909 = vpop.f32.mrb[0].mxu0
      %910 = vmatprep.mubr.f32.mxu0 0.0
      %911 = vmatmul.mubr.f32.gmra.mrb[0].mxu0 %v729
      %v912 = vpop.f32.mrb[0].mxu0
      %v913 = vadd.f32 %v692, %v912
      %v914 = vpop.f32.mrb[0].mxu0
      %915 = vmatprep.mubr.f32.mxu0 0.0
      %916 = vmatmul.mubr.f32.gmra.mrb[0].mxu0 %v732
      %v917 = vpop.f32.mrb[0].mxu0
      %v918 = vadd.f32 %v692, %v917
      %v919 = vpop.f32.mrb[0].mxu0
      %920 = vmatprep.mubr.f32.mxu0 0.0
      %921 = vmatmul.mubr.f32.gmra.mrb[0].mxu0 %v735
      %v922 = vpop.f32.mrb[0].mxu0
      %v923 = vadd.f32 %v692, %v922
      %v924 = vpop.f32.mrb[0].mxu0
      %925 = vmatprep.mubr.f32.mxu0 0.0
      %926 = vmatmul.mubr.f32.gmra.mrb[0].mxu0 %v738
      %v927 = vpop.f32.mrb[0].mxu0
      %v928 = vadd.f32 %v692, %v927
      %v929 = vpop.f32.mrb[0].mxu0
      %930 = vmatprep.mubr.f32.mxu0 0.0
      %931 = vmatmul.mubr.f32.gmra.mrb[0].mxu0 %v741
      %v932 = vpop.f32.mrb[0].mxu0
      %v933 = vadd.f32 %v692, %v932
      %v934 = vpop.f32.mrb[0].mxu0
      %935 = vmatprep.mubr.f32.mxu0 0.0
      %936 = vmatmul.mubr.f32.gmra.mrb[0].mxu0 %v744
      %v937 = vpop.f32.mrb[0].mxu0
      %v938 = vadd.f32 %v692, %v937
      %v939 = vpop.f32.mrb[0].mxu0
      %940 = vmatprep.mubr.f32.mxu0 0.0
      %941 = vmatmul.mubr.f32.gmra.mrb[0].mxu0 %v747
      %v942 = vpop.f32.mrb[0].mxu0
      %v943 = vadd.f32 %v692, %v942
      %v944 = vpop.f32.mrb[0].mxu0
      %945 = vmatprep.mubr.f32.mxu0 0.0
      %946 = vmatmul.mubr.f32.gmra.mrb[0].mxu0 %v750
      %v947 = vpop.f32.mrb[0].mxu0
      %v948 = vadd.f32 %v692, %v947
      %v949 = vpop.f32.mrb[0].mxu0
      %950 = vmatprep.mubr.f32.mxu0 0.0
      %951 = vmatmul.mubr.f32.gmra.mrb[0].mxu0 %v753
      %v952 = vpop.f32.mrb[0].mxu0
      %v953 = vadd.f32 %v692, %v952
      %v954 = vpop.f32.mrb[0].mxu0
      %955 = vmatprep.mubr.f32.mxu0 0.0
      %956 = vmatmul.mubr.f32.gmra.mrb[0].mxu0 %v756
      %v957 = vpop.f32.mrb[0].mxu0
      %v958 = vadd.f32 %v692, %v957
      %v959 = vpop.f32.mrb[0].mxu0
      %960 = vmatprep.mubr.f32.mxu0 0.0
      %961 = vmatmul.mubr.f32.gmra.mrb[0].mxu0 %v759
      %v962 = vpop.f32.mrb[0].mxu0
      %v963 = vadd.f32 %v692, %v962
      %v964 = vpop.f32.mrb[0].mxu0
      %965 = vmatprep.mubr.f32.mxu0 0.0
      %966 = vmatmul.mubr.f32.gmra.mrb[0].mxu0 %v762
      %v967 = vpop.f32.mrb[0].mxu0
      %v968 = vadd.f32 %v692, %v967
      %v969 = vpop.f32.mrb[0].mxu0
      %970 = vmatprep.mubr.f32.mxu0 0.0
      %971 = vmatmul.mubr.f32.gmra.mrb[0].mxu0 %v765
      %v972 = vpop.f32.mrb[0].mxu0
      %v973 = vadd.f32 %v692, %v972
      %v974 = vpop.f32.mrb[0].mxu0
      %975 = vmatprep.mubr.f32.mxu0 0.0
      %976 = vmatmul.mubr.f32.gmra.mrb[0].mxu0 %v768
      %v977 = vpop.f32.mrb[0].mxu0
      %v978 = vadd.f32 %v692, %v977
      %v979 = vpop.f32.mrb[0].mxu0
      %980 = vmatprep.mubr.f32.mxu0 0.0
      %981 = vmatmul.mubr.f32.gmra.mrb[0].mxu0 %v771
      %v982 = vpop.f32.mrb[0].mxu0
      %v983 = vadd.f32 %v692, %v982
      %v984 = vpop.f32.mrb[0].mxu0
      %985 = vmatprep.mubr.f32.mxu0 0.0
      %986 = vmatmul.mubr.f32.gmra.mrb[0].mxu0 %v774
      %v987 = vpop.f32.mrb[0].mxu0
      %v988 = vadd.f32 %v692, %v987
      %v989 = vpop.f32.mrb[0].mxu0
      %990 = vmatprep.mubr.f32.mxu0 0.0
      %991 = vmatmul.mubr.f32.gmra.mrb[0].mxu0 %v777
      %v992 = vpop.f32.mrb[0].mxu0
      %v993 = vadd.f32 %v692, %v992
      %v994 = vpop.f32.mrb[0].mxu0
      %995 = vmatprep.mubr.f32.mxu0 0.0
      %996 = vmatmul.mubr.f32.gmra.mrb[0].mxu0 %v780
      %v997 = vpop.f32.mrb[0].mxu0
      %v998 = vadd.f32 %v692, %v997
      %v999 = vpop.f32.mrb[0].mxu0
      %1000 = vmatprep.mubr.f32.mxu0 0.0
      %1001 = vmatmul.mubr.f32.gmra.mrb[0].mxu0 %v783
      %v1002 = vpop.f32.mrb[0].mxu0
      %v1003 = vadd.f32 %v692, %v1002
      %v1004 = vpop.f32.mrb[0].mxu0
      %1005 = vmatprep.mubr.f32.mxu0 0.0
      %1006 = vmatmul.mubr.f32.gmra.mrb[0].mxu0 %v786
      %v1007 = vpop.f32.mrb[0].mxu0
      %v1008 = vadd.f32 %v692, %v1007
      %v1009 = vpop.f32.mrb[0].mxu0
      %1010 = vmatprep.mubr.f32.mxu0 0.0
      %1011 = vmatmul.mubr.f32.gmra.mrb[0].mxu0 %v789
      %v1012 = vpop.f32.mrb[0].mxu0
      %v1013 = vadd.f32 %v692, %v1012
      %v1014 = vpop.f32.mrb[0].mxu0
      %1015 = vdwg.mxu0
      %v1016 = vmax.f32 %v858, 0.0
      %v1017 = vmax.f32 %v863, 0.0
      %v1018 = vmax.f32 %v868, 0.0
      %v1019 = vmax.f32 %v873, 0.0
      %v1020 = vmax.f32 %v878, 0.0
      %v1021 = vmax.f32 %v883, 0.0
      %v1022 = vmax.f32 %v888, 0.0
      %v1023 = vmax.f32 %v893, 0.0
      %v1024 = vmax.f32 %v898, 0.0
      %v1025 = vmax.f32 %v903, 0.0
      %v1026 = vmax.f32 %v908, 0.0
      %v1027 = vmax.f32 %v913, 0.0
      %v1028 = vmax.f32 %v918, 0.0
      %v1029 = vmax.f32 %v923, 0.0
      %v1030 = vmax.f32 %v928, 0.0
      %v1031 = vmax.f32 %v933, 0.0
      %v1032 = vmax.f32 %v938, 0.0
      %v1033 = vmax.f32 %v943, 0.0
      %v1034 = vmax.f32 %v948, 0.0
      %v1035 = vmax.f32 %v953, 0.0
      %v1036 = vmax.f32 %v958, 0.0
      %v1037 = vmax.f32 %v963, 0.0
      %v1038 = vmax.f32 %v968, 0.0
      %v1039 = vmax.f32 %v973, 0.0
      %v1040 = vmax.f32 %v978, 0.0
      %v1041 = vmax.f32 %v983, 0.0
      %v1042 = vmax.f32 %v988, 0.0
      %v1043 = vmax.f32 %v993, 0.0
      %v1044 = vmax.f32 %v998, 0.0
      %v1045 = vmax.f32 %v1003, 0.0
      %v1046 = vmax.f32 %v1008, 0.0
      %v1047 = vmax.f32 %v1013, 0.0
      %v1048 = vld [vmem:[%s5] sm:$0xff]
      %v1049 = vld [vmem:[%s5 + $0x8] sm:$0xff]
      %v1050 = vld [vmem:[%s5 + $0x10] sm:$0xff]
      %v1051 = vld [vmem:[%s5 + $0x18] sm:$0xff]
      %v1052 = vld [vmem:[%s5 + $0x20] sm:$0xff]
      %v1053 = vld [vmem:[%s5 + $0x28] sm:$0xff]
      %v1054 = vld [vmem:[%s5 + $0x30] sm:$0xff]
      %v1055 = vld [vmem:[%s5 + $0x38] sm:$0xff]
      %v1056 = vld [vmem:[%s6] sm:$0x1]
      %v1058 = vlaneseq
      %v1059 = vshrl.u32 %v1058, 7
      %v1060 = vsub.s32 0, %v1059
      %v1061 = vrot.slane %v1056, %v1060
      %v1064 = vsel %vm694, %v1016, 0
      %v1067 = vsel %vm694, %v1017, 0
      %v1070 = vsel %vm694, %v1018, 0
      %v1073 = vsel %vm694, %v1019, 0
      %v1076 = vsel %vm694, %v1020, 0
      %v1079 = vsel %vm694, %v1021, 0
      %v1082 = vsel %vm694, %v1022, 0
      %v1085 = vsel %vm694, %v1023, 0
      %v1088 = vsel %vm694, %v1024, 0
      %v1091 = vsel %vm694, %v1025, 0
      %v1094 = vsel %vm694, %v1026, 0
      %v1097 = vsel %vm694, %v1027, 0
      %v1100 = vsel %vm694, %v1028, 0
      %v1103 = vsel %vm694, %v1029, 0
      %v1106 = vsel %vm694, %v1030, 0
      %v1109 = vsel %vm694, %v1031, 0
      %v1112 = vsel %vm694, %v1032, 0
      %v1115 = vsel %vm694, %v1033, 0
      %v1118 = vsel %vm694, %v1034, 0
      %v1121 = vsel %vm694, %v1035, 0
      %v1124 = vsel %vm694, %v1036, 0
      %v1127 = vsel %vm694, %v1037, 0
      %v1130 = vsel %vm694, %v1038, 0
      %v1133 = vsel %vm694, %v1039, 0
      %v1136 = vsel %vm694, %v1040, 0
      %v1139 = vsel %vm694, %v1041, 0
      %v1142 = vsel %vm694, %v1042, 0
      %v1145 = vsel %vm694, %v1043, 0
      %v1148 = vsel %vm694, %v1044, 0
      %v1151 = vsel %vm694, %v1045, 0
      %v1154 = vsel %vm694, %v1046, 0
      %v1157 = vsel %vm694, %v1047, 0
      %1159 = vmatprep.subr.mxu0 0.0
      %1160 = vmatpush1.msra.mxu0 %v1048
      %1161 = vmatprep.subr.mxu0 0.0
      %1162 = vmatpush1.msra.mxu0 %v1049
      %1163 = vmatprep.subr.mxu0 0.0
      %1164 = vmatpush1.msra.mxu0 %v1050
      %1165 = vmatprep.subr.mxu0 0.0
      %1166 = vmatpush1.msra.mxu0 %v1051
      %1167 = vmatprep.subr.mxu0 0.0
      %1168 = vmatpush1.msra.mxu0 %v1052
      %1169 = vmatprep.subr.mxu0 0.0
      %1170 = vmatpush1.msra.mxu0 %v1053
      %1171 = vmatprep.subr.mxu0 0.0
      %1172 = vmatpush1.msra.mxu0 %v1054
      %1173 = vmatprep.subr.mxu0 0.0
      %1174 = vmatpush1.msra.mxu0 %v1055
      %1175 = vmatprep.subr.mxu0 0.0
      %1176 = vmatpush1.msra.mxu0 0.0
      %1177 = vmatprep.subr.mxu0 0.0
      %1178 = vmatpush1.msra.mxu0 0.0
      %1179 = vmatprep.subr.mxu0 0.0
      %1180 = vmatpush1.msra.mxu0 0.0
      %1181 = vmatprep.subr.mxu0 0.0
      %1182 = vmatpush1.msra.mxu0 0.0
      %1183 = vmatprep.subr.mxu0 0.0
      %1184 = vmatpush1.msra.mxu0 0.0
      %1185 = vmatprep.subr.mxu0 0.0
      %1186 = vmatpush1.msra.mxu0 0.0
      %1187 = vmatprep.subr.mxu0 0.0
      %1188 = vmatpush1.msra.mxu0 0.0
      %1189 = vmatprep.subr.mxu0 0.0
      %1190 = vmatpush1.msra.mxu0 0.0
      %1191 = vmatprep.subr.mxu0 0.0
      %1192 = vmatpush1.msra.mxu0 0.0
      %1193 = vmatprep.subr.mxu0 0.0
      %1194 = vmatpush1.msra.mxu0 0.0
      %1195 = vmatprep.subr.mxu0 0.0
      %1196 = vmatpush1.msra.mxu0 0.0
      %1197 = vmatprep.subr.mxu0 0.0
      %1198 = vmatpush1.msra.mxu0 0.0
      %1199 = vmatprep.subr.mxu0 0.0
      %1200 = vmatpush1.msra.mxu0 0.0
      %1201 = vmatprep.subr.mxu0 0.0
      %1202 = vmatpush1.msra.mxu0 0.0
      %1203 = vmatprep.subr.mxu0 0.0
      %1204 = vmatpush1.msra.mxu0 0.0
      %1205 = vmatprep.subr.mxu0 0.0
      %1206 = vmatpush1.msra.mxu0 0.0
      %1207 = vmatprep.subr.mxu0 0.0
      %1208 = vmatpush1.msra.mxu0 0.0
      %1209 = vmatprep.subr.mxu0 0.0
      %1210 = vmatpush1.msra.mxu0 0.0
      %1211 = vmatprep.subr.mxu0 0.0
      %1212 = vmatpush1.msra.mxu0 0.0
      %1213 = vmatprep.subr.mxu0 0.0
      %1214 = vmatpush1.msra.mxu0 0.0
      %1215 = vmatprep.subr.mxu0 0.0
      %1216 = vmatpush1.msra.mxu0 0.0
      %1217 = vmatprep.subr.mxu0 0.0
      %1218 = vmatpush1.msra.mxu0 0.0
      %1219 = vmatprep.subr.mxu0 0.0
      %1220 = vmatpush1.msra.mxu0 0.0
      %1221 = vmatprep.subr.mxu0 0.0
      %1222 = vmatpush1.msra.mxu0 0.0
      %1223 = vmatprep.mubr.f32.mxu0 0.0
      %1224 = vmatmul.mubr.f32.gmra.mrb[0].mxu0 %v1064
      %v1225 = vpop.f32.mrb[0].mxu0
      %v1226 = vadd.f32 %v1061, %v1225
      %v1227 = vpop.f32.mrb[0].mxu0
      %1228 = vmatprep.mubr.f32.mxu0 0.0
      %1229 = vmatmul.mubr.f32.gmra.mrb[0].mxu0 %v1067
      %v1230 = vpop.f32.mrb[0].mxu0
      %v1231 = vadd.f32 %v1061, %v1230
      %v1232 = vpop.f32.mrb[0].mxu0
      %1233 = vmatprep.mubr.f32.mxu0 0.0
      %1234 = vmatmul.mubr.f32.gmra.mrb[0].mxu0 %v1070
      %v1235 = vpop.f32.mrb[0].mxu0
      %v1236 = vadd.f32 %v1061, %v1235
      %v1237 = vpop.f32.mrb[0].mxu0
      %1238 = vmatprep.mubr.f32.mxu0 0.0
      %1239 = vmatmul.mubr.f32.gmra.mrb[0].mxu0 %v1073
      %v1240 = vpop.f32.mrb[0].mxu0
      %v1241 = vadd.f32 %v1061, %v1240
      %v1242 = vpop.f32.mrb[0].mxu0
      %1243 = vmatprep.mubr.f32.mxu0 0.0
      %1244 = vmatmul.mubr.f32.gmra.mrb[0].mxu0 %v1076
      %v1245 = vpop.f32.mrb[0].mxu0
      %v1246 = vadd.f32 %v1061, %v1245
      %v1247 = vpop.f32.mrb[0].mxu0
      %1248 = vmatprep.mubr.f32.mxu0 0.0
      %1249 = vmatmul.mubr.f32.gmra.mrb[0].mxu0 %v1079
      %v1250 = vpop.f32.mrb[0].mxu0
      %v1251 = vadd.f32 %v1061, %v1250
      %v1252 = vpop.f32.mrb[0].mxu0
      %1253 = vmatprep.mubr.f32.mxu0 0.0
      %1254 = vmatmul.mubr.f32.gmra.mrb[0].mxu0 %v1082
      %v1255 = vpop.f32.mrb[0].mxu0
      %v1256 = vadd.f32 %v1061, %v1255
      %v1257 = vpop.f32.mrb[0].mxu0
      %1258 = vmatprep.mubr.f32.mxu0 0.0
      %1259 = vmatmul.mubr.f32.gmra.mrb[0].mxu0 %v1085
      %v1260 = vpop.f32.mrb[0].mxu0
      %v1261 = vadd.f32 %v1061, %v1260
      %v1262 = vpop.f32.mrb[0].mxu0
      %1263 = vmatprep.mubr.f32.mxu0 0.0
      %1264 = vmatmul.mubr.f32.gmra.mrb[0].mxu0 %v1088
      %v1265 = vpop.f32.mrb[0].mxu0
      %v1266 = vadd.f32 %v1061, %v1265
      %v1267 = vpop.f32.mrb[0].mxu0
      %1268 = vmatprep.mubr.f32.mxu0 0.0
      %1269 = vmatmul.mubr.f32.gmra.mrb[0].mxu0 %v1091
      %v1270 = vpop.f32.mrb[0].mxu0
      %v1271 = vadd.f32 %v1061, %v1270
      %v1272 = vpop.f32.mrb[0].mxu0
      %1273 = vmatprep.mubr.f32.mxu0 0.0
      %1274 = vmatmul.mubr.f32.gmra.mrb[0].mxu0 %v1094
      %v1275 = vpop.f32.mrb[0].mxu0
      %v1276 = vadd.f32 %v1061, %v1275
      %v1277 = vpop.f32.mrb[0].mxu0
      %1278 = vmatprep.mubr.f32.mxu0 0.0
      %1279 = vmatmul.mubr.f32.gmra.mrb[0].mxu0 %v1097
      %v1280 = vpop.f32.mrb[0].mxu0
      %v1281 = vadd.f32 %v1061, %v1280
      %v1282 = vpop.f32.mrb[0].mxu0
      %1283 = vmatprep.mubr.f32.mxu0 0.0
      %1284 = vmatmul.mubr.f32.gmra.mrb[0].mxu0 %v1100
      %v1285 = vpop.f32.mrb[0].mxu0
      %v1286 = vadd.f32 %v1061, %v1285
      %v1287 = vpop.f32.mrb[0].mxu0
      %1288 = vmatprep.mubr.f32.mxu0 0.0
      %1289 = vmatmul.mubr.f32.gmra.mrb[0].mxu0 %v1103
      %v1290 = vpop.f32.mrb[0].mxu0
      %v1291 = vadd.f32 %v1061, %v1290
      %v1292 = vpop.f32.mrb[0].mxu0
      %1293 = vmatprep.mubr.f32.mxu0 0.0
      %1294 = vmatmul.mubr.f32.gmra.mrb[0].mxu0 %v1106
      %v1295 = vpop.f32.mrb[0].mxu0
      %v1296 = vadd.f32 %v1061, %v1295
      %v1297 = vpop.f32.mrb[0].mxu0
      %1298 = vmatprep.mubr.f32.mxu0 0.0
      %1299 = vmatmul.mubr.f32.gmra.mrb[0].mxu0 %v1109
      %v1300 = vpop.f32.mrb[0].mxu0
      %v1301 = vadd.f32 %v1061, %v1300
      %v1302 = vpop.f32.mrb[0].mxu0
      %1303 = vmatprep.mubr.f32.mxu0 0.0
      %1304 = vmatmul.mubr.f32.gmra.mrb[0].mxu0 %v1112
      %v1305 = vpop.f32.mrb[0].mxu0
      %v1306 = vadd.f32 %v1061, %v1305
      %v1307 = vpop.f32.mrb[0].mxu0
      %1308 = vmatprep.mubr.f32.mxu0 0.0
      %1309 = vmatmul.mubr.f32.gmra.mrb[0].mxu0 %v1115
      %v1310 = vpop.f32.mrb[0].mxu0
      %v1311 = vadd.f32 %v1061, %v1310
      %v1312 = vpop.f32.mrb[0].mxu0
      %1313 = vmatprep.mubr.f32.mxu0 0.0
      %1314 = vmatmul.mubr.f32.gmra.mrb[0].mxu0 %v1118
      %v1315 = vpop.f32.mrb[0].mxu0
      %v1316 = vadd.f32 %v1061, %v1315
      %v1317 = vpop.f32.mrb[0].mxu0
      %1318 = vmatprep.mubr.f32.mxu0 0.0
      %1319 = vmatmul.mubr.f32.gmra.mrb[0].mxu0 %v1121
      %v1320 = vpop.f32.mrb[0].mxu0
      %v1321 = vadd.f32 %v1061, %v1320
      %v1322 = vpop.f32.mrb[0].mxu0
      %1323 = vmatprep.mubr.f32.mxu0 0.0
      %1324 = vmatmul.mubr.f32.gmra.mrb[0].mxu0 %v1124
      %v1325 = vpop.f32.mrb[0].mxu0
      %v1326 = vadd.f32 %v1061, %v1325
      %v1327 = vpop.f32.mrb[0].mxu0
      %1328 = vmatprep.mubr.f32.mxu0 0.0
      %1329 = vmatmul.mubr.f32.gmra.mrb[0].mxu0 %v1127
      %v1330 = vpop.f32.mrb[0].mxu0
      %v1331 = vadd.f32 %v1061, %v1330
      %v1332 = vpop.f32.mrb[0].mxu0
      %1333 = vmatprep.mubr.f32.mxu0 0.0
      %1334 = vmatmul.mubr.f32.gmra.mrb[0].mxu0 %v1130
      %v1335 = vpop.f32.mrb[0].mxu0
      %v1336 = vadd.f32 %v1061, %v1335
      %v1337 = vpop.f32.mrb[0].mxu0
      %1338 = vmatprep.mubr.f32.mxu0 0.0
      %1339 = vmatmul.mubr.f32.gmra.mrb[0].mxu0 %v1133
      %v1340 = vpop.f32.mrb[0].mxu0
      %v1341 = vadd.f32 %v1061, %v1340
      %v1342 = vpop.f32.mrb[0].mxu0
      %1343 = vmatprep.mubr.f32.mxu0 0.0
      %1344 = vmatmul.mubr.f32.gmra.mrb[0].mxu0 %v1136
      %v1345 = vpop.f32.mrb[0].mxu0
      %v1346 = vadd.f32 %v1061, %v1345
      %v1347 = vpop.f32.mrb[0].mxu0
      %1348 = vmatprep.mubr.f32.mxu0 0.0
      %1349 = vmatmul.mubr.f32.gmra.mrb[0].mxu0 %v1139
      %v1350 = vpop.f32.mrb[0].mxu0
      %v1351 = vadd.f32 %v1061, %v1350
      %v1352 = vpop.f32.mrb[0].mxu0
      %1353 = vmatprep.mubr.f32.mxu0 0.0
      %1354 = vmatmul.mubr.f32.gmra.mrb[0].mxu0 %v1142
      %v1355 = vpop.f32.mrb[0].mxu0
      %v1356 = vadd.f32 %v1061, %v1355
      %v1357 = vpop.f32.mrb[0].mxu0
      %1358 = vmatprep.mubr.f32.mxu0 0.0
      %1359 = vmatmul.mubr.f32.gmra.mrb[0].mxu0 %v1145
      %v1360 = vpop.f32.mrb[0].mxu0
      %v1361 = vadd.f32 %v1061, %v1360
      %v1362 = vpop.f32.mrb[0].mxu0
      %1363 = vmatprep.mubr.f32.mxu0 0.0
      %1364 = vmatmul.mubr.f32.gmra.mrb[0].mxu0 %v1148
      %v1365 = vpop.f32.mrb[0].mxu0
      %v1366 = vadd.f32 %v1061, %v1365
      %v1367 = vpop.f32.mrb[0].mxu0
      %1368 = vmatprep.mubr.f32.mxu0 0.0
      %1369 = vmatmul.mubr.f32.gmra.mrb[0].mxu0 %v1151
      %v1370 = vpop.f32.mrb[0].mxu0
      %v1371 = vadd.f32 %v1061, %v1370
      %v1372 = vpop.f32.mrb[0].mxu0
      %1373 = vmatprep.mubr.f32.mxu0 0.0
      %1374 = vmatmul.mubr.f32.gmra.mrb[0].mxu0 %v1154
      %v1375 = vpop.f32.mrb[0].mxu0
      %v1376 = vadd.f32 %v1061, %v1375
      %v1377 = vpop.f32.mrb[0].mxu0
      %1378 = vmatprep.mubr.f32.mxu0 0.0
      %1379 = vmatmul.mubr.f32.gmra.mrb[0].mxu0 %v1157
      %v1380 = vpop.f32.mrb[0].mxu0
      %v1381 = vadd.f32 %v1061, %v1380
      %v1382 = vpop.f32.mrb[0].mxu0
      %1383 = vdwg.mxu0
      %v1384 = vxor.u32 %v1226, 2147483648
      %v1385 = vxor.u32 %v1231, 2147483648
      %v1386 = vxor.u32 %v1236, 2147483648
      %v1387 = vxor.u32 %v1241, 2147483648
      %v1388 = vxor.u32 %v1246, 2147483648
      %v1389 = vxor.u32 %v1251, 2147483648
      %v1390 = vxor.u32 %v1256, 2147483648
      %v1391 = vxor.u32 %v1261, 2147483648
      %v1392 = vxor.u32 %v1266, 2147483648
      %v1393 = vxor.u32 %v1271, 2147483648
      %v1394 = vxor.u32 %v1276, 2147483648
      %v1395 = vxor.u32 %v1281, 2147483648
      %v1396 = vxor.u32 %v1286, 2147483648
      %v1397 = vxor.u32 %v1291, 2147483648
      %v1398 = vxor.u32 %v1296, 2147483648
      %v1399 = vxor.u32 %v1301, 2147483648
      %v1400 = vxor.u32 %v1306, 2147483648
      %v1401 = vxor.u32 %v1311, 2147483648
      %v1402 = vxor.u32 %v1316, 2147483648
      %v1403 = vxor.u32 %v1321, 2147483648
      %v1404 = vxor.u32 %v1326, 2147483648
      %v1405 = vxor.u32 %v1331, 2147483648
      %v1406 = vxor.u32 %v1336, 2147483648
      %v1407 = vxor.u32 %v1341, 2147483648
      %v1408 = vxor.u32 %v1346, 2147483648
      %v1409 = vxor.u32 %v1351, 2147483648
      %v1410 = vxor.u32 %v1356, 2147483648
      %v1411 = vxor.u32 %v1361, 2147483648
      %v1412 = vxor.u32 %v1366, 2147483648
      %v1413 = vxor.u32 %v1371, 2147483648
      %v1414 = vxor.u32 %v1376, 2147483648
      %v1415 = vxor.u32 %v1381, 2147483648
      %v1416 = vmul.f32 %v1384, 1.442695
      %v1417 = vpow.pop %v1416
      %v1418 = vmul.f32 %v1385, 1.442695
      %v1419 = vpow.pop %v1418
      %v1420 = vmul.f32 %v1386, 1.442695
      %v1421 = vpow.pop %v1420
      %v1422 = vmul.f32 %v1387, 1.442695
      %v1423 = vpow.pop %v1422
      %v1424 = vmul.f32 %v1388, 1.442695
      %v1425 = vpow.pop %v1424
      %v1426 = vmul.f32 %v1389, 1.442695
      %v1427 = vpow.pop %v1426
      %v1428 = vmul.f32 %v1390, 1.442695
      %v1429 = vpow.pop %v1428
      %v1430 = vmul.f32 %v1391, 1.442695
      %v1431 = vpow.pop %v1430
      %v1432 = vmul.f32 %v1392, 1.442695
      %v1433 = vpow.pop %v1432
      %v1434 = vmul.f32 %v1393, 1.442695
      %v1435 = vpow.pop %v1434
      %v1436 = vmul.f32 %v1394, 1.442695
      %v1437 = vpow.pop %v1436
      %v1438 = vmul.f32 %v1395, 1.442695
      %v1439 = vpow.pop %v1438
      %v1440 = vmul.f32 %v1396, 1.442695
      %v1441 = vpow.pop %v1440
      %v1442 = vmul.f32 %v1397, 1.442695
      %v1443 = vpow.pop %v1442
      %v1444 = vmul.f32 %v1398, 1.442695
      %v1445 = vpow.pop %v1444
      %v1446 = vmul.f32 %v1399, 1.442695
      %v1447 = vpow.pop %v1446
      %v1448 = vmul.f32 %v1400, 1.442695
      %v1449 = vpow.pop %v1448
      %v1450 = vmul.f32 %v1401, 1.442695
      %v1451 = vpow.pop %v1450
      %v1452 = vmul.f32 %v1402, 1.442695
      %v1453 = vpow.pop %v1452
      %v1454 = vmul.f32 %v1403, 1.442695
      %v1455 = vpow.pop %v1454
      %v1456 = vmul.f32 %v1404, 1.442695
      %v1457 = vpow.pop %v1456
      %v1458 = vmul.f32 %v1405, 1.442695
      %v1459 = vpow.pop %v1458
      %v1460 = vmul.f32 %v1406, 1.442695
      %v1461 = vpow.pop %v1460
      %v1462 = vmul.f32 %v1407, 1.442695
      %v1463 = vpow.pop %v1462
      %v1464 = vmul.f32 %v1408, 1.442695
      %v1465 = vpow.pop %v1464
      %v1466 = vmul.f32 %v1409, 1.442695
      %v1467 = vpow.pop %v1466
      %v1468 = vmul.f32 %v1410, 1.442695
      %v1469 = vpow.pop %v1468
      %v1470 = vmul.f32 %v1411, 1.442695
      %v1471 = vpow.pop %v1470
      %v1472 = vmul.f32 %v1412, 1.442695
      %v1473 = vpow.pop %v1472
      %v1474 = vmul.f32 %v1413, 1.442695
      %v1475 = vpow.pop %v1474
      %v1476 = vmul.f32 %v1414, 1.442695
      %v1477 = vpow.pop %v1476
      %v1478 = vmul.f32 %v1415, 1.442695
      %v1479 = vpow.pop %v1478
      %v1480 = vadd.f32 %v1417, 1.0
      %v1481 = vadd.f32 %v1419, 1.0
      %v1482 = vadd.f32 %v1421, 1.0
      %v1483 = vadd.f32 %v1423, 1.0
      %v1484 = vadd.f32 %v1425, 1.0
      %v1485 = vadd.f32 %v1427, 1.0
      %v1486 = vadd.f32 %v1429, 1.0
      %v1487 = vadd.f32 %v1431, 1.0
      %v1488 = vadd.f32 %v1433, 1.0
      %v1489 = vadd.f32 %v1435, 1.0
      %v1490 = vadd.f32 %v1437, 1.0
      %v1491 = vadd.f32 %v1439, 1.0
      %v1492 = vadd.f32 %v1441, 1.0
      %v1493 = vadd.f32 %v1443, 1.0
      %v1494 = vadd.f32 %v1445, 1.0
      %v1495 = vadd.f32 %v1447, 1.0
      %v1496 = vadd.f32 %v1449, 1.0
      %v1497 = vadd.f32 %v1451, 1.0
      %v1498 = vadd.f32 %v1453, 1.0
      %v1499 = vadd.f32 %v1455, 1.0
      %v1500 = vadd.f32 %v1457, 1.0
      %v1501 = vadd.f32 %v1459, 1.0
      %v1502 = vadd.f32 %v1461, 1.0
      %v1503 = vadd.f32 %v1463, 1.0
      %v1504 = vadd.f32 %v1465, 1.0
      %v1505 = vadd.f32 %v1467, 1.0
      %v1506 = vadd.f32 %v1469, 1.0
      %v1507 = vadd.f32 %v1471, 1.0
      %v1508 = vadd.f32 %v1473, 1.0
      %v1509 = vadd.f32 %v1475, 1.0
      %v1510 = vadd.f32 %v1477, 1.0
      %v1511 = vadd.f32 %v1479, 1.0
      %v1512 = vrcp.pop %v1480
      %v1513 = vmul.f32 1.0, %v1512
      %v1514 = vrcp.pop %v1481
      %v1515 = vmul.f32 1.0, %v1514
      %v1516 = vrcp.pop %v1482
      %v1517 = vmul.f32 1.0, %v1516
      %v1518 = vrcp.pop %v1483
      %v1519 = vmul.f32 1.0, %v1518
      %v1520 = vrcp.pop %v1484
      %v1521 = vmul.f32 1.0, %v1520
      %v1522 = vrcp.pop %v1485
      %v1523 = vmul.f32 1.0, %v1522
      %v1524 = vrcp.pop %v1486
      %v1525 = vmul.f32 1.0, %v1524
      %v1526 = vrcp.pop %v1487
      %v1527 = vmul.f32 1.0, %v1526
      %v1528 = vrcp.pop %v1488
      %v1529 = vmul.f32 1.0, %v1528
      %v1530 = vrcp.pop %v1489
      %v1531 = vmul.f32 1.0, %v1530
      %v1532 = vrcp.pop %v1490
      %v1533 = vmul.f32 1.0, %v1532
      %v1534 = vrcp.pop %v1491
      %v1535 = vmul.f32 1.0, %v1534
      %v1536 = vrcp.pop %v1492
      %v1537 = vmul.f32 1.0, %v1536
      %v1538 = vrcp.pop %v1493
      %v1539 = vmul.f32 1.0, %v1538
      %v1540 = vrcp.pop %v1494
      %v1541 = vmul.f32 1.0, %v1540
      %v1542 = vrcp.pop %v1495
      %v1543 = vmul.f32 1.0, %v1542
      %v1544 = vrcp.pop %v1496
      %v1545 = vmul.f32 1.0, %v1544
      %v1546 = vrcp.pop %v1497
      %v1547 = vmul.f32 1.0, %v1546
      %v1548 = vrcp.pop %v1498
      %v1549 = vmul.f32 1.0, %v1548
      %v1550 = vrcp.pop %v1499
      %v1551 = vmul.f32 1.0, %v1550
      %v1552 = vrcp.pop %v1500
      %v1553 = vmul.f32 1.0, %v1552
      %v1554 = vrcp.pop %v1501
      %v1555 = vmul.f32 1.0, %v1554
      %v1556 = vrcp.pop %v1502
      %v1557 = vmul.f32 1.0, %v1556
      %v1558 = vrcp.pop %v1503
      %v1559 = vmul.f32 1.0, %v1558
      %v1560 = vrcp.pop %v1504
      %v1561 = vmul.f32 1.0, %v1560
      %v1562 = vrcp.pop %v1505
      %v1563 = vmul.f32 1.0, %v1562
      %v1564 = vrcp.pop %v1506
      %v1565 = vmul.f32 1.0, %v1564
      %v1566 = vrcp.pop %v1507
      %v1567 = vmul.f32 1.0, %v1566
      %v1568 = vrcp.pop %v1508
      %v1569 = vmul.f32 1.0, %v1568
      %v1570 = vrcp.pop %v1509
      %v1571 = vmul.f32 1.0, %v1570
      %v1572 = vrcp.pop %v1510
      %v1573 = vmul.f32 1.0, %v1572
      %v1574 = vrcp.pop %v1511
      %v1575 = vmul.f32 1.0, %v1574
      %vm1576 = vcmask 130048
      %1577 = vst.msk [vmem:[%s280] sm:$0xff] %vm1576, %v1513
      %1578 = vst.msk [vmem:[%s280 + $0x8] sm:$0xff] %vm1576, %v1515
      %1579 = vst.msk [vmem:[%s280 + $0x10] sm:$0xff] %vm1576, %v1517
      %1580 = vst.msk [vmem:[%s280 + $0x18] sm:$0xff] %vm1576, %v1519
      %1581 = vst.msk [vmem:[%s280 + $0x20] sm:$0xff] %vm1576, %v1521
      %1582 = vst.msk [vmem:[%s280 + $0x28] sm:$0xff] %vm1576, %v1523
      %1583 = vst.msk [vmem:[%s280 + $0x30] sm:$0xff] %vm1576, %v1525
      %1584 = vst.msk [vmem:[%s280 + $0x38] sm:$0xff] %vm1576, %v1527
      %1585 = vst.msk [vmem:[%s280 + $0x40] sm:$0xff] %vm1576, %v1529
      %1586 = vst.msk [vmem:[%s280 + $0x48] sm:$0xff] %vm1576, %v1531
      %1587 = vst.msk [vmem:[%s280 + $0x50] sm:$0xff] %vm1576, %v1533
      %1588 = vst.msk [vmem:[%s280 + $0x58] sm:$0xff] %vm1576, %v1535
      %1589 = vst.msk [vmem:[%s280 + $0x60] sm:$0xff] %vm1576, %v1537
      %1590 = vst.msk [vmem:[%s280 + $0x68] sm:$0xff] %vm1576, %v1539
      %1591 = vst.msk [vmem:[%s280 + $0x70] sm:$0xff] %vm1576, %v1541
      %1592 = vst.msk [vmem:[%s280 + $0x78] sm:$0xff] %vm1576, %v1543
      %1593 = vst.msk [vmem:[%s280 + $0x80] sm:$0xff] %vm1576, %v1545
      %1594 = vst.msk [vmem:[%s280 + $0x88] sm:$0xff] %vm1576, %v1547
      %1595 = vst.msk [vmem:[%s280 + $0x90] sm:$0xff] %vm1576, %v1549
      %1596 = vst.msk [vmem:[%s280 + $0x98] sm:$0xff] %vm1576, %v1551
      %1597 = vst.msk [vmem:[%s280 + $0xa0] sm:$0xff] %vm1576, %v1553
      %1598 = vst.msk [vmem:[%s280 + $0xa8] sm:$0xff] %vm1576, %v1555
      %1599 = vst.msk [vmem:[%s280 + $0xb0] sm:$0xff] %vm1576, %v1557
      %1600 = vst.msk [vmem:[%s280 + $0xb8] sm:$0xff] %vm1576, %v1559
      %1601 = vst.msk [vmem:[%s280 + $0xc0] sm:$0xff] %vm1576, %v1561
      %1602 = vst.msk [vmem:[%s280 + $0xc8] sm:$0xff] %vm1576, %v1563
      %1603 = vst.msk [vmem:[%s280 + $0xd0] sm:$0xff] %vm1576, %v1565
      %1604 = vst.msk [vmem:[%s280 + $0xd8] sm:$0xff] %vm1576, %v1567
      %1605 = vst.msk [vmem:[%s280 + $0xe0] sm:$0xff] %vm1576, %v1569
      %1606 = vst.msk [vmem:[%s280 + $0xe8] sm:$0xff] %vm1576, %v1571
      %1607 = vst.msk [vmem:[%s280 + $0xf0] sm:$0xff] %vm1576, %v1573
      %1608 = vst.msk [vmem:[%s280 + $0xf8] sm:$0xff] %vm1576, %v1575
      %s1609 = smul.u32 32, %s18
      %p1610 = scmp.lt.s32.totalorder %s1609, 63
      %s1611 = scalar_select %p1610, %s1609, 63
      %s1612 = smul.addr %s1611, 8
      %s1613 = scalar_lea.vmem %s7, %s1612
      // Predicated region
      $region49: #{tpu_custom_call.1} parent=47 // pred_check
        %p1614 = pneg %p188
      $region50: #{tpu_custom_call.1} parent=47 // pred_check_branch
        %1616 = sbr.rel (%p1614) target = $region52
      $region51: #{tpu_custom_call.1} parent=47 // pred_region
        %s1617 = smul.u32 32, %s18
      $region52: #{tpu_custom_call.1} parent=47 // pred_fallthru
        _
    $region48: #{tpu_custom_call.1} parent=5 // pred_fallthru
      _
    %p1618 = scmp.le.s32.totalorder 2, %s13
    // Predicated region
    $region53: #{tpu_custom_call.1} parent=5 // pred_check
      %p1619 = pneg %p1618
    $region54: #{tpu_custom_call.1} parent=5 // pred_check_branch
      %1621 = sbr.rel (%p1619) target = $region56
    $region55: #{tpu_custom_call.1} parent=5 // pred_region
      %s1622 = ssub.s32 %s13, 2
      // Predicated region
      $region57: #{tpu_custom_call.1} parent=55 // pred_check
        %p1623 = pneg %p194
      $region58: #{tpu_custom_call.1} parent=55 // pred_check_branch
        %1625 = sbr.rel (%p1623) target = $region60
      $region59: #{tpu_custom_call.1} parent=55 // pred_region
        %s1626 = smul.u32 32, %s19
        %p1627 = scmp.lt.s32.totalorder %s1626, 63
        %s1628 = scalar_select %p1627, %s1626, 63
        %s1629 = smul.addr %s1628, 8
        %s1630 = scalar_lea.vmem %s7, %s1629
      $region60: #{tpu_custom_call.1} parent=55 // pred_fallthru
        _
    $region56: #{tpu_custom_call.1} parent=5 // pred_fallthru
      _
  $region6: #{tpu_custom_call.1} parent=0 // loop_footer
    %s17 = sadd.s32 1, %s13
  $region7: #{tpu_custom_call.1} parent=0 // loop_footer_branch
    %12 = sbr.rel target = $region3
  $region8: #{tpu_custom_call.1} parent=0 // loop_exit
    _

</llo_original>
